<compile_context>
chip_gen: v7x
topology: tpu7x:2x2x1
jax: 0.10.0
libtpu: 0.0.40
codegen_flags: <defaults>
</compile_context>

<pallas_src>
import math
from functools import partial

import jax
import jax.numpy as jnp
from jax.experimental import pallas as pl
from jax.experimental.pallas import tpu as pltpu

LN_EPS = 1e-5          # PyTorch LayerNorm default
LANE = 128
SUBLANE = 8
NEG_INF = -1e30


def _round_up(n, m):
    return (n + m - 1) // m * m


def _gelu_exact(x):
    # F.gelu default (exact, erf-based)
    return 0.5 * x * (1.0 + jax.lax.erf(x * (1.0 / math.sqrt(2.0))))


def _layer_norm(x, gamma, beta):
    mean = jnp.mean(x, axis=-1, keepdims=True)
    var = jnp.mean((x - mean) ** 2, axis=-1, keepdims=True)
    return (x - mean) * jax.lax.rsqrt(var + LN_EPS) * gamma + beta


def _masked_layer_norm(x, gamma, beta, lane_mask, inv_e):
    """LayerNorm over the first E (real) lanes of a lane-padded (S, Ep) activation."""
    mean = jnp.sum(x, axis=-1, keepdims=True) * inv_e
    c = jnp.where(lane_mask, x - mean, 0.0)
    var = jnp.sum(c * c, axis=-1, keepdims=True) * inv_e
    # gamma/beta are zero in the padded lanes, so the padded region stays exactly 0.
    return c * jax.lax.rsqrt(var + LN_EPS) * gamma + beta


def transformer_layer_kernel(x_ref,
                             wqkv_ref, bqkv_ref, wo_ref, bo_ref,
                             ln1g_ref, ln1b_ref,
                             w1_ref, b1_ref, w2_ref, b2_ref,
                             ln2g_ref, ln2b_ref,
                             o_ref, x_state, *,
                             num_heads, head_lanes, seq_len, embed_dim):
    """One (batch element, layer) grid step; activations carried in VMEM scratch."""
    layer = pl.program_id(1)
    Sp, Ep = x_state.shape
    NH, HL = num_heads, head_lanes
    inv_e = 1.0 / embed_dim

    # Load the batch element's activations into the carried state on the first layer.
    @pl.when(layer == 0)
    def _():
        x_state[...] = x_ref[0].astype(jnp.float32)

    x = x_state[...]
    lane_mask = jax.lax.broadcasted_iota(jnp.int32, (1, Ep), 1) < embed_dim

    # ---- fused QKV projection (1/sqrt(Dh) already folded into the Q segment) ----
    qkv = jnp.dot(x, wqkv_ref[0], preferred_element_type=jnp.float32) + bqkv_ref[0]

    # Additive key-padding mask only if the sequence is padded (static decision).
    if Sp > seq_len:
        key_mask = jnp.where(
            jax.lax.broadcasted_iota(jnp.int32, (1, Sp), 1) < seq_len, 0.0, NEG_INF)
    else:
        key_mask = None

    # ---- multi-head attention: 128-lane-aligned head segments ----
    ctxs = []
    for h in range(NH):                                   # small static head loop
        qh = qkv[:, h * HL:(h + 1) * HL]                  # (Sp, 128), tile-aligned slice
        kh = qkv[:, (NH + h) * HL:(NH + h + 1) * HL]
        vh = qkv[:, (2 * NH + h) * HL:(2 * NH + h + 1) * HL]
        s = jax.lax.dot_general(qh, kh, (((1,), (1,)), ((), ())),
                                preferred_element_type=jnp.float32)   # (Sp, Sp)
        if key_mask is not None:
            s = s + key_mask
        m = jnp.max(s, axis=-1, keepdims=True)
        p = jnp.exp(s - m)
        p = p / jnp.sum(p, axis=-1, keepdims=True)        # exact reciprocal (parity)
        ctxs.append(jnp.dot(p, vh, preferred_element_type=jnp.float32))  # (Sp, 128)

    ctx = jnp.concatenate(ctxs, axis=-1)                  # (Sp, NH*128), lane-aligned
    # ---- single fused output projection ----
    attn = jnp.dot(ctx, wo_ref[0], preferred_element_type=jnp.float32) + bo_ref[0]

    # ---- residual + LayerNorm 1 (norm_first=False => post-norm) ----
    x1 = _masked_layer_norm(x + attn, ln1g_ref[0], ln1b_ref[0], lane_mask, inv_e)

    # ---- feed-forward: linear2(gelu(linear1(x1))) ----
    h1 = jnp.dot(x1, w1_ref[0], preferred_element_type=jnp.float32) + b1_ref[0]
    h1 = _gelu_exact(h1)
    ff = jnp.dot(h1, w2_ref[0], preferred_element_type=jnp.float32) + b2_ref[0]

    # ---- residual + LayerNorm 2 ----
    x2 = _masked_layer_norm(x1 + ff, ln2g_ref[0], ln2b_ref[0], lane_mask, inv_e)
    x_state[...] = x2

    # Flush to the output block only on the last layer (block stays VMEM-resident until
    # the batch index changes -> one full-width unmasked store per batch element).
    @pl.when(layer == pl.num_programs(1) - 1)
    def _():
        o_ref[0] = x2.astype(o_ref.dtype)


def pack_params(params, *, num_heads, head_lanes=LANE):
    """One-time packing: layer-stacked, lane-padded weights with per-head 128-lane
    segments for Q/K/V (scale folded into Q) and 128-row segments for Wo."""
    E = params[0][0].shape[0]
    HID = params[0][10].shape[1]
    NH, HL = num_heads, head_lanes
    Dh = E // NH
    scale = 1.0 / math.sqrt(Dh)
    Ep = _round_up(E, LANE)
    Hp = _round_up(HID, LANE)

    def pad2(w, rows, cols):
        return jnp.zeros((rows, cols), jnp.float32).at[:w.shape[0], :w.shape[1]].set(w)

    stacks = [[] for _ in range(12)]
    for (wq, bq, wk, bk, wv, bv, wo, bo,
         ln1g, ln1b, w1, b1, w2, b2, ln2g, ln2b) in params:
        wqkv = jnp.zeros((Ep, 3 * NH * HL), jnp.float32)
        bqkv = jnp.zeros((1, 3 * NH * HL), jnp.float32)
        wo_p = jnp.zeros((NH * HL, Ep), jnp.float32)
        for h in range(NH):
            cs = slice(h * Dh, (h + 1) * Dh)
            wqkv = (wqkv
                    .at[:E, h * HL:h * HL + Dh].set(wq[:, cs] * scale)
                    .at[:E, (NH + h) * HL:(NH + h) * HL + Dh].set(wk[:, cs])
                    .at[:E, (2 * NH + h) * HL:(2 * NH + h) * HL + Dh].set(wv[:, cs]))
            bqkv = (bqkv
                    .at[:, h * HL:h * HL + Dh].set(bq[:, cs] * scale)
                    .at[:, (NH + h) * HL:(NH + h) * HL + Dh].set(bk[:, cs])
                    .at[:, (2 * NH + h) * HL:(2 * NH + h) * HL + Dh].set(bv[:, cs]))
            wo_p = wo_p.at[h * HL:h * HL + Dh, :E].set(wo[cs, :])
        layer = (wqkv, bqkv, wo_p,
                 pad2(bo, 1, Ep),
                 pad2(ln1g, 1, Ep), pad2(ln1b, 1, Ep),
                 pad2(w1, Ep, Hp), pad2(b1, 1, Hp),
                 pad2(w2, Hp, Ep), pad2(b2, 1, Ep),
                 pad2(ln2g, 1, Ep), pad2(ln2b, 1, Ep))
        for s_, a in zip(stacks, layer):
            s_.append(a)
    return tuple(jnp.stack(s_, axis=0) for s_ in stacks)


def simple_transformer_blocks(x, packed, *, num_heads):
    """Forward pass of SimpleTransformerBlocks (eval mode)."""
    B, S, E = x.shape
    wqkv = packed[0]
    L, Ep = wqkv.shape[0], wqkv.shape[1]
    HL = wqkv.shape[2] // (3 * num_heads)
    Sp = _round_up(S, SUBLANE)

    x_pad = jnp.zeros((B, Sp, Ep), jnp.float32).at[:, :S, :E].set(
        x.astype(jnp.float32))

    kernel = partial(transformer_layer_kernel,
                     num_heads=num_heads, head_lanes=HL,
                     seq_len=S, embed_dim=E)

    x_spec = pl.BlockSpec((1, Sp, Ep), lambda b, l: (b, 0, 0))
    weight_specs = [pl.BlockSpec((1,) + a.shape[1:], lambda b, l: (l, 0, 0))
                    for a in packed]

    out_pad = pl.pallas_call(
        kernel,
        out_shape=jax.ShapeDtypeStruct((B, Sp, Ep), jnp.float32),
        grid_spec=pltpu.PrefetchScalarGridSpec(
            num_scalar_prefetch=0,
            grid=(B, L),                               # batch outer, layers inner
            in_specs=[x_spec] + weight_specs,
            out_specs=pl.BlockSpec((1, Sp, Ep), lambda b, l: (b, 0, 0)),
            scratch_shapes=[pltpu.VMEM((Sp, Ep), jnp.float32)]),   # carried activations
        compiler_params=pltpu.CompilerParams(
            dimension_semantics=("parallel", "arbitrary")),
    )(x_pad, *packed)

    return out_pad[:, :S, :E].astype(x.dtype)


def init_layer_params(key, E, HID):
    ks = jax.random.split(key, 6)
    s = 0.02
    wq_t = jax.random.normal(ks[0], (E, E), jnp.float32) * s
    wk_t = jax.random.normal(ks[1], (E, E), jnp.float32) * s
    wv_t = jax.random.normal(ks[2], (E, E), jnp.float32) * s
    wo_t = jax.random.normal(ks[3], (E, E), jnp.float32) * s
    w1_t = jax.random.normal(ks[4], (E, HID), jnp.float32) * s
    w2_t = jax.random.normal(ks[5], (HID, E), jnp.float32) * s
    bq = jnp.zeros((1, E), jnp.float32)
    bk = jnp.zeros((1, E), jnp.float32)
    bv = jnp.zeros((1, E), jnp.float32)
    bo = jnp.zeros((1, E), jnp.float32)
    b1 = jnp.zeros((1, HID), jnp.float32)
    b2 = jnp.zeros((1, E), jnp.float32)
    ln1_g = jnp.ones((1, E), jnp.float32)
    ln1_b = jnp.zeros((1, E), jnp.float32)
    ln2_g = jnp.ones((1, E), jnp.float32)
    ln2_b = jnp.zeros((1, E), jnp.float32)
    return (wq_t, bq, wk_t, bk, wv_t, bv, wo_t, bo,
            ln1_g, ln1_b, w1_t, b1, w2_t, b2, ln2_g, ln2_b)


def reference_forward(x, params, num_heads):
    """Pure-JAX reference of the same math (post-norm encoder layers)."""
    for (wq_t, bq, wk_t, bk, wv_t, bv, wo_t, bo,
         ln1_g, ln1_b, w1_t, b1, w2_t, b2, ln2_g, ln2_b) in params:
        B, S, E = x.shape
        Dh = E // num_heads
        q = x @ wq_t + bq
        k = x @ wk_t + bk
        v = x @ wv_t + bv
        q = q.reshape(B, S, num_heads, Dh).transpose(0, 2, 1, 3)
        k = k.reshape(B, S, num_heads, Dh).transpose(0, 2, 1, 3)
        v = v.reshape(B, S, num_heads, Dh).transpose(0, 2, 1, 3)
        s = jnp.einsum("bhqd,bhkd->bhqk", q, k) / math.sqrt(Dh)
        p = jax.nn.softmax(s, axis=-1)
        attn = jnp.einsum("bhqk,bhkd->bhqd", p, v).transpose(0, 2, 1, 3).reshape(B, S, E)
        attn = attn @ wo_t + bo
        x1 = _layer_norm(x + attn, ln1_g, ln1_b)
        ff = _gelu_exact(x1 @ w1_t + b1) @ w2_t + b2
        x = _layer_norm(x1 + ff, ln2_g, ln2_b)
    return x


if __name__ == "__main__":
    # Small config consistent with the module: embedding_dim=32, hidden_dim=64,
    # num_layers=2, num_heads=4, dropout=0.1 (identity in eval), activation=gelu.
    B, S, E, HID, NH, L = 2, 8, 32, 64, 4, 2

    key = jax.random.PRNGKey(0)
    kx, *layer_keys = jax.random.split(key, L + 1)
    x = jax.random.normal(kx, (B, S, E), jnp.float32)
    params = [init_layer_params(k, E, HID) for k in layer_keys]

    # One-time weight packing (outside the per-call hot path).
    packed = jax.block_until_ready(pack_params(params, num_heads=NH))

    fwd = jax.jit(partial(simple_transformer_blocks, num_heads=NH))
    out = jax.block_until_ready(fwd(x, packed))

    ref = reference_forward(x, params, NH)
    assert out.shape == (B, S, E)
    # Tolerance accounts for TPU default-precision matmuls in the pure-JAX reference.
    assert jnp.allclose(out, ref, atol=2e-3, rtol=2e-3), "mismatch vs pure-JAX reference"

    print("KERNEL_OK")
</pallas_src>

<mosaic_0001>
module attributes {stable_mosaic.version = 11 : i64} {
  func.func @transformer_layer_kernel(%arg0: i32, %arg1: i32, %arg2: memref<1x8x128xf32, #tpu.memory_space<vmem>>, %arg3: memref<1x128x1536xf32, #tpu.memory_space<vmem>>, %arg4: memref<1x1x1536xf32, #tpu.memory_space<vmem>>, %arg5: memref<1x512x128xf32, #tpu.memory_space<vmem>>, %arg6: memref<1x1x128xf32, #tpu.memory_space<vmem>>, %arg7: memref<1x1x128xf32, #tpu.memory_space<vmem>>, %arg8: memref<1x1x128xf32, #tpu.memory_space<vmem>>, %arg9: memref<1x128x128xf32, #tpu.memory_space<vmem>>, %arg10: memref<1x1x128xf32, #tpu.memory_space<vmem>>, %arg11: memref<1x128x128xf32, #tpu.memory_space<vmem>>, %arg12: memref<1x1x128xf32, #tpu.memory_space<vmem>>, %arg13: memref<1x1x128xf32, #tpu.memory_space<vmem>>, %arg14: memref<1x1x128xf32, #tpu.memory_space<vmem>>, %arg15: memref<1x8x128xf32, #tpu.memory_space<vmem>>, %arg16: memref<8x128xf32, #tpu.memory_space<vmem>>) attributes {dimension_semantics = [#tpu.dimension_semantics<parallel>, #tpu.dimension_semantics<arbitrary>], iteration_bounds = array<i64: 2, 2>, scalar_prefetch = 0 : i64, scratch_operands = 1 : i64, tpu.core_type = #tpu.core_type<tc>, window_params = [{transform_indices = @transform_0, window_bounds = array<i64: 1, 8, 128>}, {transform_indices = @transform_1, window_bounds = array<i64: 1, 128, 1536>}, {transform_indices = @transform_2, window_bounds = array<i64: 1, 1, 1536>}, {transform_indices = @transform_3, window_bounds = array<i64: 1, 512, 128>}, {transform_indices = @transform_4, window_bounds = array<i64: 1, 1, 128>}, {transform_indices = @transform_5, window_bounds = array<i64: 1, 1, 128>}, {transform_indices = @transform_6, window_bounds = array<i64: 1, 1, 128>}, {transform_indices = @transform_7, window_bounds = array<i64: 1, 128, 128>}, {transform_indices = @transform_8, window_bounds = array<i64: 1, 1, 128>}, {transform_indices = @transform_9, window_bounds = array<i64: 1, 128, 128>}, {transform_indices = @transform_10, window_bounds = array<i64: 1, 1, 128>}, {transform_indices = @transform_11, window_bounds = array<i64: 1, 1, 128>}, {transform_indices = @transform_12, window_bounds = array<i64: 1, 1, 128>}, {transform_indices = @transform_13, window_bounds = array<i64: 1, 8, 128>}]} {
    %c0_i32 = arith.constant 0 : i32
    %0 = arith.cmpi eq, %arg1, %c0_i32 : i32
    %1 = arith.extui %0 : i1 to i32
    %c0_i32_0 = arith.constant 0 : i32
    %2 = arith.cmpi ne, %1, %c0_i32_0 : i32
    scf.if %2 {
      %c0_75 = arith.constant 0 : index
      %c0_76 = arith.constant 0 : index
      %c0_77 = arith.constant 0 : index
      %162 = vector.load %arg2[%c0_75, %c0_76, %c0_77] : memref<1x8x128xf32, #tpu.memory_space<vmem>>, vector<1x8x128xf32>
      %163 = vector.shape_cast %162 : vector<1x8x128xf32> to vector<8x128xf32>
      %c0_78 = arith.constant 0 : index
      %c0_79 = arith.constant 0 : index
      %164 = vector.load %arg16[%c0_78, %c0_79] : memref<8x128xf32, #tpu.memory_space<vmem>>, vector<8x128xf32>
      tpu.vector_store %arg16[%c0_78, %c0_79], %163 {strides = array<i32>} : memref<8x128xf32, #tpu.memory_space<vmem>>, vector<8x128xf32>,
    } else {
    }
    %c0 = arith.constant 0 : index
    %c0_1 = arith.constant 0 : index
    %3 = vector.load %arg16[%c0, %c0_1] : memref<8x128xf32, #tpu.memory_space<vmem>>, vector<8x128xf32>
    %4 = tpu.iota {dimensions = array<i32: 1>} : vector<1x128xi32>
    %c32_i32 = arith.constant 32 : i32
    %5 = vector.broadcast %c32_i32 : i32 to vector<1x128xi32>
    %6 = arith.cmpi slt, %4, %5 : vector<1x128xi32>
    %c0_2 = arith.constant 0 : index
    %c0_3 = arith.constant 0 : index
    %c0_4 = arith.constant 0 : index
    %7 = vector.load %arg3[%c0_2, %c0_3, %c0_4] : memref<1x128x1536xf32, #tpu.memory_space<vmem>>, vector<1x128x1536xf32>
    %8 = vector.shape_cast %7 : vector<1x128x1536xf32> to vector<128x1536xf32>
    %cst = arith.constant dense<0.000000e+00> : vector<8x1536xf32>
    %9 = tpu.matmul %3, %8, %cst {dimension_numbers = #tpu.dot_dimension_numbers<[1], [0], [0], [1], [0, 0, 1, 1], [], []>} : vector<8x128xf32>, vector<128x1536xf32>, vector<8x1536xf32> -> vector<8x1536xf32>
    %c0_5 = arith.constant 0 : index
    %c0_6 = arith.constant 0 : index
    %c0_7 = arith.constant 0 : index
    %10 = vector.load %arg4[%c0_5, %c0_6, %c0_7] : memref<1x1x1536xf32, #tpu.memory_space<vmem>>, vector<1x1x1536xf32>
    %11 = vector.shape_cast %10 : vector<1x1x1536xf32> to vector<1x1536xf32>
    %12 = vector.broadcast %11 : vector<1x1536xf32> to vector<8x1536xf32>
    %13 = arith.addf %9, %12 : vector<8x1536xf32>
    %14 = vector.extract_strided_slice %13 {offsets = [0, 0], sizes = [8, 128], strides = [1, 1]} : vector<8x1536xf32> to vector<8x128xf32>
    %15 = vector.extract_strided_slice %13 {offsets = [0, 512], sizes = [8, 128], strides = [1, 1]} : vector<8x1536xf32> to vector<8x128xf32>
    %16 = vector.extract_strided_slice %13 {offsets = [0, 1024], sizes = [8, 128], strides = [1, 1]} : vector<8x1536xf32> to vector<8x128xf32>
    %cst_8 = arith.constant dense<0.000000e+00> : vector<8x8xf32>
    %17 = tpu.matmul %14, %15, %cst_8 {dimension_numbers = #tpu.dot_dimension_numbers<[1], [1], [0], [0], [0, 0, 1, 0], [], []>} : vector<8x128xf32>, vector<8x128xf32>, vector<8x8xf32> -> vector<8x8xf32>
    %cst_9 = arith.constant dense<0xFF800000> : vector<8xf32>
    %18 = vector.multi_reduction <maximumf>, %17, %cst_9 [1] : vector<8x8xf32> to vector<8xf32>
    %19 = vector.shape_cast %18 : vector<8xf32> to vector<8x1xf32>
    %20 = vector.broadcast %19 : vector<8x1xf32> to vector<8x8xf32>
    %21 = arith.subf %17, %20 : vector<8x8xf32>
    %22 = math.exp %21 : vector<8x8xf32>
    %cst_10 = arith.constant dense<0.000000e+00> : vector<8xf32>
    %23 = vector.multi_reduction <add>, %22, %cst_10 [1] : vector<8x8xf32> to vector<8xf32>
    %24 = vector.shape_cast %23 : vector<8xf32> to vector<8x1xf32>
    %25 = vector.broadcast %24 : vector<8x1xf32> to vector<8x8xf32>
    %26 = arith.divf %22, %25 : vector<8x8xf32>
    %cst_11 = arith.constant dense<0.000000e+00> : vector<8x128xf32>
    %27 = tpu.matmul %26, %16, %cst_11 {dimension_numbers = #tpu.dot_dimension_numbers<[1], [0], [0], [1], [0, 0, 1, 1], [], []>} : vector<8x8xf32>, vector<8x128xf32>, vector<8x128xf32> -> vector<8x128xf32>
    %28 = vector.extract_strided_slice %13 {offsets = [0, 128], sizes = [8, 128], strides = [1, 1]} : vector<8x1536xf32> to vector<8x128xf32>
    %29 = vector.extract_strided_slice %13 {offsets = [0, 640], sizes = [8, 128], strides = [1, 1]} : vector<8x1536xf32> to vector<8x128xf32>
    %30 = vector.extract_strided_slice %13 {offsets = [0, 1152], sizes = [8, 128], strides = [1, 1]} : vector<8x1536xf32> to vector<8x128xf32>
    %cst_12 = arith.constant dense<0.000000e+00> : vector<8x8xf32>
    %31 = tpu.matmul %28, %29, %cst_12 {dimension_numbers = #tpu.dot_dimension_numbers<[1], [1], [0], [0], [0, 0, 1, 0], [], []>} : vector<8x128xf32>, vector<8x128xf32>, vector<8x8xf32> -> vector<8x8xf32>
    %cst_13 = arith.constant dense<0xFF800000> : vector<8xf32>
    %32 = vector.multi_reduction <maximumf>, %31, %cst_13 [1] : vector<8x8xf32> to vector<8xf32>
    %33 = vector.shape_cast %32 : vector<8xf32> to vector<8x1xf32>
    %34 = vector.broadcast %33 : vector<8x1xf32> to vector<8x8xf32>
    %35 = arith.subf %31, %34 : vector<8x8xf32>
    %36 = math.exp %35 : vector<8x8xf32>
    %cst_14 = arith.constant dense<0.000000e+00> : vector<8xf32>
    %37 = vector.multi_reduction <add>, %36, %cst_14 [1] : vector<8x8xf32> to vector<8xf32>
    %38 = vector.shape_cast %37 : vector<8xf32> to vector<8x1xf32>
    %39 = vector.broadcast %38 : vector<8x1xf32> to vector<8x8xf32>
    %40 = arith.divf %36, %39 : vector<8x8xf32>
    %cst_15 = arith.constant dense<0.000000e+00> : vector<8x128xf32>
    %41 = tpu.matmul %40, %30, %cst_15 {dimension_numbers = #tpu.dot_dimension_numbers<[1], [0], [0], [1], [0, 0, 1, 1], [], []>} : vector<8x8xf32>, vector<8x128xf32>, vector<8x128xf32> -> vector<8x128xf32>
    %42 = vector.extract_strided_slice %13 {offsets = [0, 256], sizes = [8, 128], strides = [1, 1]} : vector<8x1536xf32> to vector<8x128xf32>
    %43 = vector.extract_strided_slice %13 {offsets = [0, 768], sizes = [8, 128], strides = [1, 1]} : vector<8x1536xf32> to vector<8x128xf32>
    %44 = vector.extract_strided_slice %13 {offsets = [0, 1280], sizes = [8, 128], strides = [1, 1]} : vector<8x1536xf32> to vector<8x128xf32>
    %cst_16 = arith.constant dense<0.000000e+00> : vector<8x8xf32>
    %45 = tpu.matmul %42, %43, %cst_16 {dimension_numbers = #tpu.dot_dimension_numbers<[1], [1], [0], [0], [0, 0, 1, 0], [], []>} : vector<8x128xf32>, vector<8x128xf32>, vector<8x8xf32> -> vector<8x8xf32>
    %cst_17 = arith.constant dense<0xFF800000> : vector<8xf32>
    %46 = vector.multi_reduction <maximumf>, %45, %cst_17 [1] : vector<8x8xf32> to vector<8xf32>
    %47 = vector.shape_cast %46 : vector<8xf32> to vector<8x1xf32>
    %48 = vector.broadcast %47 : vector<8x1xf32> to vector<8x8xf32>
    %49 = arith.subf %45, %48 : vector<8x8xf32>
    %50 = math.exp %49 : vector<8x8xf32>
    %cst_18 = arith.constant dense<0.000000e+00> : vector<8xf32>
    %51 = vector.multi_reduction <add>, %50, %cst_18 [1] : vector<8x8xf32> to vector<8xf32>
    %52 = vector.shape_cast %51 : vector<8xf32> to vector<8x1xf32>
    %53 = vector.broadcast %52 : vector<8x1xf32> to vector<8x8xf32>
    %54 = arith.divf %50, %53 : vector<8x8xf32>
    %cst_19 = arith.constant dense<0.000000e+00> : vector<8x128xf32>
    %55 = tpu.matmul %54, %44, %cst_19 {dimension_numbers = #tpu.dot_dimension_numbers<[1], [0], [0], [1], [0, 0, 1, 1], [], []>} : vector<8x8xf32>, vector<8x128xf32>, vector<8x128xf32> -> vector<8x128xf32>
    %56 = vector.extract_strided_slice %13 {offsets = [0, 384], sizes = [8, 128], strides = [1, 1]} : vector<8x1536xf32> to vector<8x128xf32>
    %57 = vector.extract_strided_slice %13 {offsets = [0, 896], sizes = [8, 128], strides = [1, 1]} : vector<8x1536xf32> to vector<8x128xf32>
    %58 = vector.extract_strided_slice %13 {offsets = [0, 1408], sizes = [8, 128], strides = [1, 1]} : vector<8x1536xf32> to vector<8x128xf32>
    %cst_20 = arith.constant dense<0.000000e+00> : vector<8x8xf32>
    %59 = tpu.matmul %56, %57, %cst_20 {dimension_numbers = #tpu.dot_dimension_numbers<[1], [1], [0], [0], [0, 0, 1, 0], [], []>} : vector<8x128xf32>, vector<8x128xf32>, vector<8x8xf32> -> vector<8x8xf32>
    %cst_21 = arith.constant dense<0xFF800000> : vector<8xf32>
    %60 = vector.multi_reduction <maximumf>, %59, %cst_21 [1] : vector<8x8xf32> to vector<8xf32>
    %61 = vector.shape_cast %60 : vector<8xf32> to vector<8x1xf32>
    %62 = vector.broadcast %61 : vector<8x1xf32> to vector<8x8xf32>
    %63 = arith.subf %59, %62 : vector<8x8xf32>
    %64 = math.exp %63 : vector<8x8xf32>
    %cst_22 = arith.constant dense<0.000000e+00> : vector<8xf32>
    %65 = vector.multi_reduction <add>, %64, %cst_22 [1] : vector<8x8xf32> to vector<8xf32>
    %66 = vector.shape_cast %65 : vector<8xf32> to vector<8x1xf32>
    %67 = vector.broadcast %66 : vector<8x1xf32> to vector<8x8xf32>
    %68 = arith.divf %64, %67 : vector<8x8xf32>
    %cst_23 = arith.constant dense<0.000000e+00> : vector<8x128xf32>
    %69 = tpu.matmul %68, %58, %cst_23 {dimension_numbers = #tpu.dot_dimension_numbers<[1], [0], [0], [1], [0, 0, 1, 1], [], []>} : vector<8x8xf32>, vector<8x128xf32>, vector<8x128xf32> -> vector<8x128xf32>
    %70 = tpu.concatenate %27, %41, %55, %69 in 1 : vector<8x128xf32>, vector<8x128xf32>, vector<8x128xf32>, vector<8x128xf32> -> vector<8x512xf32>
    %c0_24 = arith.constant 0 : index
    %c0_25 = arith.constant 0 : index
    %c0_26 = arith.constant 0 : index
    %71 = vector.load %arg5[%c0_24, %c0_25, %c0_26] : memref<1x512x128xf32, #tpu.memory_space<vmem>>, vector<1x512x128xf32>
    %72 = vector.shape_cast %71 : vector<1x512x128xf32> to vector<512x128xf32>
    %cst_27 = arith.constant dense<0.000000e+00> : vector<8x128xf32>
    %73 = tpu.matmul %70, %72, %cst_27 {dimension_numbers = #tpu.dot_dimension_numbers<[1], [0], [0], [1], [0, 0, 1, 1], [], []>} : vector<8x512xf32>, vector<512x128xf32>, vector<8x128xf32> -> vector<8x128xf32>
    %c0_28 = arith.constant 0 : index
    %c0_29 = arith.constant 0 : index
    %c0_30 = arith.constant 0 : index
    %74 = vector.load %arg6[%c0_28, %c0_29, %c0_30] : memref<1x1x128xf32, #tpu.memory_space<vmem>>, vector<1x1x128xf32>
    %75 = vector.shape_cast %74 : vector<1x1x128xf32> to vector<1x128xf32>
    %76 = vector.broadcast %75 : vector<1x128xf32> to vector<8x128xf32>
    %77 = arith.addf %73, %76 : vector<8x128xf32>
    %78 = arith.addf %3, %77 : vector<8x128xf32>
    %c0_31 = arith.constant 0 : index
    %c0_32 = arith.constant 0 : index
    %c0_33 = arith.constant 0 : index
    %79 = vector.load %arg7[%c0_31, %c0_32, %c0_33] : memref<1x1x128xf32, #tpu.memory_space<vmem>>, vector<1x1x128xf32>
    %80 = vector.shape_cast %79 : vector<1x1x128xf32> to vector<1x128xf32>
    %c0_34 = arith.constant 0 : index
    %c0_35 = arith.constant 0 : index
    %c0_36 = arith.constant 0 : index
    %81 = vector.load %arg8[%c0_34, %c0_35, %c0_36] : memref<1x1x128xf32, #tpu.memory_space<vmem>>, vector<1x1x128xf32>
    %82 = vector.shape_cast %81 : vector<1x1x128xf32> to vector<1x128xf32>
    %cst_37 = arith.constant dense<0.000000e+00> : vector<8xf32>
    %83 = vector.multi_reduction <add>, %78, %cst_37 [1] : vector<8x128xf32> to vector<8xf32>
    %84 = vector.shape_cast %83 : vector<8xf32> to vector<8x1xf32>
    %cst_38 = arith.constant 3.125000e-02 : f32
    %85 = vector.broadcast %cst_38 : f32 to vector<8x1xf32>
    %86 = arith.mulf %84, %85 : vector<8x1xf32>
    %87 = vector.broadcast %86 : vector<8x1xf32> to vector<8x128xf32>
    %88 = arith.subf %78, %87 : vector<8x128xf32>
    %cst_39 = arith.constant 0.000000e+00 : f32
    %89 = vector.shape_cast %6 : vector<1x128xi1> to vector<1x128xi1>
    %90 = vector.broadcast %89 : vector<1x128xi1> to vector<8x128xi1>
    %91 = vector.broadcast %cst_39 : f32 to vector<8x128xf32>
    %92 = arith.select %90, %88, %91 : vector<8x128xi1>, vector<8x128xf32>
    %93 = arith.mulf %92, %92 : vector<8x128xf32>
    %cst_40 = arith.constant dense<0.000000e+00> : vector<8xf32>
    %94 = vector.multi_reduction <add>, %93, %cst_40 [1] : vector<8x128xf32> to vector<8xf32>
    %95 = vector.shape_cast %94 : vector<8xf32> to vector<8x1xf32>
    %cst_41 = arith.constant 3.125000e-02 : f32
    %96 = vector.broadcast %cst_41 : f32 to vector<8x1xf32>
    %97 = arith.mulf %95, %96 : vector<8x1xf32>
    %cst_42 = arith.constant 9.99999974E-6 : f32
    %98 = vector.broadcast %cst_42 : f32 to vector<8x1xf32>
    %99 = arith.addf %97, %98 : vector<8x1xf32>
    %100 = math.rsqrt %99 : vector<8x1xf32>
    %101 = vector.broadcast %100 : vector<8x1xf32> to vector<8x128xf32>
    %102 = arith.mulf %92, %101 : vector<8x128xf32>
    %103 = vector.broadcast %80 : vector<1x128xf32> to vector<8x128xf32>
    %104 = arith.mulf %102, %103 : vector<8x128xf32>
    %105 = vector.broadcast %82 : vector<1x128xf32> to vector<8x128xf32>
    %106 = arith.addf %104, %105 : vector<8x128xf32>
    %c0_43 = arith.constant 0 : index
    %c0_44 = arith.constant 0 : index
    %c0_45 = arith.constant 0 : index
    %107 = vector.load %arg9[%c0_43, %c0_44, %c0_45] : memref<1x128x128xf32, #tpu.memory_space<vmem>>, vector<1x128x128xf32>
    %108 = vector.shape_cast %107 : vector<1x128x128xf32> to vector<128x128xf32>
    %cst_46 = arith.constant dense<0.000000e+00> : vector<8x128xf32>
    %109 = tpu.matmul %106, %108, %cst_46 {dimension_numbers = #tpu.dot_dimension_numbers<[1], [0], [0], [1], [0, 0, 1, 1], [], []>} : vector<8x128xf32>, vector<128x128xf32>, vector<8x128xf32> -> vector<8x128xf32>
    %c0_47 = arith.constant 0 : index
    %c0_48 = arith.constant 0 : index
    %c0_49 = arith.constant 0 : index
    %110 = vector.load %arg10[%c0_47, %c0_48, %c0_49] : memref<1x1x128xf32, #tpu.memory_space<vmem>>, vector<1x1x128xf32>
    %111 = vector.shape_cast %110 : vector<1x1x128xf32> to vector<1x128xf32>
    %112 = vector.broadcast %111 : vector<1x128xf32> to vector<8x128xf32>
    %113 = arith.addf %109, %112 : vector<8x128xf32>
    %cst_50 = arith.constant 5.000000e-01 : f32
    %114 = vector.broadcast %cst_50 : f32 to vector<8x128xf32>
    %115 = arith.mulf %114, %113 : vector<8x128xf32>
    %cst_51 = arith.constant 0.707106769 : f32
    %116 = vector.broadcast %cst_51 : f32 to vector<8x128xf32>
    %117 = arith.mulf %113, %116 : vector<8x128xf32>
    %118 = math.erf %117 : vector<8x128xf32>
    %cst_52 = arith.constant 1.000000e+00 : f32
    %119 = vector.broadcast %cst_52 : f32 to vector<8x128xf32>
    %120 = arith.addf %119, %118 : vector<8x128xf32>
    %121 = arith.mulf %115, %120 : vector<8x128xf32>
    %c0_53 = arith.constant 0 : index
    %c0_54 = arith.constant 0 : index
    %c0_55 = arith.constant 0 : index
    %122 = vector.load %arg11[%c0_53, %c0_54, %c0_55] : memref<1x128x128xf32, #tpu.memory_space<vmem>>, vector<1x128x128xf32>
    %123 = vector.shape_cast %122 : vector<1x128x128xf32> to vector<128x128xf32>
    %cst_56 = arith.constant dense<0.000000e+00> : vector<8x128xf32>
    %124 = tpu.matmul %121, %123, %cst_56 {dimension_numbers = #tpu.dot_dimension_numbers<[1], [0], [0], [1], [0, 0, 1, 1], [], []>} : vector<8x128xf32>, vector<128x128xf32>, vector<8x128xf32> -> vector<8x128xf32>
    %c0_57 = arith.constant 0 : index
    %c0_58 = arith.constant 0 : index
    %c0_59 = arith.constant 0 : index
    %125 = vector.load %arg12[%c0_57, %c0_58, %c0_59] : memref<1x1x128xf32, #tpu.memory_space<vmem>>, vector<1x1x128xf32>
    %126 = vector.shape_cast %125 : vector<1x1x128xf32> to vector<1x128xf32>
    %127 = vector.broadcast %126 : vector<1x128xf32> to vector<8x128xf32>
    %128 = arith.addf %124, %127 : vector<8x128xf32>
    %129 = arith.addf %106, %128 : vector<8x128xf32>
    %c0_60 = arith.constant 0 : index
    %c0_61 = arith.constant 0 : index
    %c0_62 = arith.constant 0 : index
    %130 = vector.load %arg13[%c0_60, %c0_61, %c0_62] : memref<1x1x128xf32, #tpu.memory_space<vmem>>, vector<1x1x128xf32>
    %131 = vector.shape_cast %130 : vector<1x1x128xf32> to vector<1x128xf32>
    %c0_63 = arith.constant 0 : index
    %c0_64 = arith.constant 0 : index
    %c0_65 = arith.constant 0 : index
    %132 = vector.load %arg14[%c0_63, %c0_64, %c0_65] : memref<1x1x128xf32, #tpu.memory_space<vmem>>, vector<1x1x128xf32>
    %133 = vector.shape_cast %132 : vector<1x1x128xf32> to vector<1x128xf32>
    %cst_66 = arith.constant dense<0.000000e+00> : vector<8xf32>
    %134 = vector.multi_reduction <add>, %129, %cst_66 [1] : vector<8x128xf32> to vector<8xf32>
    %135 = vector.shape_cast %134 : vector<8xf32> to vector<8x1xf32>
    %cst_67 = arith.constant 3.125000e-02 : f32
    %136 = vector.broadcast %cst_67 : f32 to vector<8x1xf32>
    %137 = arith.mulf %135, %136 : vector<8x1xf32>
    %138 = vector.broadcast %137 : vector<8x1xf32> to vector<8x128xf32>
    %139 = arith.subf %129, %138 : vector<8x128xf32>
    %cst_68 = arith.constant 0.000000e+00 : f32
    %140 = vector.shape_cast %6 : vector<1x128xi1> to vector<1x128xi1>
    %141 = vector.broadcast %140 : vector<1x128xi1> to vector<8x128xi1>
    %142 = vector.broadcast %cst_68 : f32 to vector<8x128xf32>
    %143 = arith.select %141, %139, %142 : vector<8x128xi1>, vector<8x128xf32>
    %144 = arith.mulf %143, %143 : vector<8x128xf32>
    %cst_69 = arith.constant dense<0.000000e+00> : vector<8xf32>
    %145 = vector.multi_reduction <add>, %144, %cst_69 [1] : vector<8x128xf32> to vector<8xf32>
    %146 = vector.shape_cast %145 : vector<8xf32> to vector<8x1xf32>
    %cst_70 = arith.constant 3.125000e-02 : f32
    %147 = vector.broadcast %cst_70 : f32 to vector<8x1xf32>
    %148 = arith.mulf %146, %147 : vector<8x1xf32>
    %cst_71 = arith.constant 9.99999974E-6 : f32
    %149 = vector.broadcast %cst_71 : f32 to vector<8x1xf32>
    %150 = arith.addf %148, %149 : vector<8x1xf32>
    %151 = math.rsqrt %150 : vector<8x1xf32>
    %152 = vector.broadcast %151 : vector<8x1xf32> to vector<8x128xf32>
    %153 = arith.mulf %143, %152 : vector<8x128xf32>
    %154 = vector.broadcast %131 : vector<1x128xf32> to vector<8x128xf32>
    %155 = arith.mulf %153, %154 : vector<8x128xf32>
    %156 = vector.broadcast %133 : vector<1x128xf32> to vector<8x128xf32>
    %157 = arith.addf %155, %156 : vector<8x128xf32>
    %c0_72 = arith.constant 0 : index
    %c0_73 = arith.constant 0 : index
    %158 = vector.load %arg16[%c0_72, %c0_73] : memref<8x128xf32, #tpu.memory_space<vmem>>, vector<8x128xf32>
    tpu.vector_store %arg16[%c0_72, %c0_73], %157 {strides = array<i32>} : memref<8x128xf32, #tpu.memory_space<vmem>>, vector<8x128xf32>,
    %c1_i32 = arith.constant 1 : i32
    %159 = arith.cmpi eq, %arg1, %c1_i32 : i32
    %160 = arith.extui %159 : i1 to i32
    %c0_i32_74 = arith.constant 0 : i32
    %161 = arith.cmpi ne, %160, %c0_i32_74 : i32
    scf.if %161 {
      %c0_75 = arith.constant 0 : index
      %c0_76 = arith.constant 0 : index
      %c0_77 = arith.constant 0 : index
      %162 = vector.load %arg15[%c0_75, %c0_76, %c0_77] : memref<1x8x128xf32, #tpu.memory_space<vmem>>, vector<1x8x128xf32>
      %163 = vector.shape_cast %162 : vector<1x8x128xf32> to vector<8x128xf32>
      %164 = vector.shape_cast %157 : vector<8x128xf32> to vector<1x8x128xf32>
      tpu.vector_store %arg15[%c0_75, %c0_76, %c0_77], %164 {strides = array<i32>} : memref<1x8x128xf32, #tpu.memory_space<vmem>>, vector<1x8x128xf32>,
    } else {
    }
    return
  }
  func.func @transform_0(%arg0: i32, %arg1: i32) -> (i32, i32, i32) {
    %c0_i32 = arith.constant 0 : i32
    %c0_i32_0 = arith.constant 0 : i32
    %c0_i32_1 = arith.constant 0 : i32
    return %arg0, %c0_i32, %c0_i32_0 : i32, i32, i32
  }
  func.func @transform_1(%arg0: i32, %arg1: i32) -> (i32, i32, i32) {
    %c0_i32 = arith.constant 0 : i32
    %c0_i32_0 = arith.constant 0 : i32
    %c0_i32_1 = arith.constant 0 : i32
    return %arg1, %c0_i32, %c0_i32_0 : i32, i32, i32
  }
  func.func @transform_2(%arg0: i32, %arg1: i32) -> (i32, i32, i32) {
    %c0_i32 = arith.constant 0 : i32
    %c0_i32_0 = arith.constant 0 : i32
    %c0_i32_1 = arith.constant 0 : i32
    return %arg1, %c0_i32, %c0_i32_0 : i32, i32, i32
  }
  func.func @transform_3(%arg0: i32, %arg1: i32) -> (i32, i32, i32) {
    %c0_i32 = arith.constant 0 : i32
    %c0_i32_0 = arith.constant 0 : i32
    %c0_i32_1 = arith.constant 0 : i32
    return %arg1, %c0_i32, %c0_i32_0 : i32, i32, i32
  }
  func.func @transform_4(%arg0: i32, %arg1: i32) -> (i32, i32, i32) {
    %c0_i32 = arith.constant 0 : i32
    %c0_i32_0 = arith.constant 0 : i32
    %c0_i32_1 = arith.constant 0 : i32
    return %arg1, %c0_i32, %c0_i32_0 : i32, i32, i32
  }
  func.func @transform_5(%arg0: i32, %arg1: i32) -> (i32, i32, i32) {
    %c0_i32 = arith.constant 0 : i32
    %c0_i32_0 = arith.constant 0 : i32
    %c0_i32_1 = arith.constant 0 : i32
    return %arg1, %c0_i32, %c0_i32_0 : i32, i32, i32
  }
  func.func @transform_6(%arg0: i32, %arg1: i32) -> (i32, i32, i32) {
    %c0_i32 = arith.constant 0 : i32
    %c0_i32_0 = arith.constant 0 : i32
    %c0_i32_1 = arith.constant 0 : i32
    return %arg1, %c0_i32, %c0_i32_0 : i32, i32, i32
  }
  func.func @transform_7(%arg0: i32, %arg1: i32) -> (i32, i32, i32) {
    %c0_i32 = arith.constant 0 : i32
    %c0_i32_0 = arith.constant 0 : i32
    %c0_i32_1 = arith.constant 0 : i32
    return %arg1, %c0_i32, %c0_i32_0 : i32, i32, i32
  }
  func.func @transform_8(%arg0: i32, %arg1: i32) -> (i32, i32, i32) {
    %c0_i32 = arith.constant 0 : i32
    %c0_i32_0 = arith.constant 0 : i32
    %c0_i32_1 = arith.constant 0 : i32
    return %arg1, %c0_i32, %c0_i32_0 : i32, i32, i32
  }
  func.func @transform_9(%arg0: i32, %arg1: i32) -> (i32, i32, i32) {
    %c0_i32 = arith.constant 0 : i32
    %c0_i32_0 = arith.constant 0 : i32
    %c0_i32_1 = arith.constant 0 : i32
    return %arg1, %c0_i32, %c0_i32_0 : i32, i32, i32
  }
  func.func @transform_10(%arg0: i32, %arg1: i32) -> (i32, i32, i32) {
    %c0_i32 = arith.constant 0 : i32
    %c0_i32_0 = arith.constant 0 : i32
    %c0_i32_1 = arith.constant 0 : i32
    return %arg1, %c0_i32, %c0_i32_0 : i32, i32, i32
  }
  func.func @transform_11(%arg0: i32, %arg1: i32) -> (i32, i32, i32) {
    %c0_i32 = arith.constant 0 : i32
    %c0_i32_0 = arith.constant 0 : i32
    %c0_i32_1 = arith.constant 0 : i32
    return %arg1, %c0_i32, %c0_i32_0 : i32, i32, i32
  }
  func.func @transform_12(%arg0: i32, %arg1: i32) -> (i32, i32, i32) {
    %c0_i32 = arith.constant 0 : i32
    %c0_i32_0 = arith.constant 0 : i32
    %c0_i32_1 = arith.constant 0 : i32
    return %arg1, %c0_i32, %c0_i32_0 : i32, i32, i32
  }
  func.func @transform_13(%arg0: i32, %arg1: i32) -> (i32, i32, i32) {
    %c0_i32 = arith.constant 0 : i32
    %c0_i32_0 = arith.constant 0 : i32
    %c0_i32_1 = arith.constant 0 : i32
    return %arg0, %c0_i32, %c0_i32_0 : i32, i32, i32
  }
}

</mosaic_0001>

<llo_original>
// kernel: simple_transformer_blocks.1
$region0: #{simple_transformer_blocks.1}
  #allocation0 [shape = 'u32[]', space=smem, size = 0x4, offset = 0x4, fixed_abs, tag = 'smem constant byte address 0x4 - core index']
  #allocation1 [shape = 'u32[144,128]{1,0:T(1,128)}', space=vmem, size = 0x12000, scoped, tag = 'internal scratch']
  #allocation2 [shape = 'f32[8,128]{1,0:T(8,128)}', space=vmem, size = 0x1000, scoped, tag = 'scratch operand']
  %s0 = inlined_call_operand.vmem [shape: f32[2,8,128], index: 0, kind: input, shape index: {}]
  %s1 = inlined_call_operand.hbm [shape: f32[2,128,1536], index: 1, kind: input, shape index: {}]
  %s2 = inlined_call_operand.hbm [shape: f32[2,1,1536], index: 2, kind: input, shape index: {}]
  %s3 = inlined_call_operand.hbm [shape: f32[2,512,128], index: 3, kind: input, shape index: {}]
  %s4 = inlined_call_operand.hbm [shape: f32[2,1,128], index: 4, kind: input, shape index: {}]
  %s5 = inlined_call_operand.hbm [shape: f32[2,1,128], index: 5, kind: input, shape index: {}]
  %s6 = inlined_call_operand.hbm [shape: f32[2,1,128], index: 6, kind: input, shape index: {}]
  %s7 = inlined_call_operand.hbm [shape: f32[2,128,128], index: 7, kind: input, shape index: {}]
  %s8 = inlined_call_operand.hbm [shape: f32[2,1,128], index: 8, kind: input, shape index: {}]
  %s9 = inlined_call_operand.hbm [shape: f32[2,128,128], index: 9, kind: input, shape index: {}]
  %s10 = inlined_call_operand.hbm [shape: f32[2,1,128], index: 10, kind: input, shape index: {}]
  %s11 = inlined_call_operand.hbm [shape: f32[2,1,128], index: 11, kind: input, shape index: {}]
  %s12 = inlined_call_operand.hbm [shape: f32[2,1,128], index: 12, kind: input, shape index: {}]
  %s13 = inlined_call_operand.hbm [shape: f32[2,8,128], index: 13, kind: output, shape index: {}]
  %s14 = sld [smem:[#allocation0]]
  $region141: #{simple_transformer_blocks.1} parent=0
    _
  %s16 = ssub.s32 1, %s14
  %s17 = scalar_select 0, %s16, %s14
  $region1: #{simple_transformer_blocks.1} parent=0
    #allocation3 [shape = 'u8[1572864]{0}', space=vmem, size = 0x180000, scoped, tag = 'input window, operand 1']
    #allocation4 [shape = 's32[2]{0}', space=sflag, size = 0x8, scoped, tag = 'scoped memory for simple_transformer_blocks.1']
    #allocation5 [shape = 's32[2]{0}', space=sflag, size = 0x8, scoped, tag = 'scoped memory for simple_transformer_blocks.1']
    #allocation6 [shape = 'u8[12288]{0}', space=vmem, size = 0x3000, scoped, tag = 'input window, operand 2']
    #allocation7 [shape = 's32[2]{0}', space=sflag, size = 0x8, scoped, tag = 'scoped memory for simple_transformer_blocks.1']
    #allocation8 [shape = 'u8[524288]{0}', space=vmem, size = 0x80000, scoped, tag = 'input window, operand 3']
    #allocation9 [shape = 'u8[1024]{0}', space=vmem, size = 0x400, scoped, tag = 'input window, operand 4']
    #allocation10 [shape = 's32[2]{0}', space=sflag, size = 0x8, scoped, tag = 'scoped memory for simple_transformer_blocks.1']
    #allocation11 [shape = 'u8[1024]{0}', space=vmem, size = 0x400, scoped, tag = 'input window, operand 5']
    #allocation12 [shape = 'u8[1024]{0}', space=vmem, size = 0x400, scoped, tag = 'input window, operand 6']
    #allocation13 [shape = 's32[2]{0}', space=sflag, size = 0x8, scoped, tag = 'scoped memory for simple_transformer_blocks.1']
    #allocation14 [shape = 'u8[131072]{0}', space=vmem, size = 0x20000, scoped, tag = 'input window, operand 7']
    #allocation15 [shape = 'u8[1024]{0}', space=vmem, size = 0x400, scoped, tag = 'input window, operand 8']
    #allocation16 [shape = 's32[2]{0}', space=sflag, size = 0x8, scoped, tag = 'scoped memory for simple_transformer_blocks.1']
    #allocation17 [shape = 'u8[131072]{0}', space=vmem, size = 0x20000, scoped, tag = 'input window, operand 9']
    #allocation18 [shape = 'u8[1024]{0}', space=vmem, size = 0x400, scoped, tag = 'input window, operand 10']
    #allocation19 [shape = 's32[2]{0}', space=sflag, size = 0x8, scoped, tag = 'scoped memory for simple_transformer_blocks.1']
    #allocation20 [shape = 'u8[1024]{0}', space=vmem, size = 0x400, scoped, tag = 'input window, operand 11']
    #allocation21 [shape = 'u8[1024]{0}', space=vmem, size = 0x400, scoped, tag = 'input window, operand 12']
    #allocation22 [shape = 's32[2]{0}', space=sflag, size = 0x8, scoped, tag = 'scoped memory for simple_transformer_blocks.1']
    #allocation23 [shape = 'u8[8192]{0}', space=vmem, size = 0x2000, scoped, tag = 'output window, operand 0']
    %18 = vsyncpa [#allocation4], 0
    %s19 = scalar_lea.sflag [#allocation4], 1
    %20 = vsyncpa %s19, 0
    %21 = vsyncpa [#allocation7], 0
    %s22 = scalar_lea.sflag [#allocation7], 1
    %23 = vsyncpa %s22, 0
    %24 = vsyncpa [#allocation10], 0
    %s25 = scalar_lea.sflag [#allocation10], 1
    %26 = vsyncpa %s25, 0
    %27 = vsyncpa [#allocation13], 0
    %s28 = scalar_lea.sflag [#allocation13], 1
    %29 = vsyncpa %s28, 0
    %30 = vsyncpa [#allocation16], 0
    %s31 = scalar_lea.sflag [#allocation16], 1
    %32 = vsyncpa %s31, 0
    %33 = vsyncpa [#allocation19], 0
    %s34 = scalar_lea.sflag [#allocation19], 1
    %35 = vsyncpa %s34, 0
    %36 = vsyncpa [#allocation22], 0
    %s37 = scalar_lea.sflag [#allocation22], 1
    %38 = vsyncpa %s37, 0
    %39 = vsyncpa [#allocation5], 0
    %s40 = scalar_lea.sflag [#allocation5], 1
    %41 = vsyncpa %s40, 0
    loop: start=0, step=1, limit=6
    $region2: #{simple_transformer_blocks.1} parent=1 // loop_pre_header
      _
    $region3: #{simple_transformer_blocks.1} parent=1 // loop_header
      %s43 = sphi 0, %s47
      %p44 = scmp.ge.s32.totalorder %s43, 6
      %s50 = sphi 0, %s62
      %s51 = sphi 0, %s58
      %s52 = sphi 0, %s50
      %s53 = sphi 0, %s51
      %s54 = sphi 0, %s52
      %s55 = sphi 0, %s53
      %s65 = sphi 0, %s67
      %s68 = sphi 0, %s65
      %s69 = sphi 0, %s68
      %s85 = sphi 0, %s69
      %s91 = sphi 0, %s93
      %s94 = sphi 0, %s91
      %s95 = sphi 0, %s94
      %s111 = sphi 0, %s95
      %s117 = sphi 0, %s119
      %s120 = sphi 0, %s117
      %s121 = sphi 0, %s120
      %s137 = sphi 0, %s121
      %s143 = sphi 0, %s145
      %s146 = sphi 0, %s143
      %s147 = sphi 0, %s146
      %s163 = sphi 0, %s147
      %s169 = sphi 0, %s171
      %s172 = sphi 0, %s169
      %s173 = sphi 0, %s172
      %s189 = sphi 0, %s173
      %s195 = sphi 0, %s197
      %s198 = sphi 0, %s195
      %s199 = sphi 0, %s198
      %s215 = sphi 0, %s199
      %s221 = sphi 0, %s223
      %s224 = sphi 0, %s221
      %s225 = sphi 0, %s224
      %s241 = sphi 0, %s225
      %s247 = sphi 0, %s249
      %s250 = sphi 0, %s247
      %s251 = sphi 0, %s250
      %s267 = sphi 0, %s251
      %s273 = sphi 0, %s275
      %s276 = sphi 0, %s273
      %s277 = sphi 0, %s276
      %s293 = sphi 0, %s277
      %s299 = sphi 0, %s301
      %s302 = sphi 0, %s299
      %s303 = sphi 0, %s302
      %s319 = sphi 0, %s303
      %s325 = sphi 0, %s327
      %s328 = sphi 0, %s325
      %s329 = sphi 0, %s328
      %s345 = sphi 0, %s329
      %s351 = sphi 0, %s353
      %s354 = sphi 0, %s351
      %s355 = sphi 0, %s354
      %s371 = sphi 0, %s355
      %s377 = sphi 0, %s379
      %s380 = sphi 0, %s377
      %s381 = sphi 0, %s380
      %s397 = sphi 0, %s381
      %s403 = sphi 0, %s405
      %s406 = sphi 0, %s403
      %s407 = sphi 0, %s406
      %s423 = sphi 0, %s407
    $region4: #{simple_transformer_blocks.1} parent=1 // loop_header_branch
      %46 = sbr.rel (%p44) target = $region8
    $region5: #{simple_transformer_blocks.1} parent=1 // loop_body
      %s48 = ssub.s32 %s43, 1
      %s49 = ssub.s32 %s43, 2
      %s56 = sadd.s32 1, %s51
      %p57 = scmp.ge.s32.totalorder %s56, 2
      %s58 = scalar_select %p57, 0, %s56
      %s59 = sadd.s32 1, %s50
      %s60 = scalar_select %p57, %s59, %s50
      %p61 = scmp.ge.s32.totalorder %s60, 2
      %s62 = scalar_select %p61, 0, %s60
      %s63 = ssub.s32 %s50, %s62
      %p64 = scmp.eq.s32.totalorder %s63, 0
      %s66 = sadd.s32 %s65, 1
      %s67 = scalar_select %p64, %s65, %s66
      %p70 = pneg %p64
      %p71 = scmp.eq.s32.totalorder %s43, 3
      %p72 = por %p70, %p71
      %p73 = scmp.ne.s32.totalorder %s65, %s68
      %p74 = scmp.eq.s32.totalorder %s43, 0
      %p75 = por %p73, %p74
      %p76 = scmp.ne.s32.totalorder %s65, %s68
      %p77 = scmp.eq.s32.totalorder %s48, 3
      %p78 = por %p76, %p77
      %p79 = scmp.ne.s32.totalorder %s68, %s69
      %p80 = scmp.eq.s32.totalorder %s48, 0
      %p81 = por %p79, %p80
      %p82 = scmp.ne.s32.totalorder %s68, %s69
      %p83 = scmp.eq.s32.totalorder %s49, 3
      %p84 = por %p82, %p83
      %p86 = scmp.ne.s32.totalorder %s69, %s85
      %p87 = scmp.eq.s32.totalorder %s49, 0
      %p88 = por %p86, %p87
      %s89 = ssub.s32 %s51, %s58
      %p90 = scmp.eq.s32.totalorder %s89, 0
      %s92 = sadd.s32 %s91, 1
      %s93 = scalar_select %p90, %s91, %s92
      %p96 = pneg %p90
      %p97 = scmp.eq.s32.totalorder %s43, 3
      %p98 = por %p96, %p97
      %p99 = scmp.ne.s32.totalorder %s91, %s94
      %p100 = scmp.eq.s32.totalorder %s43, 0
      %p101 = por %p99, %p100
      %p102 = scmp.ne.s32.totalorder %s91, %s94
      %p103 = scmp.eq.s32.totalorder %s48, 3
      %p104 = por %p102, %p103
      %p105 = scmp.ne.s32.totalorder %s94, %s95
      %p106 = scmp.eq.s32.totalorder %s48, 0
      %p107 = por %p105, %p106
      %p108 = scmp.ne.s32.totalorder %s94, %s95
      %p109 = scmp.eq.s32.totalorder %s49, 3
      %p110 = por %p108, %p109
      %p112 = scmp.ne.s32.totalorder %s95, %s111
      %p113 = scmp.eq.s32.totalorder %s49, 0
      %p114 = por %p112, %p113
      %s115 = ssub.s32 %s51, %s58
      %p116 = scmp.eq.s32.totalorder %s115, 0
      %s118 = sadd.s32 %s117, 1
      %s119 = scalar_select %p116, %s117, %s118
      %p122 = pneg %p116
      %p123 = scmp.eq.s32.totalorder %s43, 3
      %p124 = por %p122, %p123
      %p125 = scmp.ne.s32.totalorder %s117, %s120
      %p126 = scmp.eq.s32.totalorder %s43, 0
      %p127 = por %p125, %p126
      %p128 = scmp.ne.s32.totalorder %s117, %s120
      %p129 = scmp.eq.s32.totalorder %s48, 3
      %p130 = por %p128, %p129
      %p131 = scmp.ne.s32.totalorder %s120, %s121
      %p132 = scmp.eq.s32.totalorder %s48, 0
      %p133 = por %p131, %p132
      %p134 = scmp.ne.s32.totalorder %s120, %s121
      %p135 = scmp.eq.s32.totalorder %s49, 3
      %p136 = por %p134, %p135
      %p138 = scmp.ne.s32.totalorder %s121, %s137
      %p139 = scmp.eq.s32.totalorder %s49, 0
      %p140 = por %p138, %p139
      %s141 = ssub.s32 %s51, %s58
      %p142 = scmp.eq.s32.totalorder %s141, 0
      %s144 = sadd.s32 %s143, 1
      %s145 = scalar_select %p142, %s143, %s144
      %p148 = pneg %p142
      %p149 = scmp.eq.s32.totalorder %s43, 3
      %p150 = por %p148, %p149
      %p151 = scmp.ne.s32.totalorder %s143, %s146
      %p152 = scmp.eq.s32.totalorder %s43, 0
      %p153 = por %p151, %p152
      %p154 = scmp.ne.s32.totalorder %s143, %s146
      %p155 = scmp.eq.s32.totalorder %s48, 3
      %p156 = por %p154, %p155
      %p157 = scmp.ne.s32.totalorder %s146, %s147
      %p158 = scmp.eq.s32.totalorder %s48, 0
      %p159 = por %p157, %p158
      %p160 = scmp.ne.s32.totalorder %s146, %s147
      %p161 = scmp.eq.s32.totalorder %s49, 3
      %p162 = por %p160, %p161
      %p164 = scmp.ne.s32.totalorder %s147, %s163
      %p165 = scmp.eq.s32.totalorder %s49, 0
      %p166 = por %p164, %p165
      %s167 = ssub.s32 %s51, %s58
      %p168 = scmp.eq.s32.totalorder %s167, 0
      %s170 = sadd.s32 %s169, 1
      %s171 = scalar_select %p168, %s169, %s170
      %p174 = pneg %p168
      %p175 = scmp.eq.s32.totalorder %s43, 3
      %p176 = por %p174, %p175
      %p177 = scmp.ne.s32.totalorder %s169, %s172
      %p178 = scmp.eq.s32.totalorder %s43, 0
      %p179 = por %p177, %p178
      %p180 = scmp.ne.s32.totalorder %s169, %s172
      %p181 = scmp.eq.s32.totalorder %s48, 3
      %p182 = por %p180, %p181
      %p183 = scmp.ne.s32.totalorder %s172, %s173
      %p184 = scmp.eq.s32.totalorder %s48, 0
      %p185 = por %p183, %p184
      %p186 = scmp.ne.s32.totalorder %s172, %s173
      %p187 = scmp.eq.s32.totalorder %s49, 3
      %p188 = por %p186, %p187
      %p190 = scmp.ne.s32.totalorder %s173, %s189
      %p191 = scmp.eq.s32.totalorder %s49, 0
      %p192 = por %p190, %p191
      %s193 = ssub.s32 %s51, %s58
      %p194 = scmp.eq.s32.totalorder %s193, 0
      %s196 = sadd.s32 %s195, 1
      %s197 = scalar_select %p194, %s195, %s196
      %p200 = pneg %p194
      %p201 = scmp.eq.s32.totalorder %s43, 3
      %p202 = por %p200, %p201
      %p203 = scmp.ne.s32.totalorder %s195, %s198
      %p204 = scmp.eq.s32.totalorder %s43, 0
      %p205 = por %p203, %p204
      %p206 = scmp.ne.s32.totalorder %s195, %s198
      %p207 = scmp.eq.s32.totalorder %s48, 3
      %p208 = por %p206, %p207
      %p209 = scmp.ne.s32.totalorder %s198, %s199
      %p210 = scmp.eq.s32.totalorder %s48, 0
      %p211 = por %p209, %p210
      %p212 = scmp.ne.s32.totalorder %s198, %s199
      %p213 = scmp.eq.s32.totalorder %s49, 3
      %p214 = por %p212, %p213
      %p216 = scmp.ne.s32.totalorder %s199, %s215
      %p217 = scmp.eq.s32.totalorder %s49, 0
      %p218 = por %p216, %p217
      %s219 = ssub.s32 %s51, %s58
      %p220 = scmp.eq.s32.totalorder %s219, 0
      %s222 = sadd.s32 %s221, 1
      %s223 = scalar_select %p220, %s221, %s222
      %p226 = pneg %p220
      %p227 = scmp.eq.s32.totalorder %s43, 3
      %p228 = por %p226, %p227
      %p229 = scmp.ne.s32.totalorder %s221, %s224
      %p230 = scmp.eq.s32.totalorder %s43, 0
      %p231 = por %p229, %p230
      %p232 = scmp.ne.s32.totalorder %s221, %s224
      %p233 = scmp.eq.s32.totalorder %s48, 3
      %p234 = por %p232, %p233
      %p235 = scmp.ne.s32.totalorder %s224, %s225
      %p236 = scmp.eq.s32.totalorder %s48, 0
      %p237 = por %p235, %p236
      %p238 = scmp.ne.s32.totalorder %s224, %s225
      %p239 = scmp.eq.s32.totalorder %s49, 3
      %p240 = por %p238, %p239
      %p242 = scmp.ne.s32.totalorder %s225, %s241
      %p243 = scmp.eq.s32.totalorder %s49, 0
      %p244 = por %p242, %p243
      %s245 = ssub.s32 %s51, %s58
      %p246 = scmp.eq.s32.totalorder %s245, 0
      %s248 = sadd.s32 %s247, 1
      %s249 = scalar_select %p246, %s247, %s248
      %p252 = pneg %p246
      %p253 = scmp.eq.s32.totalorder %s43, 3
      %p254 = por %p252, %p253
      %p255 = scmp.ne.s32.totalorder %s247, %s250
      %p256 = scmp.eq.s32.totalorder %s43, 0
      %p257 = por %p255, %p256
      %p258 = scmp.ne.s32.totalorder %s247, %s250
      %p259 = scmp.eq.s32.totalorder %s48, 3
      %p260 = por %p258, %p259
      %p261 = scmp.ne.s32.totalorder %s250, %s251
      %p262 = scmp.eq.s32.totalorder %s48, 0
      %p263 = por %p261, %p262
      %p264 = scmp.ne.s32.totalorder %s250, %s251
      %p265 = scmp.eq.s32.totalorder %s49, 3
      %p266 = por %p264, %p265
      %p268 = scmp.ne.s32.totalorder %s251, %s267
      %p269 = scmp.eq.s32.totalorder %s49, 0
      %p270 = por %p268, %p269
      %s271 = ssub.s32 %s51, %s58
      %p272 = scmp.eq.s32.totalorder %s271, 0
      %s274 = sadd.s32 %s273, 1
      %s275 = scalar_select %p272, %s273, %s274
      %p278 = pneg %p272
      %p279 = scmp.eq.s32.totalorder %s43, 3
      %p280 = por %p278, %p279
      %p281 = scmp.ne.s32.totalorder %s273, %s276
      %p282 = scmp.eq.s32.totalorder %s43, 0
      %p283 = por %p281, %p282
      %p284 = scmp.ne.s32.totalorder %s273, %s276
      %p285 = scmp.eq.s32.totalorder %s48, 3
      %p286 = por %p284, %p285
      %p287 = scmp.ne.s32.totalorder %s276, %s277
      %p288 = scmp.eq.s32.totalorder %s48, 0
      %p289 = por %p287, %p288
      %p290 = scmp.ne.s32.totalorder %s276, %s277
      %p291 = scmp.eq.s32.totalorder %s49, 3
      %p292 = por %p290, %p291
      %p294 = scmp.ne.s32.totalorder %s277, %s293
      %p295 = scmp.eq.s32.totalorder %s49, 0
      %p296 = por %p294, %p295
      %s297 = ssub.s32 %s51, %s58
      %p298 = scmp.eq.s32.totalorder %s297, 0
      %s300 = sadd.s32 %s299, 1
      %s301 = scalar_select %p298, %s299, %s300
      %p304 = pneg %p298
      %p305 = scmp.eq.s32.totalorder %s43, 3
      %p306 = por %p304, %p305
      %p307 = scmp.ne.s32.totalorder %s299, %s302
      %p308 = scmp.eq.s32.totalorder %s43, 0
      %p309 = por %p307, %p308
      %p310 = scmp.ne.s32.totalorder %s299, %s302
      %p311 = scmp.eq.s32.totalorder %s48, 3
      %p312 = por %p310, %p311
      %p313 = scmp.ne.s32.totalorder %s302, %s303
      %p314 = scmp.eq.s32.totalorder %s48, 0
      %p315 = por %p313, %p314
      %p316 = scmp.ne.s32.totalorder %s302, %s303
      %p317 = scmp.eq.s32.totalorder %s49, 3
      %p318 = por %p316, %p317
      %p320 = scmp.ne.s32.totalorder %s303, %s319
      %p321 = scmp.eq.s32.totalorder %s49, 0
      %p322 = por %p320, %p321
      %s323 = ssub.s32 %s51, %s58
      %p324 = scmp.eq.s32.totalorder %s323, 0
      %s326 = sadd.s32 %s325, 1
      %s327 = scalar_select %p324, %s325, %s326
      %p330 = pneg %p324
      %p331 = scmp.eq.s32.totalorder %s43, 3
      %p332 = por %p330, %p331
      %p333 = scmp.ne.s32.totalorder %s325, %s328
      %p334 = scmp.eq.s32.totalorder %s43, 0
      %p335 = por %p333, %p334
      %p336 = scmp.ne.s32.totalorder %s325, %s328
      %p337 = scmp.eq.s32.totalorder %s48, 3
      %p338 = por %p336, %p337
      %p339 = scmp.ne.s32.totalorder %s328, %s329
      %p340 = scmp.eq.s32.totalorder %s48, 0
      %p341 = por %p339, %p340
      %p342 = scmp.ne.s32.totalorder %s328, %s329
      %p343 = scmp.eq.s32.totalorder %s49, 3
      %p344 = por %p342, %p343
      %p346 = scmp.ne.s32.totalorder %s329, %s345
      %p347 = scmp.eq.s32.totalorder %s49, 0
      %p348 = por %p346, %p347
      %s349 = ssub.s32 %s51, %s58
      %p350 = scmp.eq.s32.totalorder %s349, 0
      %s352 = sadd.s32 %s351, 1
      %s353 = scalar_select %p350, %s351, %s352
      %p356 = pneg %p350
      %p357 = scmp.eq.s32.totalorder %s43, 3
      %p358 = por %p356, %p357
      %p359 = scmp.ne.s32.totalorder %s351, %s354
      %p360 = scmp.eq.s32.totalorder %s43, 0
      %p361 = por %p359, %p360
      %p362 = scmp.ne.s32.totalorder %s351, %s354
      %p363 = scmp.eq.s32.totalorder %s48, 3
      %p364 = por %p362, %p363
      %p365 = scmp.ne.s32.totalorder %s354, %s355
      %p366 = scmp.eq.s32.totalorder %s48, 0
      %p367 = por %p365, %p366
      %p368 = scmp.ne.s32.totalorder %s354, %s355
      %p369 = scmp.eq.s32.totalorder %s49, 3
      %p370 = por %p368, %p369
      %p372 = scmp.ne.s32.totalorder %s355, %s371
      %p373 = scmp.eq.s32.totalorder %s49, 0
      %p374 = por %p372, %p373
      %s375 = ssub.s32 %s51, %s58
      %p376 = scmp.eq.s32.totalorder %s375, 0
      %s378 = sadd.s32 %s377, 1
      %s379 = scalar_select %p376, %s377, %s378
      %p382 = pneg %p376
      %p383 = scmp.eq.s32.totalorder %s43, 3
      %p384 = por %p382, %p383
      %p385 = scmp.ne.s32.totalorder %s377, %s380
      %p386 = scmp.eq.s32.totalorder %s43, 0
      %p387 = por %p385, %p386
      %p388 = scmp.ne.s32.totalorder %s377, %s380
      %p389 = scmp.eq.s32.totalorder %s48, 3
      %p390 = por %p388, %p389
      %p391 = scmp.ne.s32.totalorder %s380, %s381
      %p392 = scmp.eq.s32.totalorder %s48, 0
      %p393 = por %p391, %p392
      %p394 = scmp.ne.s32.totalorder %s380, %s381
      %p395 = scmp.eq.s32.totalorder %s49, 3
      %p396 = por %p394, %p395
      %p398 = scmp.ne.s32.totalorder %s381, %s397
      %p399 = scmp.eq.s32.totalorder %s49, 0
      %p400 = por %p398, %p399
      %s401 = ssub.s32 %s50, %s62
      %p402 = scmp.eq.s32.totalorder %s401, 0
      %s404 = sadd.s32 %s403, 1
      %s405 = scalar_select %p402, %s403, %s404
      %p408 = pneg %p402
      %p409 = scmp.eq.s32.totalorder %s43, 3
      %p410 = por %p408, %p409
      %p411 = scmp.ne.s32.totalorder %s403, %s406
      %p412 = scmp.eq.s32.totalorder %s43, 0
      %p413 = por %p411, %p412
      %p414 = scmp.ne.s32.totalorder %s403, %s406
      %p415 = scmp.eq.s32.totalorder %s48, 3
      %p416 = por %p414, %p415
      %p417 = scmp.ne.s32.totalorder %s406, %s407
      %p418 = scmp.eq.s32.totalorder %s48, 0
      %p419 = por %p417, %p418
      %p420 = scmp.ne.s32.totalorder %s406, %s407
      %p421 = scmp.eq.s32.totalorder %s49, 3
      %p422 = por %p420, %p421
      %p424 = scmp.ne.s32.totalorder %s407, %s423
      %p425 = scmp.eq.s32.totalorder %s49, 0
      %p426 = por %p424, %p425
      %p427 = scmp.le.s32.totalorder 1, %s43
      %p428 = scmp.lt.s32.totalorder %s43, 5
      %p429 = pnand %p427, %p428
      %p430 = pneg %p429
      // Predicated region
      $region9: #{simple_transformer_blocks.1} parent=5 // pred_check
        _
      $region10: #{simple_transformer_blocks.1} parent=5 // pred_check_branch
        %432 = sbr.rel (%p429) target = $region12
      $region11: #{simple_transformer_blocks.1} parent=5 // pred_region
        %s433 = ssub.s32 %s43, 1
      $region12: #{simple_transformer_blocks.1} parent=5 // pred_fallthru
        _
      %p434 = scmp.lt.s32.totalorder %s43, 4
      // Predicated region
      $region13: #{simple_transformer_blocks.1} parent=5 // pred_check
        %p435 = pneg %p434
      $region14: #{simple_transformer_blocks.1} parent=5 // pred_check_branch
        %437 = sbr.rel (%p435) target = $region16
      $region15: #{simple_transformer_blocks.1} parent=5 // pred_region
        // Predicated region
        $region17: #{simple_transformer_blocks.1} parent=15 // pred_check
          %p438 = pneg %p75
        $region18: #{simple_transformer_blocks.1} parent=15 // pred_check_branch
          %440 = sbr.rel (%p438) target = $region20
        $region19: #{simple_transformer_blocks.1} parent=15 // pred_region
          %p441 = scmp.lt.s32.totalorder %s50, 1
          %s442 = scalar_select %p441, %s50, 1
          %s443 = smul.addr %s442, 8
          %s444 = scalar_lea.vmem %s0, %s443
        $region20: #{simple_transformer_blocks.1} parent=15 // pred_fallthru
          _
        // Predicated region
        $region21: #{simple_transformer_blocks.1} parent=15 // pred_check
          %p445 = pneg %p101
        $region22: #{simple_transformer_blocks.1} parent=15 // pred_check_branch
          %447 = sbr.rel (%p445) target = $region24
        $region23: #{simple_transformer_blocks.1} parent=15 // pred_region
          %s448 = sand.u32 %s91, 1
          %s449 = scalar_lea.sflag [#allocation4], %s448
          %s450 = sand.u32 %s91, 1
          %s451 = smul.addr %s450, 1536
          %s452 = scalar_lea.vmem [#allocation3], %s451
          %s454 = ssub.s32 24576, 24576
          %455 = vsyncadd %s449, %s454
          %s456 = smul.addr %s51, 192
          %s457 = smul.addr %s456, 128
          %s458 = scalar_lea.hbm %s1, %s457
          %s459 = sshll.u32 %s452, 4
          %s460 = int_to_ptr.vmem [resolvable:$true] %s459
          %465 = dma.hbm_to_vmem [thread:$0]  %s458, 24576, %s460, %s449, 1536, 1536, 96
        $region24: #{simple_transformer_blocks.1} parent=15 // pred_fallthru
          _
        // Predicated region
        $region25: #{simple_transformer_blocks.1} parent=15 // pred_check
          %p466 = pneg %p127
        $region26: #{simple_transformer_blocks.1} parent=15 // pred_check_branch
          %468 = sbr.rel (%p466) target = $region28
        $region27: #{simple_transformer_blocks.1} parent=15 // pred_region
          %s469 = sand.u32 %s43, 1
          %s470 = scalar_lea.sflag [#allocation7], %s469
          %s471 = sand.u32 %s117, 1
          %s472 = smul.addr %s471, 12
          %s473 = scalar_lea.vmem [#allocation6], %s472
          %s475 = ssub.s32 192, 192
          %476 = vsyncadd %s470, %s475
          %s477 = smul.addr %s51, 12
          %s478 = smul.addr %s477, 16
          %s479 = scalar_lea.hbm %s2, %s478
          %s481 = sshll.u32 %s473, 4
          %s482 = int_to_ptr.vmem [resolvable:$true] %s481
          %484 = dma.hbm_to_vmem [thread:$0]  %s479, 192, %s482, %s470
        $region28: #{simple_transformer_blocks.1} parent=15 // pred_fallthru
          _
        // Predicated region
        $region29: #{simple_transformer_blocks.1} parent=15 // pred_check
          %p485 = pneg %p153
        $region30: #{simple_transformer_blocks.1} parent=15 // pred_check_branch
          %487 = sbr.rel (%p485) target = $region32
        $region31: #{simple_transformer_blocks.1} parent=15 // pred_region
          %s488 = sand.u32 %s43, 1
          %s489 = scalar_lea.sflag [#allocation7], %s488
          %s490 = sand.u32 %s143, 1
          %s491 = smul.addr %s490, 512
          %s492 = scalar_lea.vmem [#allocation8], %s491
          %s494 = ssub.s32 8192, 8192
          %495 = vsyncadd %s489, %s494
          %s496 = smul.addr %s51, 64
          %s497 = smul.addr %s496, 128
          %s498 = scalar_lea.hbm %s3, %s497
          %s499 = sshll.u32 %s492, 4
          %s500 = int_to_ptr.vmem [resolvable:$true] %s499
          %505 = dma.hbm_to_vmem [thread:$0]  %s498, 8192, %s500, %s489, 128, 128, 8
        $region32: #{simple_transformer_blocks.1} parent=15 // pred_fallthru
          _
        // Predicated region
        $region33: #{simple_transformer_blocks.1} parent=15 // pred_check
          %p506 = pneg %p179
        $region34: #{simple_transformer_blocks.1} parent=15 // pred_check_branch
          %508 = sbr.rel (%p506) target = $region36
        $region35: #{simple_transformer_blocks.1} parent=15 // pred_region
          %s509 = sand.u32 %s43, 1
          %s510 = scalar_lea.sflag [#allocation10], %s509
          %s511 = sand.u32 %s169, 1
          %s512 = scalar_lea.vmem [#allocation9], %s511
          %s514 = ssub.s32 16, 16
          %515 = vsyncadd %s510, %s514
          %s516 = smul.addr %s51, 16
          %s517 = scalar_lea.hbm %s4, %s516
          %s519 = sshll.u32 %s512, 4
          %s520 = int_to_ptr.vmem [resolvable:$true] %s519
          %522 = dma.hbm_to_vmem [thread:$0]  %s517, 16, %s520, %s510
        $region36: #{simple_transformer_blocks.1} parent=15 // pred_fallthru
          _
        // Predicated region
        $region37: #{simple_transformer_blocks.1} parent=15 // pred_check
          %p523 = pneg %p205
        $region38: #{simple_transformer_blocks.1} parent=15 // pred_check_branch
          %525 = sbr.rel (%p523) target = $region40
        $region39: #{simple_transformer_blocks.1} parent=15 // pred_region
          %s526 = sand.u32 %s43, 1
          %s527 = scalar_lea.sflag [#allocation10], %s526
          %s528 = sand.u32 %s195, 1
          %s529 = scalar_lea.vmem [#allocation11], %s528
          %s531 = ssub.s32 16, 16
          %532 = vsyncadd %s527, %s531
          %s533 = smul.addr %s51, 16
          %s534 = scalar_lea.hbm %s5, %s533
          %s536 = sshll.u32 %s529, 4
          %s537 = int_to_ptr.vmem [resolvable:$true] %s536
          %539 = dma.hbm_to_vmem [thread:$0]  %s534, 16, %s537, %s527
        $region40: #{simple_transformer_blocks.1} parent=15 // pred_fallthru
          _
        // Predicated region
        $region41: #{simple_transformer_blocks.1} parent=15 // pred_check
          %p540 = pneg %p231
        $region42: #{simple_transformer_blocks.1} parent=15 // pred_check_branch
          %542 = sbr.rel (%p540) target = $region44
        $region43: #{simple_transformer_blocks.1} parent=15 // pred_region
          %s543 = sand.u32 %s43, 1
          %s544 = scalar_lea.sflag [#allocation13], %s543
          %s545 = sand.u32 %s221, 1
          %s546 = scalar_lea.vmem [#allocation12], %s545
          %s548 = ssub.s32 16, 16
          %549 = vsyncadd %s544, %s548
          %s550 = smul.addr %s51, 16
          %s551 = scalar_lea.hbm %s6, %s550
          %s553 = sshll.u32 %s546, 4
          %s554 = int_to_ptr.vmem [resolvable:$true] %s553
          %556 = dma.hbm_to_vmem [thread:$0]  %s551, 16, %s554, %s544
        $region44: #{simple_transformer_blocks.1} parent=15 // pred_fallthru
          _
        // Predicated region
        $region45: #{simple_transformer_blocks.1} parent=15 // pred_check
          %p557 = pneg %p257
        $region46: #{simple_transformer_blocks.1} parent=15 // pred_check_branch
          %559 = sbr.rel (%p557) target = $region48
        $region47: #{simple_transformer_blocks.1} parent=15 // pred_region
          %s560 = sand.u32 %s43, 1
          %s561 = scalar_lea.sflag [#allocation13], %s560
          %s562 = sand.u32 %s247, 1
          %s563 = smul.addr %s562, 128
          %s564 = scalar_lea.vmem [#allocation14], %s563
          %s566 = ssub.s32 2048, 2048
          %567 = vsyncadd %s561, %s566
          %s568 = smul.addr %s51, 16
          %s569 = smul.addr %s568, 128
          %s570 = scalar_lea.hbm %s7, %s569
          %s571 = sshll.u32 %s564, 4
          %s572 = int_to_ptr.vmem [resolvable:$true] %s571
          %577 = dma.hbm_to_vmem [thread:$0]  %s570, 2048, %s572, %s561, 128, 128, 8
        $region48: #{simple_transformer_blocks.1} parent=15 // pred_fallthru
          _
        // Predicated region
        $region49: #{simple_transformer_blocks.1} parent=15 // pred_check
          %p578 = pneg %p283
        $region50: #{simple_transformer_blocks.1} parent=15 // pred_check_branch
          %580 = sbr.rel (%p578) target = $region52
        $region51: #{simple_transformer_blocks.1} parent=15 // pred_region
          %s581 = sand.u32 %s43, 1
          %s582 = scalar_lea.sflag [#allocation16], %s581
          %s583 = sand.u32 %s273, 1
          %s584 = scalar_lea.vmem [#allocation15], %s583
          %s586 = ssub.s32 16, 16
          %587 = vsyncadd %s582, %s586
          %s588 = smul.addr %s51, 16
          %s589 = scalar_lea.hbm %s8, %s588
          %s591 = sshll.u32 %s584, 4
          %s592 = int_to_ptr.vmem [resolvable:$true] %s591
          %594 = dma.hbm_to_vmem [thread:$0]  %s589, 16, %s592, %s582
        $region52: #{simple_transformer_blocks.1} parent=15 // pred_fallthru
          _
        // Predicated region
        $region53: #{simple_transformer_blocks.1} parent=15 // pred_check
          %p595 = pneg %p309
        $region54: #{simple_transformer_blocks.1} parent=15 // pred_check_branch
          %597 = sbr.rel (%p595) target = $region56
        $region55: #{simple_transformer_blocks.1} parent=15 // pred_region
          %s598 = sand.u32 %s43, 1
          %s599 = scalar_lea.sflag [#allocation16], %s598
          %s600 = sand.u32 %s299, 1
          %s601 = smul.addr %s600, 128
          %s602 = scalar_lea.vmem [#allocation17], %s601
          %s604 = ssub.s32 2048, 2048
          %605 = vsyncadd %s599, %s604
          %s606 = smul.addr %s51, 16
          %s607 = smul.addr %s606, 128
          %s608 = scalar_lea.hbm %s9, %s607
          %s609 = sshll.u32 %s602, 4
          %s610 = int_to_ptr.vmem [resolvable:$true] %s609
          %615 = dma.hbm_to_vmem [thread:$0]  %s608, 2048, %s610, %s599, 128, 128, 8
        $region56: #{simple_transformer_blocks.1} parent=15 // pred_fallthru
          _
        // Predicated region
        $region57: #{simple_transformer_blocks.1} parent=15 // pred_check
          %p616 = pneg %p335
        $region58: #{simple_transformer_blocks.1} parent=15 // pred_check_branch
          %618 = sbr.rel (%p616) target = $region60
        $region59: #{simple_transformer_blocks.1} parent=15 // pred_region
          %s619 = sand.u32 %s43, 1
          %s620 = scalar_lea.sflag [#allocation19], %s619
          %s621 = sand.u32 %s325, 1
          %s622 = scalar_lea.vmem [#allocation18], %s621
          %s624 = ssub.s32 16, 16
          %625 = vsyncadd %s620, %s624
          %s626 = smul.addr %s51, 16
          %s627 = scalar_lea.hbm %s10, %s626
          %s629 = sshll.u32 %s622, 4
          %s630 = int_to_ptr.vmem [resolvable:$true] %s629
          %632 = dma.hbm_to_vmem [thread:$0]  %s627, 16, %s630, %s620
        $region60: #{simple_transformer_blocks.1} parent=15 // pred_fallthru
          _
        // Predicated region
        $region61: #{simple_transformer_blocks.1} parent=15 // pred_check
          %p633 = pneg %p361
        $region62: #{simple_transformer_blocks.1} parent=15 // pred_check_branch
          %635 = sbr.rel (%p633) target = $region64
        $region63: #{simple_transformer_blocks.1} parent=15 // pred_region
          %s636 = sand.u32 %s43, 1
          %s637 = scalar_lea.sflag [#allocation19], %s636
          %s638 = sand.u32 %s351, 1
          %s639 = scalar_lea.vmem [#allocation20], %s638
          %s641 = ssub.s32 16, 16
          %642 = vsyncadd %s637, %s641
          %s643 = smul.addr %s51, 16
          %s644 = scalar_lea.hbm %s11, %s643
          %s646 = sshll.u32 %s639, 4
          %s647 = int_to_ptr.vmem [resolvable:$true] %s646
          %649 = dma.hbm_to_vmem [thread:$0]  %s644, 16, %s647, %s637
        $region64: #{simple_transformer_blocks.1} parent=15 // pred_fallthru
          _
        // Predicated region
        $region65: #{simple_transformer_blocks.1} parent=15 // pred_check
          %p650 = pneg %p387
        $region66: #{simple_transformer_blocks.1} parent=15 // pred_check_branch
          %652 = sbr.rel (%p650) target = $region68
        $region67: #{simple_transformer_blocks.1} parent=15 // pred_region
          %s653 = sand.u32 %s377, 1
          %s654 = scalar_lea.sflag [#allocation22], %s653
          %s655 = sand.u32 %s377, 1
          %s656 = scalar_lea.vmem [#allocation21], %s655
          %s658 = ssub.s32 16, 16
          %659 = vsyncadd %s654, %s658
          %s660 = smul.addr %s51, 16
          %s661 = scalar_lea.hbm %s12, %s660
          %s663 = sshll.u32 %s656, 4
          %s664 = int_to_ptr.vmem [resolvable:$true] %s663
          %666 = dma.hbm_to_vmem [thread:$0]  %s661, 16, %s664, %s654
        $region68: #{simple_transformer_blocks.1} parent=15 // pred_fallthru
          _
      $region16: #{simple_transformer_blocks.1} parent=5 // pred_fallthru
        _
      %p667 = scmp.le.s32.totalorder 1, %s43
      %p668 = scmp.lt.s32.totalorder %s43, 5
      %p669 = pnand %p667, %p668
      %p670 = pneg %p669
      // Predicated region
      $region69: #{simple_transformer_blocks.1} parent=5 // pred_check
        _
      $region70: #{simple_transformer_blocks.1} parent=5 // pred_check_branch
        %672 = sbr.rel (%p669) target = $region72
      $region71: #{simple_transformer_blocks.1} parent=5 // pred_region
        %s673 = ssub.s32 %s43, 1
        %s674 = sand.u32 %s94, 1
        %s675 = scalar_lea.sflag [#allocation4], %s674
        %s676 = sand.u32 %s94, 1
        %s677 = smul.addr %s676, 1536
        %s678 = scalar_lea.vmem [#allocation3], %s677
        // Predicated region
        $region73: #{simple_transformer_blocks.1} parent=71 // pred_check
          %p679 = pneg %p107
        $region74: #{simple_transformer_blocks.1} parent=71 // pred_check_branch
          %681 = sbr.rel (%p679) target = $region76
        $region75: #{simple_transformer_blocks.1} parent=71 // pred_region
          %682 = dma.done %s675, 24576
        $region76: #{simple_transformer_blocks.1} parent=71 // pred_fallthru
          _
        %s683 = sand.u32 %s48, 1
        %s684 = scalar_lea.sflag [#allocation7], %s683
        %s685 = sand.u32 %s120, 1
        %s686 = smul.addr %s685, 12
        %s687 = scalar_lea.vmem [#allocation6], %s686
        // Predicated region
        $region77: #{simple_transformer_blocks.1} parent=71 // pred_check
          %p688 = pneg %p133
        $region78: #{simple_transformer_blocks.1} parent=71 // pred_check_branch
          %690 = sbr.rel (%p688) target = $region80
        $region79: #{simple_transformer_blocks.1} parent=71 // pred_region
          %691 = dma.done %s684, 192
        $region80: #{simple_transformer_blocks.1} parent=71 // pred_fallthru
          _
        %s692 = sand.u32 %s48, 1
        %s693 = scalar_lea.sflag [#allocation7], %s692
        %s694 = sand.u32 %s146, 1
        %s695 = smul.addr %s694, 512
        %s696 = scalar_lea.vmem [#allocation8], %s695
        // Predicated region
        $region81: #{simple_transformer_blocks.1} parent=71 // pred_check
          %p697 = pneg %p159
        $region82: #{simple_transformer_blocks.1} parent=71 // pred_check_branch
          %699 = sbr.rel (%p697) target = $region84
        $region83: #{simple_transformer_blocks.1} parent=71 // pred_region
          %700 = dma.done %s693, 8192
        $region84: #{simple_transformer_blocks.1} parent=71 // pred_fallthru
          _
        %s701 = sand.u32 %s48, 1
        %s702 = scalar_lea.sflag [#allocation10], %s701
        %s703 = sand.u32 %s172, 1
        %s704 = scalar_lea.vmem [#allocation9], %s703
        // Predicated region
        $region85: #{simple_transformer_blocks.1} parent=71 // pred_check
          %p705 = pneg %p185
        $region86: #{simple_transformer_blocks.1} parent=71 // pred_check_branch
          %707 = sbr.rel (%p705) target = $region88
        $region87: #{simple_transformer_blocks.1} parent=71 // pred_region
          %708 = dma.done %s702, 16
        $region88: #{simple_transformer_blocks.1} parent=71 // pred_fallthru
          _
        %s709 = sand.u32 %s48, 1
        %s710 = scalar_lea.sflag [#allocation10], %s709
        %s711 = sand.u32 %s198, 1
        %s712 = scalar_lea.vmem [#allocation11], %s711
        // Predicated region
        $region89: #{simple_transformer_blocks.1} parent=71 // pred_check
          %p713 = pneg %p211
        $region90: #{simple_transformer_blocks.1} parent=71 // pred_check_branch
          %715 = sbr.rel (%p713) target = $region92
        $region91: #{simple_transformer_blocks.1} parent=71 // pred_region
          %716 = dma.done %s710, 16
        $region92: #{simple_transformer_blocks.1} parent=71 // pred_fallthru
          _
        %s717 = sand.u32 %s48, 1
        %s718 = scalar_lea.sflag [#allocation13], %s717
        %s719 = sand.u32 %s224, 1
        %s720 = scalar_lea.vmem [#allocation12], %s719
        // Predicated region
        $region93: #{simple_transformer_blocks.1} parent=71 // pred_check
          %p721 = pneg %p237
        $region94: #{simple_transformer_blocks.1} parent=71 // pred_check_branch
          %723 = sbr.rel (%p721) target = $region96
        $region95: #{simple_transformer_blocks.1} parent=71 // pred_region
          %724 = dma.done %s718, 16
        $region96: #{simple_transformer_blocks.1} parent=71 // pred_fallthru
          _
        %s725 = sand.u32 %s48, 1
        %s726 = scalar_lea.sflag [#allocation13], %s725
        %s727 = sand.u32 %s250, 1
        %s728 = smul.addr %s727, 128
        %s729 = scalar_lea.vmem [#allocation14], %s728
        // Predicated region
        $region97: #{simple_transformer_blocks.1} parent=71 // pred_check
          %p730 = pneg %p263
        $region98: #{simple_transformer_blocks.1} parent=71 // pred_check_branch
          %732 = sbr.rel (%p730) target = $region100
        $region99: #{simple_transformer_blocks.1} parent=71 // pred_region
          %733 = dma.done %s726, 2048
        $region100: #{simple_transformer_blocks.1} parent=71 // pred_fallthru
          _
        %s734 = sand.u32 %s48, 1
        %s735 = scalar_lea.sflag [#allocation16], %s734
        %s736 = sand.u32 %s276, 1
        %s737 = scalar_lea.vmem [#allocation15], %s736
        // Predicated region
        $region101: #{simple_transformer_blocks.1} parent=71 // pred_check
          %p738 = pneg %p289
        $region102: #{simple_transformer_blocks.1} parent=71 // pred_check_branch
          %740 = sbr.rel (%p738) target = $region104
        $region103: #{simple_transformer_blocks.1} parent=71 // pred_region
          %741 = dma.done %s735, 16
        $region104: #{simple_transformer_blocks.1} parent=71 // pred_fallthru
          _
        %s742 = sand.u32 %s48, 1
        %s743 = scalar_lea.sflag [#allocation16], %s742
        %s744 = sand.u32 %s302, 1
        %s745 = smul.addr %s744, 128
        %s746 = scalar_lea.vmem [#allocation17], %s745
        // Predicated region
        $region105: #{simple_transformer_blocks.1} parent=71 // pred_check
          %p747 = pneg %p315
        $region106: #{simple_transformer_blocks.1} parent=71 // pred_check_branch
          %749 = sbr.rel (%p747) target = $region108
        $region107: #{simple_transformer_blocks.1} parent=71 // pred_region
          %750 = dma.done %s743, 2048
        $region108: #{simple_transformer_blocks.1} parent=71 // pred_fallthru
          _
        %s751 = sand.u32 %s48, 1
        %s752 = scalar_lea.sflag [#allocation19], %s751
        %s753 = sand.u32 %s328, 1
        %s754 = scalar_lea.vmem [#allocation18], %s753
        // Predicated region
        $region109: #{simple_transformer_blocks.1} parent=71 // pred_check
          %p755 = pneg %p341
        $region110: #{simple_transformer_blocks.1} parent=71 // pred_check_branch
          %757 = sbr.rel (%p755) target = $region112
        $region111: #{simple_transformer_blocks.1} parent=71 // pred_region
          %758 = dma.done %s752, 16
        $region112: #{simple_transformer_blocks.1} parent=71 // pred_fallthru
          _
        %s759 = sand.u32 %s48, 1
        %s760 = scalar_lea.sflag [#allocation19], %s759
        %s761 = sand.u32 %s354, 1
        %s762 = scalar_lea.vmem [#allocation20], %s761
        // Predicated region
        $region113: #{simple_transformer_blocks.1} parent=71 // pred_check
          %p763 = pneg %p367
        $region114: #{simple_transformer_blocks.1} parent=71 // pred_check_branch
          %765 = sbr.rel (%p763) target = $region116
        $region115: #{simple_transformer_blocks.1} parent=71 // pred_region
          %766 = dma.done %s760, 16
        $region116: #{simple_transformer_blocks.1} parent=71 // pred_fallthru
          _
        %s767 = sand.u32 %s380, 1
        %s768 = scalar_lea.sflag [#allocation22], %s767
        %s769 = sand.u32 %s380, 1
        %s770 = scalar_lea.vmem [#allocation21], %s769
        // Predicated region
        $region117: #{simple_transformer_blocks.1} parent=71 // pred_check
          %p771 = pneg %p393
        $region118: #{simple_transformer_blocks.1} parent=71 // pred_check_branch
          %773 = sbr.rel (%p771) target = $region120
        $region119: #{simple_transformer_blocks.1} parent=71 // pred_region
          %774 = dma.done %s768, 16
        $region120: #{simple_transformer_blocks.1} parent=71 // pred_fallthru
          _
        %p775 = scmp.lt.s32.totalorder %s52, 1
        %s776 = scalar_select %p775, %s52, 1
        %s777 = smul.addr %s776, 8
        %s778 = scalar_lea.vmem %s0, %s777
        %p779 = pneg %p81
        %p780 = pneg %p78
        %s781 = sand.u32 %s94, 1
        %s782 = scalar_lea.sflag [#allocation4], %s781
        %s783 = sand.u32 %s94, 1
        %s784 = smul.addr %s783, 1536
        %s785 = scalar_lea.vmem [#allocation3], %s784
        %p786 = pneg %p107
        %p787 = pneg %p104
        %s788 = sand.u32 %s48, 1
        %s789 = scalar_lea.sflag [#allocation7], %s788
        %s790 = sand.u32 %s120, 1
        %s791 = smul.addr %s790, 12
        %s792 = scalar_lea.vmem [#allocation6], %s791
        %p793 = pneg %p133
        %p794 = pneg %p130
        %s795 = sand.u32 %s48, 1
        %s796 = scalar_lea.sflag [#allocation7], %s795
        %s797 = sand.u32 %s146, 1
        %s798 = smul.addr %s797, 512
        %s799 = scalar_lea.vmem [#allocation8], %s798
        %p800 = pneg %p159
        %p801 = pneg %p156
        %s802 = sand.u32 %s48, 1
        %s803 = scalar_lea.sflag [#allocation10], %s802
        %s804 = sand.u32 %s172, 1
        %s805 = scalar_lea.vmem [#allocation9], %s804
        %p806 = pneg %p185
        %p807 = pneg %p182
        %s808 = sand.u32 %s48, 1
        %s809 = scalar_lea.sflag [#allocation10], %s808
        %s810 = sand.u32 %s198, 1
        %s811 = scalar_lea.vmem [#allocation11], %s810
        %p812 = pneg %p211
        %p813 = pneg %p208
        %s814 = sand.u32 %s48, 1
        %s815 = scalar_lea.sflag [#allocation13], %s814
        %s816 = sand.u32 %s224, 1
        %s817 = scalar_lea.vmem [#allocation12], %s816
        %p818 = pneg %p237
        %p819 = pneg %p234
        %s820 = sand.u32 %s48, 1
        %s821 = scalar_lea.sflag [#allocation13], %s820
        %s822 = sand.u32 %s250, 1
        %s823 = smul.addr %s822, 128
        %s824 = scalar_lea.vmem [#allocation14], %s823
        %p825 = pneg %p263
        %p826 = pneg %p260
        %s827 = sand.u32 %s48, 1
        %s828 = scalar_lea.sflag [#allocation16], %s827
        %s829 = sand.u32 %s276, 1
        %s830 = scalar_lea.vmem [#allocation15], %s829
        %p831 = pneg %p289
        %p832 = pneg %p286
        %s833 = sand.u32 %s48, 1
        %s834 = scalar_lea.sflag [#allocation16], %s833
        %s835 = sand.u32 %s302, 1
        %s836 = smul.addr %s835, 128
        %s837 = scalar_lea.vmem [#allocation17], %s836
        %p838 = pneg %p315
        %p839 = pneg %p312
        %s840 = sand.u32 %s48, 1
        %s841 = scalar_lea.sflag [#allocation19], %s840
        %s842 = sand.u32 %s328, 1
        %s843 = scalar_lea.vmem [#allocation18], %s842
        %p844 = pneg %p341
        %p845 = pneg %p338
        %s846 = sand.u32 %s48, 1
        %s847 = scalar_lea.sflag [#allocation19], %s846
        %s848 = sand.u32 %s354, 1
        %s849 = scalar_lea.vmem [#allocation20], %s848
        %p850 = pneg %p367
        %p851 = pneg %p364
        %s852 = sand.u32 %s380, 1
        %s853 = scalar_lea.sflag [#allocation22], %s852
        %s854 = sand.u32 %s380, 1
        %s855 = scalar_lea.vmem [#allocation21], %s854
        %p856 = pneg %p393
        %p857 = pneg %p390
        %p858 = pneg %p419
        %p859 = pneg %p416
        %s860 = sand.u32 %s406, 1
        %s861 = scalar_lea.sflag [#allocation5], %s860
        %s862 = sand.u32 %s406, 1
        %s863 = smul.addr %s862, 8
        %s864 = scalar_lea.vmem [#allocation23], %s863
        %p865 = scmp.lt.s32.totalorder %s52, 1
        %s866 = scalar_select %p865, %s52, 1
        %s867 = smul.addr %s866, 8
        %s868 = scalar_lea.vmem %s0, %s867
        %p869 = scmp.eq.s32.totalorder %s53, 0
        // Predicated region
        $region121: #{simple_transformer_blocks.1} parent=71 // pred_check
          %p870 = pneg %p869
        $region122: #{simple_transformer_blocks.1} parent=71 // pred_check_branch
          %872 = sbr.rel (%p870) target = $region124
        $region123: #{simple_transformer_blocks.1} parent=71 // pred_region
          %v873 = vld [vmem:[%s868] sm:$0xff]
          %874 = vst [vmem:[#allocation2] sm:$0xff] %v873
        $region124: #{simple_transformer_blocks.1} parent=71 // pred_fallthru
          _
        %v875 = vld [vmem:[#allocation2] sm:$0xff]
        %v876 = vlaneseq
        %v877 = vand.u32 %v876, 127
        %vm878 = vcmp.lt.s32.totalorder %v877, 32
        %v879 = vld [vmem:[%s678] sm:$0xff]
        %v880 = vld [vmem:[%s678 + $0x8] sm:$0xff]
        %v881 = vld [vmem:[%s678 + $0x10] sm:$0xff]
        %v882 = vld [vmem:[%s678 + $0x18] sm:$0xff]
        %v883 = vld [vmem:[%s678 + $0x20] sm:$0xff]
        %v884 = vld [vmem:[%s678 + $0x28] sm:$0xff]
        %v885 = vld [vmem:[%s678 + $0x30] sm:$0xff]
        %v886 = vld [vmem:[%s678 + $0x38] sm:$0xff]
        %v887 = vld [vmem:[%s678 + $0x40] sm:$0xff]
        %v888 = vld [vmem:[%s678 + $0x48] sm:$0xff]
        %v889 = vld [vmem:[%s678 + $0x50] sm:$0xff]
        %v890 = vld [vmem:[%s678 + $0x58] sm:$0xff]
        %v891 = vld [vmem:[%s678 + $0x60] sm:$0xff]
        %v892 = vld [vmem:[%s678 + $0x68] sm:$0xff]
        %v893 = vld [vmem:[%s678 + $0x70] sm:$0xff]
        %v894 = vld [vmem:[%s678 + $0x78] sm:$0xff]
        %v895 = vld [vmem:[%s678 + $0x80] sm:$0xff]
        %v896 = vld [vmem:[%s678 + $0x88] sm:$0xff]
        %v897 = vld [vmem:[%s678 + $0x90] sm:$0xff]
        %v898 = vld [vmem:[%s678 + $0x98] sm:$0xff]
        %v899 = vld [vmem:[%s678 + $0xa0] sm:$0xff]
        %v900 = vld [vmem:[%s678 + $0xa8] sm:$0xff]
        %v901 = vld [vmem:[%s678 + $0xb0] sm:$0xff]
        %v902 = vld [vmem:[%s678 + $0xb8] sm:$0xff]
        %v903 = vld [vmem:[%s678 + $0xc0] sm:$0xff]
        %v904 = vld [vmem:[%s678 + $0xc8] sm:$0xff]
        %v905 = vld [vmem:[%s678 + $0xd0] sm:$0xff]
        %v906 = vld [vmem:[%s678 + $0xd8] sm:$0xff]
        %v907 = vld [vmem:[%s678 + $0xe0] sm:$0xff]
        %v908 = vld [vmem:[%s678 + $0xe8] sm:$0xff]
        %v909 = vld [vmem:[%s678 + $0xf0] sm:$0xff]
        %v910 = vld [vmem:[%s678 + $0xf8] sm:$0xff]
        %v911 = vld [vmem:[%s678 + $0x100] sm:$0xff]
        %v912 = vld [vmem:[%s678 + $0x108] sm:$0xff]
        %v913 = vld [vmem:[%s678 + $0x110] sm:$0xff]
        %v914 = vld [vmem:[%s678 + $0x118] sm:$0xff]
        %v915 = vld [vmem:[%s678 + $0x120] sm:$0xff]
        %v916 = vld [vmem:[%s678 + $0x128] sm:$0xff]
        %v917 = vld [vmem:[%s678 + $0x130] sm:$0xff]
        %v918 = vld [vmem:[%s678 + $0x138] sm:$0xff]
        %v919 = vld [vmem:[%s678 + $0x140] sm:$0xff]
        %v920 = vld [vmem:[%s678 + $0x148] sm:$0xff]
        %v921 = vld [vmem:[%s678 + $0x150] sm:$0xff]
        %v922 = vld [vmem:[%s678 + $0x158] sm:$0xff]
        %v923 = vld [vmem:[%s678 + $0x160] sm:$0xff]
        %v924 = vld [vmem:[%s678 + $0x168] sm:$0xff]
        %v925 = vld [vmem:[%s678 + $0x170] sm:$0xff]
        %v926 = vld [vmem:[%s678 + $0x178] sm:$0xff]
        %v927 = vld [vmem:[%s678 + $0x180] sm:$0xff]
        %v928 = vld [vmem:[%s678 + $0x188] sm:$0xff]
        %v929 = vld [vmem:[%s678 + $0x190] sm:$0xff]
        %v930 = vld [vmem:[%s678 + $0x198] sm:$0xff]
        %v931 = vld [vmem:[%s678 + $0x1a0] sm:$0xff]
        %v932 = vld [vmem:[%s678 + $0x1a8] sm:$0xff]
        %v933 = vld [vmem:[%s678 + $0x1b0] sm:$0xff]
        %v934 = vld [vmem:[%s678 + $0x1b8] sm:$0xff]
        %v935 = vld [vmem:[%s678 + $0x1c0] sm:$0xff]
        %v936 = vld [vmem:[%s678 + $0x1c8] sm:$0xff]
        %v937 = vld [vmem:[%s678 + $0x1d0] sm:$0xff]
        %v938 = vld [vmem:[%s678 + $0x1d8] sm:$0xff]
        %v939 = vld [vmem:[%s678 + $0x1e0] sm:$0xff]
        %v940 = vld [vmem:[%s678 + $0x1e8] sm:$0xff]
        %v941 = vld [vmem:[%s678 + $0x1f0] sm:$0xff]
        %v942 = vld [vmem:[%s678 + $0x1f8] sm:$0xff]
        %v943 = vld [vmem:[%s678 + $0x200] sm:$0xff]
        %v944 = vld [vmem:[%s678 + $0x208] sm:$0xff]
        %v945 = vld [vmem:[%s678 + $0x210] sm:$0xff]
        %v946 = vld [vmem:[%s678 + $0x218] sm:$0xff]
        %v947 = vld [vmem:[%s678 + $0x220] sm:$0xff]
        %v948 = vld [vmem:[%s678 + $0x228] sm:$0xff]
        %v949 = vld [vmem:[%s678 + $0x230] sm:$0xff]
        %v950 = vld [vmem:[%s678 + $0x238] sm:$0xff]
        %v951 = vld [vmem:[%s678 + $0x240] sm:$0xff]
        %v952 = vld [vmem:[%s678 + $0x248] sm:$0xff]
        %v953 = vld [vmem:[%s678 + $0x250] sm:$0xff]
        %v954 = vld [vmem:[%s678 + $0x258] sm:$0xff]
        %v955 = vld [vmem:[%s678 + $0x260] sm:$0xff]
        %v956 = vld [vmem:[%s678 + $0x268] sm:$0xff]
        %v957 = vld [vmem:[%s678 + $0x270] sm:$0xff]
        %v958 = vld [vmem:[%s678 + $0x278] sm:$0xff]
        %v959 = vld [vmem:[%s678 + $0x280] sm:$0xff]
        %v960 = vld [vmem:[%s678 + $0x288] sm:$0xff]
        %v961 = vld [vmem:[%s678 + $0x290] sm:$0xff]
        %v962 = vld [vmem:[%s678 + $0x298] sm:$0xff]
        %v963 = vld [vmem:[%s678 + $0x2a0] sm:$0xff]
        %v964 = vld [vmem:[%s678 + $0x2a8] sm:$0xff]
        %v965 = vld [vmem:[%s678 + $0x2b0] sm:$0xff]
        %v966 = vld [vmem:[%s678 + $0x2b8] sm:$0xff]
        %v967 = vld [vmem:[%s678 + $0x2c0] sm:$0xff]
        %v968 = vld [vmem:[%s678 + $0x2c8] sm:$0xff]
        %v969 = vld [vmem:[%s678 + $0x2d0] sm:$0xff]
        %v970 = vld [vmem:[%s678 + $0x2d8] sm:$0xff]
        %v971 = vld [vmem:[%s678 + $0x2e0] sm:$0xff]
        %v972 = vld [vmem:[%s678 + $0x2e8] sm:$0xff]
        %v973 = vld [vmem:[%s678 + $0x2f0] sm:$0xff]
        %v974 = vld [vmem:[%s678 + $0x2f8] sm:$0xff]
        %v975 = vld [vmem:[%s678 + $0x300] sm:$0xff]
        %v976 = vld [vmem:[%s678 + $0x308] sm:$0xff]
        %v977 = vld [vmem:[%s678 + $0x310] sm:$0xff]
        %v978 = vld [vmem:[%s678 + $0x318] sm:$0xff]
        %v979 = vld [vmem:[%s678 + $0x320] sm:$0xff]
        %v980 = vld [vmem:[%s678 + $0x328] sm:$0xff]
        %v981 = vld [vmem:[%s678 + $0x330] sm:$0xff]
        %v982 = vld [vmem:[%s678 + $0x338] sm:$0xff]
        %v983 = vld [vmem:[%s678 + $0x340] sm:$0xff]
        %v984 = vld [vmem:[%s678 + $0x348] sm:$0xff]
        %v985 = vld [vmem:[%s678 + $0x350] sm:$0xff]
        %v986 = vld [vmem:[%s678 + $0x358] sm:$0xff]
        %v987 = vld [vmem:[%s678 + $0x360] sm:$0xff]
        %v988 = vld [vmem:[%s678 + $0x368] sm:$0xff]
        %v989 = vld [vmem:[%s678 + $0x370] sm:$0xff]
        %v990 = vld [vmem:[%s678 + $0x378] sm:$0xff]
        %v991 = vld [vmem:[%s678 + $0x380] sm:$0xff]
        %v992 = vld [vmem:[%s678 + $0x388] sm:$0xff]
        %v993 = vld [vmem:[%s678 + $0x390] sm:$0xff]
        %v994 = vld [vmem:[%s678 + $0x398] sm:$0xff]
        %v995 = vld [vmem:[%s678 + $0x3a0] sm:$0xff]
        %v996 = vld [vmem:[%s678 + $0x3a8] sm:$0xff]
        %v997 = vld [vmem:[%s678 + $0x3b0] sm:$0xff]
        %v998 = vld [vmem:[%s678 + $0x3b8] sm:$0xff]
        %v999 = vld [vmem:[%s678 + $0x3c0] sm:$0xff]
        %v1000 = vld [vmem:[%s678 + $0x3c8] sm:$0xff]
        %v1001 = vld [vmem:[%s678 + $0x3d0] sm:$0xff]
        %v1002 = vld [vmem:[%s678 + $0x3d8] sm:$0xff]
        %v1003 = vld [vmem:[%s678 + $0x3e0] sm:$0xff]
        %v1004 = vld [vmem:[%s678 + $0x3e8] sm:$0xff]
        %v1005 = vld [vmem:[%s678 + $0x3f0] sm:$0xff]
        %v1006 = vld [vmem:[%s678 + $0x3f8] sm:$0xff]
        %v1007 = vld [vmem:[%s678 + $0x400] sm:$0xff]
        %v1008 = vld [vmem:[%s678 + $0x408] sm:$0xff]
        %v1009 = vld [vmem:[%s678 + $0x410] sm:$0xff]
        %v1010 = vld [vmem:[%s678 + $0x418] sm:$0xff]
        %v1011 = vld [vmem:[%s678 + $0x420] sm:$0xff]
        %v1012 = vld [vmem:[%s678 + $0x428] sm:$0xff]
        %v1013 = vld [vmem:[%s678 + $0x430] sm:$0xff]
        %v1014 = vld [vmem:[%s678 + $0x438] sm:$0xff]
        %v1015 = vld [vmem:[%s678 + $0x440] sm:$0xff]
        %v1016 = vld [vmem:[%s678 + $0x448] sm:$0xff]
        %v1017 = vld [vmem:[%s678 + $0x450] sm:$0xff]
        %v1018 = vld [vmem:[%s678 + $0x458] sm:$0xff]
        %v1019 = vld [vmem:[%s678 + $0x460] sm:$0xff]
        %v1020 = vld [vmem:[%s678 + $0x468] sm:$0xff]
        %v1021 = vld [vmem:[%s678 + $0x470] sm:$0xff]
        %v1022 = vld [vmem:[%s678 + $0x478] sm:$0xff]
        %v1023 = vld [vmem:[%s678 + $0x480] sm:$0xff]
        %v1024 = vld [vmem:[%s678 + $0x488] sm:$0xff]
        %v1025 = vld [vmem:[%s678 + $0x490] sm:$0xff]
        %v1026 = vld [vmem:[%s678 + $0x498] sm:$0xff]
        %v1027 = vld [vmem:[%s678 + $0x4a0] sm:$0xff]
        %v1028 = vld [vmem:[%s678 + $0x4a8] sm:$0xff]
        %v1029 = vld [vmem:[%s678 + $0x4b0] sm:$0xff]
        %v1030 = vld [vmem:[%s678 + $0x4b8] sm:$0xff]
        %v1031 = vld [vmem:[%s678 + $0x4c0] sm:$0xff]
        %v1032 = vld [vmem:[%s678 + $0x4c8] sm:$0xff]
        %v1033 = vld [vmem:[%s678 + $0x4d0] sm:$0xff]
        %v1034 = vld [vmem:[%s678 + $0x4d8] sm:$0xff]
        %v1035 = vld [vmem:[%s678 + $0x4e0] sm:$0xff]
        %v1036 = vld [vmem:[%s678 + $0x4e8] sm:$0xff]
        %v1037 = vld [vmem:[%s678 + $0x4f0] sm:$0xff]
        %v1038 = vld [vmem:[%s678 + $0x4f8] sm:$0xff]
        %v1039 = vld [vmem:[%s678 + $0x500] sm:$0xff]
        %v1040 = vld [vmem:[%s678 + $0x508] sm:$0xff]
        %v1041 = vld [vmem:[%s678 + $0x510] sm:$0xff]
        %v1042 = vld [vmem:[%s678 + $0x518] sm:$0xff]
        %v1043 = vld [vmem:[%s678 + $0x520] sm:$0xff]
        %v1044 = vld [vmem:[%s678 + $0x528] sm:$0xff]
        %v1045 = vld [vmem:[%s678 + $0x530] sm:$0xff]
        %v1046 = vld [vmem:[%s678 + $0x538] sm:$0xff]
        %v1047 = vld [vmem:[%s678 + $0x540] sm:$0xff]
        %v1048 = vld [vmem:[%s678 + $0x548] sm:$0xff]
        %v1049 = vld [vmem:[%s678 + $0x550] sm:$0xff]
        %v1050 = vld [vmem:[%s678 + $0x558] sm:$0xff]
        %v1051 = vld [vmem:[%s678 + $0x560] sm:$0xff]
        %v1052 = vld [vmem:[%s678 + $0x568] sm:$0xff]
        %v1053 = vld [vmem:[%s678 + $0x570] sm:$0xff]
        %v1054 = vld [vmem:[%s678 + $0x578] sm:$0xff]
        %v1055 = vld [vmem:[%s678 + $0x580] sm:$0xff]
        %v1056 = vld [vmem:[%s678 + $0x588] sm:$0xff]
        %v1057 = vld [vmem:[%s678 + $0x590] sm:$0xff]
        %v1058 = vld [vmem:[%s678 + $0x598] sm:$0xff]
        %v1059 = vld [vmem:[%s678 + $0x5a0] sm:$0xff]
        %v1060 = vld [vmem:[%s678 + $0x5a8] sm:$0xff]
        %v1061 = vld [vmem:[%s678 + $0x5b0] sm:$0xff]
        %v1062 = vld [vmem:[%s678 + $0x5b8] sm:$0xff]
        %v1063 = vld [vmem:[%s678 + $0x5c0] sm:$0xff]
        %v1064 = vld [vmem:[%s678 + $0x5c8] sm:$0xff]
        %v1065 = vld [vmem:[%s678 + $0x5d0] sm:$0xff]
        %v1066 = vld [vmem:[%s678 + $0x5d8] sm:$0xff]
        %v1067 = vld [vmem:[%s678 + $0x5e0] sm:$0xff]
        %v1068 = vld [vmem:[%s678 + $0x5e8] sm:$0xff]
        %v1069 = vld [vmem:[%s678 + $0x5f0] sm:$0xff]
        %v1070 = vld [vmem:[%s678 + $0x5f8] sm:$0xff]
        %v1071 = vld [vmem:[%s687] sm:$0xff]
        %v1072 = vld [vmem:[%s687 + $0x8] sm:$0xf]
        %v1075 = vlaneseq
        %v1076 = vshrl.u32 %v1075, 7
        %v1077 = vsub.s32 0, %v1076
        %v1078 = vrot.slane %v1071, %v1077
        %v1079 = vlaneseq
        %v1080 = vshrl.u32 %v1079, 7
        %v1081 = vsub.s32 1, %v1080
        %v1082 = vrot.slane %v1071, %v1081
        %v1083 = vlaneseq
        %v1084 = vshrl.u32 %v1083, 7
        %v1085 = vsub.s32 2, %v1084
        %v1086 = vrot.slane %v1071, %v1085
        %v1087 = vlaneseq
        %v1088 = vshrl.u32 %v1087, 7
        %v1089 = vsub.s32 3, %v1088
        %v1090 = vrot.slane %v1071, %v1089
        %v1091 = vlaneseq
        %v1092 = vshrl.u32 %v1091, 7
        %v1093 = vsub.s32 4, %v1092
        %v1094 = vrot.slane %v1071, %v1093
        %v1095 = vlaneseq
        %v1096 = vshrl.u32 %v1095, 7
        %v1097 = vsub.s32 5, %v1096
        %v1098 = vrot.slane %v1071, %v1097
        %v1099 = vlaneseq
        %v1100 = vshrl.u32 %v1099, 7
        %v1101 = vsub.s32 6, %v1100
        %v1102 = vrot.slane %v1071, %v1101
        %v1103 = vlaneseq
        %v1104 = vshrl.u32 %v1103, 7
        %v1105 = vsub.s32 7, %v1104
        %v1106 = vrot.slane %v1071, %v1105
        %v1107 = vlaneseq
        %v1108 = vshrl.u32 %v1107, 7
        %v1109 = vsub.s32 0, %v1108
        %v1110 = vrot.slane %v1072, %v1109
        %v1111 = vlaneseq
        %v1112 = vshrl.u32 %v1111, 7
        %v1113 = vsub.s32 1, %v1112
        %v1114 = vrot.slane %v1072, %v1113
        %v1115 = vlaneseq
        %v1116 = vshrl.u32 %v1115, 7
        %v1117 = vsub.s32 2, %v1116
        %v1118 = vrot.slane %v1072, %v1117
        %v1119 = vlaneseq
        %v1120 = vshrl.u32 %v1119, 7
        %v1121 = vsub.s32 3, %v1120
        %v1122 = vrot.slane %v1072, %v1121
        %1135 = vmatprep.subr.mxu0 %v880
        %1136 = vmatpush1.msra.mxu0 %v879
        %1137 = vmatprep.subr.mxu0 %v892
        %1138 = vmatpush1.msra.mxu0 %v891
        %1139 = vmatprep.subr.mxu0 %v904
        %1140 = vmatpush1.msra.mxu0 %v903
        %1141 = vmatprep.subr.mxu0 %v916
        %1142 = vmatpush1.msra.mxu0 %v915
        %1143 = vmatprep.subr.mxu0 %v928
        %1144 = vmatpush1.msra.mxu0 %v927
        %1145 = vmatprep.subr.mxu0 %v940
        %1146 = vmatpush1.msra.mxu0 %v939
        %1147 = vmatprep.subr.mxu0 %v952
        %1148 = vmatpush1.msra.mxu0 %v951
        %1149 = vmatprep.subr.mxu0 %v964
        %1150 = vmatpush1.msra.mxu0 %v963
        %1151 = vmatprep.subr.mxu0 %v976
        %1152 = vmatpush1.msra.mxu0 %v975
        %1153 = vmatprep.subr.mxu0 %v988
        %1154 = vmatpush1.msra.mxu0 %v987
        %1155 = vmatprep.subr.mxu0 %v1000
        %1156 = vmatpush1.msra.mxu0 %v999
        %1157 = vmatprep.subr.mxu0 %v1012
        %1158 = vmatpush1.msra.mxu0 %v1011
        %1159 = vmatprep.subr.mxu0 %v1024
        %1160 = vmatpush1.msra.mxu0 %v1023
        %1161 = vmatprep.subr.mxu0 %v1036
        %1162 = vmatpush1.msra.mxu0 %v1035
        %1163 = vmatprep.subr.mxu0 %v1048
        %1164 = vmatpush1.msra.mxu0 %v1047
        %1165 = vmatprep.subr.mxu0 %v1060
        %1166 = vmatpush1.msra.mxu0 %v1059
        %1167 = vmatprep.subr.mxu0 0.0
        %1168 = vmatpush1.msra.mxu0 0.0
        %1169 = vmatprep.subr.mxu0 0.0
        %1170 = vmatpush1.msra.mxu0 0.0
        %1171 = vmatprep.subr.mxu0 0.0
        %1172 = vmatpush1.msra.mxu0 0.0
        %1173 = vmatprep.subr.mxu0 0.0
        %1174 = vmatpush1.msra.mxu0 0.0
        %1175 = vmatprep.subr.mxu0 0.0
        %1176 = vmatpush1.msra.mxu0 0.0
        %1177 = vmatprep.subr.mxu0 0.0
        %1178 = vmatpush1.msra.mxu0 0.0
        %1179 = vmatprep.subr.mxu0 0.0
        %1180 = vmatpush1.msra.mxu0 0.0
        %1181 = vmatprep.subr.mxu0 0.0
        %1182 = vmatpush1.msra.mxu0 0.0
        %1183 = vmatprep.subr.mxu0 0.0
        %1184 = vmatpush1.msra.mxu0 0.0
        %1185 = vmatprep.subr.mxu0 0.0
        %1186 = vmatpush1.msra.mxu0 0.0
        %1187 = vmatprep.subr.mxu0 0.0
        %1188 = vmatpush1.msra.mxu0 0.0
        %1189 = vmatprep.subr.mxu0 0.0
        %1190 = vmatpush1.msra.mxu0 0.0
        %1191 = vmatprep.subr.mxu0 0.0
        %1192 = vmatpush1.msra.mxu0 0.0
        %1193 = vmatprep.subr.mxu0 0.0
        %1194 = vmatpush1.msra.mxu0 0.0
        %1195 = vmatprep.subr.mxu0 0.0
        %1196 = vmatpush1.msra.mxu0 0.0
        %1197 = vmatprep.subr.mxu0 0.0
        %1198 = vmatpush1.msra.mxu0 0.0
        %1199 = vmatprep.mubr.f32.mxu0 0.0
        %1200 = vmatmul.mubr.f32.gmra.mrb[0].mxu0 %v875
        %v1201 = vpop.f32.mrb[0].mxu0
        %v1202 = vadd.f32 %v1078, %v1201
        %v1203 = vpop.f32.mrb[0].mxu0
        %v1204 = vadd.f32 %v1082, %v1203
        %1205 = vdwg.mxu0
        %1206 = vmatprep.subr.mxu0 %v882
        %1207 = vmatpush1.msra.mxu0 %v881
        %1208 = vmatprep.subr.mxu0 %v894
        %1209 = vmatpush1.msra.mxu0 %v893
        %1210 = vmatprep.subr.mxu0 %v906
        %1211 = vmatpush1.msra.mxu0 %v905
        %1212 = vmatprep.subr.mxu0 %v918
        %1213 = vmatpush1.msra.mxu0 %v917
        %1214 = vmatprep.subr.mxu0 %v930
        %1215 = vmatpush1.msra.mxu0 %v929
        %1216 = vmatprep.subr.mxu0 %v942
        %1217 = vmatpush1.msra.mxu0 %v941
        %1218 = vmatprep.subr.mxu0 %v954
        %1219 = vmatpush1.msra.mxu0 %v953
        %1220 = vmatprep.subr.mxu0 %v966
        %1221 = vmatpush1.msra.mxu0 %v965
        %1222 = vmatprep.subr.mxu0 %v978
        %1223 = vmatpush1.msra.mxu0 %v977
        %1224 = vmatprep.subr.mxu0 %v990
        %1225 = vmatpush1.msra.mxu0 %v989
        %1226 = vmatprep.subr.mxu0 %v1002
        %1227 = vmatpush1.msra.mxu0 %v1001
        %1228 = vmatprep.subr.mxu0 %v1014
        %1229 = vmatpush1.msra.mxu0 %v1013
        %1230 = vmatprep.subr.mxu0 %v1026
        %1231 = vmatpush1.msra.mxu0 %v1025
        %1232 = vmatprep.subr.mxu0 %v1038
        %1233 = vmatpush1.msra.mxu0 %v1037
        %1234 = vmatprep.subr.mxu0 %v1050
        %1235 = vmatpush1.msra.mxu0 %v1049
        %1236 = vmatprep.subr.mxu0 %v1062
        %1237 = vmatpush1.msra.mxu0 %v1061
        %1238 = vmatprep.subr.mxu0 0.0
        %1239 = vmatpush1.msra.mxu0 0.0
        %1240 = vmatprep.subr.mxu0 0.0
        %1241 = vmatpush1.msra.mxu0 0.0
        %1242 = vmatprep.subr.mxu0 0.0
        %1243 = vmatpush1.msra.mxu0 0.0
        %1244 = vmatprep.subr.mxu0 0.0
        %1245 = vmatpush1.msra.mxu0 0.0
        %1246 = vmatprep.subr.mxu0 0.0
        %1247 = vmatpush1.msra.mxu0 0.0
        %1248 = vmatprep.subr.mxu0 0.0
        %1249 = vmatpush1.msra.mxu0 0.0
        %1250 = vmatprep.subr.mxu0 0.0
        %1251 = vmatpush1.msra.mxu0 0.0
        %1252 = vmatprep.subr.mxu0 0.0
        %1253 = vmatpush1.msra.mxu0 0.0
        %1254 = vmatprep.subr.mxu0 0.0
        %1255 = vmatpush1.msra.mxu0 0.0
        %1256 = vmatprep.subr.mxu0 0.0
        %1257 = vmatpush1.msra.mxu0 0.0
        %1258 = vmatprep.subr.mxu0 0.0
        %1259 = vmatpush1.msra.mxu0 0.0
        %1260 = vmatprep.subr.mxu0 0.0
        %1261 = vmatpush1.msra.mxu0 0.0
        %1262 = vmatprep.subr.mxu0 0.0
        %1263 = vmatpush1.msra.mxu0 0.0
        %1264 = vmatprep.subr.mxu0 0.0
        %1265 = vmatpush1.msra.mxu0 0.0
        %1266 = vmatprep.subr.mxu0 0.0
        %1267 = vmatpush1.msra.mxu0 0.0
        %1268 = vmatprep.subr.mxu0 0.0
        %1269 = vmatpush1.msra.mxu0 0.0
        %1270 = vmatprep.mubr.f32.mxu0 0.0
        %1271 = vmatmul.mubr.f32.gmra.mrb[0].mxu0 %v875
        %v1272 = vpop.f32.mrb[0].mxu0
        %v1273 = vadd.f32 %v1086, %v1272
        %v1274 = vpop.f32.mrb[0].mxu0
        %v1275 = vadd.f32 %v1090, %v1274
        %1276 = vdwg.mxu0
        %1277 = vmatprep.subr.mxu0 %v884
        %1278 = vmatpush1.msra.mxu0 %v883
        %1279 = vmatprep.subr.mxu0 %v896
        %1280 = vmatpush1.msra.mxu0 %v895
        %1281 = vmatprep.subr.mxu0 %v908
        %1282 = vmatpush1.msra.mxu0 %v907
        %1283 = vmatprep.subr.mxu0 %v920
        %1284 = vmatpush1.msra.mxu0 %v919
        %1285 = vmatprep.subr.mxu0 %v932
        %1286 = vmatpush1.msra.mxu0 %v931
        %1287 = vmatprep.subr.mxu0 %v944
        %1288 = vmatpush1.msra.mxu0 %v943
        %1289 = vmatprep.subr.mxu0 %v956
        %1290 = vmatpush1.msra.mxu0 %v955
        %1291 = vmatprep.subr.mxu0 %v968
        %1292 = vmatpush1.msra.mxu0 %v967
        %1293 = vmatprep.subr.mxu0 %v980
        %1294 = vmatpush1.msra.mxu0 %v979
        %1295 = vmatprep.subr.mxu0 %v992
        %1296 = vmatpush1.msra.mxu0 %v991
        %1297 = vmatprep.subr.mxu0 %v1004
        %1298 = vmatpush1.msra.mxu0 %v1003
        %1299 = vmatprep.subr.mxu0 %v1016
        %1300 = vmatpush1.msra.mxu0 %v1015
        %1301 = vmatprep.subr.mxu0 %v1028
        %1302 = vmatpush1.msra.mxu0 %v1027
        %1303 = vmatprep.subr.mxu0 %v1040
        %1304 = vmatpush1.msra.mxu0 %v1039
        %1305 = vmatprep.subr.mxu0 %v1052
        %1306 = vmatpush1.msra.mxu0 %v1051
        %1307 = vmatprep.subr.mxu0 %v1064
        %1308 = vmatpush1.msra.mxu0 %v1063
        %1309 = vmatprep.subr.mxu0 0.0
        %1310 = vmatpush1.msra.mxu0 0.0
        %1311 = vmatprep.subr.mxu0 0.0
        %1312 = vmatpush1.msra.mxu0 0.0
        %1313 = vmatprep.subr.mxu0 0.0
        %1314 = vmatpush1.msra.mxu0 0.0
        %1315 = vmatprep.subr.mxu0 0.0
        %1316 = vmatpush1.msra.mxu0 0.0
        %1317 = vmatprep.subr.mxu0 0.0
        %1318 = vmatpush1.msra.mxu0 0.0
        %1319 = vmatprep.subr.mxu0 0.0
        %1320 = vmatpush1.msra.mxu0 0.0
        %1321 = vmatprep.subr.mxu0 0.0
        %1322 = vmatpush1.msra.mxu0 0.0
        %1323 = vmatprep.subr.mxu0 0.0
        %1324 = vmatpush1.msra.mxu0 0.0
        %1325 = vmatprep.subr.mxu0 0.0
        %1326 = vmatpush1.msra.mxu0 0.0
        %1327 = vmatprep.subr.mxu0 0.0
        %1328 = vmatpush1.msra.mxu0 0.0
        %1329 = vmatprep.subr.mxu0 0.0
        %1330 = vmatpush1.msra.mxu0 0.0
        %1331 = vmatprep.subr.mxu0 0.0
        %1332 = vmatpush1.msra.mxu0 0.0
        %1333 = vmatprep.subr.mxu0 0.0
        %1334 = vmatpush1.msra.mxu0 0.0
        %1335 = vmatprep.subr.mxu0 0.0
        %1336 = vmatpush1.msra.mxu0 0.0
        %1337 = vmatprep.subr.mxu0 0.0
        %1338 = vmatpush1.msra.mxu0 0.0
        %1339 = vmatprep.subr.mxu0 0.0
        %1340 = vmatpush1.msra.mxu0 0.0
        %1341 = vmatprep.mubr.f32.mxu0 0.0
        %1342 = vmatmul.mubr.f32.gmra.mrb[0].mxu0 %v875
        %v1343 = vpop.f32.mrb[0].mxu0
        %v1344 = vadd.f32 %v1094, %v1343
        %v1345 = vpop.f32.mrb[0].mxu0
        %v1346 = vadd.f32 %v1098, %v1345
        %1347 = vdwg.mxu0
        %1348 = vmatprep.subr.mxu0 %v886
        %1349 = vmatpush1.msra.mxu0 %v885
        %1350 = vmatprep.subr.mxu0 %v898
        %1351 = vmatpush1.msra.mxu0 %v897
        %1352 = vmatprep.subr.mxu0 %v910
        %1353 = vmatpush1.msra.mxu0 %v909
        %1354 = vmatprep.subr.mxu0 %v922
        %1355 = vmatpush1.msra.mxu0 %v921
        %1356 = vmatprep.subr.mxu0 %v934
        %1357 = vmatpush1.msra.mxu0 %v933
        %1358 = vmatprep.subr.mxu0 %v946
        %1359 = vmatpush1.msra.mxu0 %v945
        %1360 = vmatprep.subr.mxu0 %v958
        %1361 = vmatpush1.msra.mxu0 %v957
        %1362 = vmatprep.subr.mxu0 %v970
        %1363 = vmatpush1.msra.mxu0 %v969
        %1364 = vmatprep.subr.mxu0 %v982
        %1365 = vmatpush1.msra.mxu0 %v981
        %1366 = vmatprep.subr.mxu0 %v994
        %1367 = vmatpush1.msra.mxu0 %v993
        %1368 = vmatprep.subr.mxu0 %v1006
        %1369 = vmatpush1.msra.mxu0 %v1005
        %1370 = vmatprep.subr.mxu0 %v1018
        %1371 = vmatpush1.msra.mxu0 %v1017
        %1372 = vmatprep.subr.mxu0 %v1030
        %1373 = vmatpush1.msra.mxu0 %v1029
        %1374 = vmatprep.subr.mxu0 %v1042
        %1375 = vmatpush1.msra.mxu0 %v1041
        %1376 = vmatprep.subr.mxu0 %v1054
        %1377 = vmatpush1.msra.mxu0 %v1053
        %1378 = vmatprep.subr.mxu0 %v1066
        %1379 = vmatpush1.msra.mxu0 %v1065
        %1380 = vmatprep.subr.mxu0 0.0
        %1381 = vmatpush1.msra.mxu0 0.0
        %1382 = vmatprep.subr.mxu0 0.0
        %1383 = vmatpush1.msra.mxu0 0.0
        %1384 = vmatprep.subr.mxu0 0.0
        %1385 = vmatpush1.msra.mxu0 0.0
        %1386 = vmatprep.subr.mxu0 0.0
        %1387 = vmatpush1.msra.mxu0 0.0
        %1388 = vmatprep.subr.mxu0 0.0
        %1389 = vmatpush1.msra.mxu0 0.0
        %1390 = vmatprep.subr.mxu0 0.0
        %1391 = vmatpush1.msra.mxu0 0.0
        %1392 = vmatprep.subr.mxu0 0.0
        %1393 = vmatpush1.msra.mxu0 0.0
        %1394 = vmatprep.subr.mxu0 0.0
        %1395 = vmatpush1.msra.mxu0 0.0
        %1396 = vmatprep.subr.mxu0 0.0
        %1397 = vmatpush1.msra.mxu0 0.0
        %1398 = vmatprep.subr.mxu0 0.0
        %1399 = vmatpush1.msra.mxu0 0.0
        %1400 = vmatprep.subr.mxu0 0.0
        %1401 = vmatpush1.msra.mxu0 0.0
        %1402 = vmatprep.subr.mxu0 0.0
        %1403 = vmatpush1.msra.mxu0 0.0
        %1404 = vmatprep.subr.mxu0 0.0
        %1405 = vmatpush1.msra.mxu0 0.0
        %1406 = vmatprep.subr.mxu0 0.0
        %1407 = vmatpush1.msra.mxu0 0.0
        %1408 = vmatprep.subr.mxu0 0.0
        %1409 = vmatpush1.msra.mxu0 0.0
        %1410 = vmatprep.subr.mxu0 0.0
        %1411 = vmatpush1.msra.mxu0 0.0
        %1412 = vmatprep.mubr.f32.mxu0 0.0
        %1413 = vmatmul.mubr.f32.gmra.mrb[0].mxu0 %v875
        %v1414 = vpop.f32.mrb[0].mxu0
        %v1415 = vadd.f32 %v1102, %v1414
        %v1416 = vpop.f32.mrb[0].mxu0
        %v1417 = vadd.f32 %v1106, %v1416
        %1418 = vdwg.mxu0
        %1419 = vmatprep.subr.mxu0 %v888
        %1420 = vmatpush1.msra.mxu0 %v887
        %1421 = vmatprep.subr.mxu0 %v900
        %1422 = vmatpush1.msra.mxu0 %v899
        %1423 = vmatprep.subr.mxu0 %v912
        %1424 = vmatpush1.msra.mxu0 %v911
        %1425 = vmatprep.subr.mxu0 %v924
        %1426 = vmatpush1.msra.mxu0 %v923
        %1427 = vmatprep.subr.mxu0 %v936
        %1428 = vmatpush1.msra.mxu0 %v935
        %1429 = vmatprep.subr.mxu0 %v948
        %1430 = vmatpush1.msra.mxu0 %v947
        %1431 = vmatprep.subr.mxu0 %v960
        %1432 = vmatpush1.msra.mxu0 %v959
        %1433 = vmatprep.subr.mxu0 %v972
        %1434 = vmatpush1.msra.mxu0 %v971
        %1435 = vmatprep.subr.mxu0 %v984
        %1436 = vmatpush1.msra.mxu0 %v983
        %1437 = vmatprep.subr.mxu0 %v996
        %1438 = vmatpush1.msra.mxu0 %v995
        %1439 = vmatprep.subr.mxu0 %v1008
        %1440 = vmatpush1.msra.mxu0 %v1007
        %1441 = vmatprep.subr.mxu0 %v1020
        %1442 = vmatpush1.msra.mxu0 %v1019
        %1443 = vmatprep.subr.mxu0 %v1032
        %1444 = vmatpush1.msra.mxu0 %v1031
        %1445 = vmatprep.subr.mxu0 %v1044
        %1446 = vmatpush1.msra.mxu0 %v1043
        %1447 = vmatprep.subr.mxu0 %v1056
        %1448 = vmatpush1.msra.mxu0 %v1055
        %1449 = vmatprep.subr.mxu0 %v1068
        %1450 = vmatpush1.msra.mxu0 %v1067
        %1451 = vmatprep.subr.mxu0 0.0
        %1452 = vmatpush1.msra.mxu0 0.0
        %1453 = vmatprep.subr.mxu0 0.0
        %1454 = vmatpush1.msra.mxu0 0.0
        %1455 = vmatprep.subr.mxu0 0.0
        %1456 = vmatpush1.msra.mxu0 0.0
        %1457 = vmatprep.subr.mxu0 0.0
        %1458 = vmatpush1.msra.mxu0 0.0
        %1459 = vmatprep.subr.mxu0 0.0
        %1460 = vmatpush1.msra.mxu0 0.0
        %1461 = vmatprep.subr.mxu0 0.0
        %1462 = vmatpush1.msra.mxu0 0.0
        %1463 = vmatprep.subr.mxu0 0.0
        %1464 = vmatpush1.msra.mxu0 0.0
        %1465 = vmatprep.subr.mxu0 0.0
        %1466 = vmatpush1.msra.mxu0 0.0
        %1467 = vmatprep.subr.mxu0 0.0
        %1468 = vmatpush1.msra.mxu0 0.0
        %1469 = vmatprep.subr.mxu0 0.0
        %1470 = vmatpush1.msra.mxu0 0.0
        %1471 = vmatprep.subr.mxu0 0.0
        %1472 = vmatpush1.msra.mxu0 0.0
        %1473 = vmatprep.subr.mxu0 0.0
        %1474 = vmatpush1.msra.mxu0 0.0
        %1475 = vmatprep.subr.mxu0 0.0
        %1476 = vmatpush1.msra.mxu0 0.0
        %1477 = vmatprep.subr.mxu0 0.0
        %1478 = vmatpush1.msra.mxu0 0.0
        %1479 = vmatprep.subr.mxu0 0.0
        %1480 = vmatpush1.msra.mxu0 0.0
        %1481 = vmatprep.subr.mxu0 0.0
        %1482 = vmatpush1.msra.mxu0 0.0
        %1483 = vmatprep.mubr.f32.mxu0 0.0
        %1484 = vmatmul.mubr.f32.gmra.mrb[0].mxu0 %v875
        %v1485 = vpop.f32.mrb[0].mxu0
        %v1486 = vadd.f32 %v1110, %v1485
        %v1487 = vpop.f32.mrb[0].mxu0
        %v1488 = vadd.f32 %v1114, %v1487
        %1489 = vdwg.mxu0
        %1490 = vmatprep.subr.mxu0 %v890
        %1491 = vmatpush1.msra.mxu0 %v889
        %1492 = vmatprep.subr.mxu0 %v902
        %1493 = vmatpush1.msra.mxu0 %v901
        %1494 = vmatprep.subr.mxu0 %v914
        %1495 = vmatpush1.msra.mxu0 %v913
        %1496 = vmatprep.subr.mxu0 %v926
        %1497 = vmatpush1.msra.mxu0 %v925
        %1498 = vmatprep.subr.mxu0 %v938
        %1499 = vmatpush1.msra.mxu0 %v937
        %1500 = vmatprep.subr.mxu0 %v950
        %1501 = vmatpush1.msra.mxu0 %v949
        %1502 = vmatprep.subr.mxu0 %v962
        %1503 = vmatpush1.msra.mxu0 %v961
        %1504 = vmatprep.subr.mxu0 %v974
        %1505 = vmatpush1.msra.mxu0 %v973
        %1506 = vmatprep.subr.mxu0 %v986
        %1507 = vmatpush1.msra.mxu0 %v985
        %1508 = vmatprep.subr.mxu0 %v998
        %1509 = vmatpush1.msra.mxu0 %v997
        %1510 = vmatprep.subr.mxu0 %v1010
        %1511 = vmatpush1.msra.mxu0 %v1009
        %1512 = vmatprep.subr.mxu0 %v1022
        %1513 = vmatpush1.msra.mxu0 %v1021
        %1514 = vmatprep.subr.mxu0 %v1034
        %1515 = vmatpush1.msra.mxu0 %v1033
        %1516 = vmatprep.subr.mxu0 %v1046
        %1517 = vmatpush1.msra.mxu0 %v1045
        %1518 = vmatprep.subr.mxu0 %v1058
        %1519 = vmatpush1.msra.mxu0 %v1057
        %1520 = vmatprep.subr.mxu0 %v1070
        %1521 = vmatpush1.msra.mxu0 %v1069
        %1522 = vmatprep.subr.mxu0 0.0
        %1523 = vmatpush1.msra.mxu0 0.0
        %1524 = vmatprep.subr.mxu0 0.0
        %1525 = vmatpush1.msra.mxu0 0.0
        %1526 = vmatprep.subr.mxu0 0.0
        %1527 = vmatpush1.msra.mxu0 0.0
        %1528 = vmatprep.subr.mxu0 0.0
        %1529 = vmatpush1.msra.mxu0 0.0
        %1530 = vmatprep.subr.mxu0 0.0
        %1531 = vmatpush1.msra.mxu0 0.0
        %1532 = vmatprep.subr.mxu0 0.0
        %1533 = vmatpush1.msra.mxu0 0.0
        %1534 = vmatprep.subr.mxu0 0.0
        %1535 = vmatpush1.msra.mxu0 0.0
        %1536 = vmatprep.subr.mxu0 0.0
        %1537 = vmatpush1.msra.mxu0 0.0
        %1538 = vmatprep.subr.mxu0 0.0
        %1539 = vmatpush1.msra.mxu0 0.0
        %1540 = vmatprep.subr.mxu0 0.0
        %1541 = vmatpush1.msra.mxu0 0.0
        %1542 = vmatprep.subr.mxu0 0.0
        %1543 = vmatpush1.msra.mxu0 0.0
        %1544 = vmatprep.subr.mxu0 0.0
        %1545 = vmatpush1.msra.mxu0 0.0
        %1546 = vmatprep.subr.mxu0 0.0
        %1547 = vmatpush1.msra.mxu0 0.0
        %1548 = vmatprep.subr.mxu0 0.0
        %1549 = vmatpush1.msra.mxu0 0.0
        %1550 = vmatprep.subr.mxu0 0.0
        %1551 = vmatpush1.msra.mxu0 0.0
        %1552 = vmatprep.subr.mxu0 0.0
        %1553 = vmatpush1.msra.mxu0 0.0
        %1554 = vmatprep.mubr.f32.mxu0 0.0
        %1555 = vmatmul.mubr.f32.gmra.mrb[0].mxu0 %v875
        %v1556 = vpop.f32.mrb[0].mxu0
        %v1557 = vadd.f32 %v1118, %v1556
        %v1558 = vpop.f32.mrb[0].mxu0
        %v1559 = vadd.f32 %v1122, %v1558
        %1560 = vdwg.mxu0
        %1561 = vmatprep.subr.mxu0 0.0
        %1562 = vmatpush1.xpose.msra.mxu0 %v1344
        %1563 = vmatprep.subr.mxu0 0.0
        %1564 = vmatpush1.xpose.msra.mxu0 0.0
        %1565 = vmatprep.subr.mxu0 0.0
        %1566 = vmatpush1.xpose.msra.mxu0 0.0
        %1567 = vmatprep.subr.mxu0 0.0
        %1568 = vmatpush1.xpose.msra.mxu0 0.0
        %1569 = vmatprep.subr.mxu0 0.0
        %1570 = vmatpush1.xpose.msra.mxu0 0.0
        %1571 = vmatprep.subr.mxu0 0.0
        %1572 = vmatpush1.xpose.msra.mxu0 0.0
        %1573 = vmatprep.subr.mxu0 0.0
        %1574 = vmatpush1.xpose.msra.mxu0 0.0
        %1575 = vmatprep.subr.mxu0 0.0
        %1576 = vmatpush1.xpose.msra.mxu0 0.0
        %1577 = vmatprep.subr.mxu0 0.0
        %1578 = vmatpush1.xpose.msra.mxu0 0.0
        %1579 = vmatprep.subr.mxu0 0.0
        %1580 = vmatpush1.xpose.msra.mxu0 0.0
        %1581 = vmatprep.subr.mxu0 0.0
        %1582 = vmatpush1.xpose.msra.mxu0 0.0
        %1583 = vmatprep.subr.mxu0 0.0
        %1584 = vmatpush1.xpose.msra.mxu0 0.0
        %1585 = vmatprep.subr.mxu0 0.0
        %1586 = vmatpush1.xpose.msra.mxu0 0.0
        %1587 = vmatprep.subr.mxu0 0.0
        %1588 = vmatpush1.xpose.msra.mxu0 0.0
        %1589 = vmatprep.subr.mxu0 0.0
        %1590 = vmatpush1.xpose.msra.mxu0 0.0
        %1591 = vmatprep.subr.mxu0 0.0
        %1592 = vmatpush1.xpose.msra.mxu0 0.0
        %1593 = vmatprep.subr.mxu0 0.0
        %1594 = vmatpush1.xpose.msra.mxu0 0.0
        %1595 = vmatprep.subr.mxu0 0.0
        %1596 = vmatpush1.xpose.msra.mxu0 0.0
        %1597 = vmatprep.subr.mxu0 0.0
        %1598 = vmatpush1.xpose.msra.mxu0 0.0
        %1599 = vmatprep.subr.mxu0 0.0
        %1600 = vmatpush1.xpose.msra.mxu0 0.0
        %1601 = vmatprep.subr.mxu0 0.0
        %1602 = vmatpush1.xpose.msra.mxu0 0.0
        %1603 = vmatprep.subr.mxu0 0.0
        %1604 = vmatpush1.xpose.msra.mxu0 0.0
        %1605 = vmatprep.subr.mxu0 0.0
        %1606 = vmatpush1.xpose.msra.mxu0 0.0
        %1607 = vmatprep.subr.mxu0 0.0
        %1608 = vmatpush1.xpose.msra.mxu0 0.0
        %1609 = vmatprep.subr.mxu0 0.0
        %1610 = vmatpush1.xpose.msra.mxu0 0.0
        %1611 = vmatprep.subr.mxu0 0.0
        %1612 = vmatpush1.xpose.msra.mxu0 0.0
        %1613 = vmatprep.subr.mxu0 0.0
        %1614 = vmatpush1.xpose.msra.mxu0 0.0
        %1615 = vmatprep.subr.mxu0 0.0
        %1616 = vmatpush1.xpose.msra.mxu0 0.0
        %1617 = vmatprep.subr.mxu0 0.0
        %1618 = vmatpush1.xpose.msra.mxu0 0.0
        %1619 = vmatprep.subr.mxu0 0.0
        %1620 = vmatpush1.xpose.msra.mxu0 0.0
        %1621 = vmatprep.subr.mxu0 0.0
        %1622 = vmatpush1.xpose.msra.mxu0 0.0
        %1623 = vmatprep.subr.mxu0 0.0
        %1624 = vmatpush1.xpose.msra.mxu0 0.0
        %1625 = vmatprep.mubr.f32.mxu0 0.0
        %1626 = vmatmul.mubr.f32.gmra.mrb[0].mxu0 %v1202
        %v1627 = vpop.f32.mrb[0].mxu0
        %v1628 = vadd.f32 0.0, %v1627
        %v1629 = vpop.f32.mrb[0].mxu0
        %1630 = vdwg.mxu0
        %vm1631 = vcmask 64512
        %v1632 = vsel %vm1631, %v1628, -inf
        %1633 = vmax.xlane.f32.xlu0 %v1632
        %v1634 = vpop.xlane.xlu0 %1633
        %v1635 = vsub.f32 %v1628, %v1634
        %v1636 = vmul.f32 %v1635, 1.442695
        %v1637 = vpow.pop %v1636
        %v1638 = vsel %vm1631, %v1637, 0.0
        %1639 = vadd.xlane.f32.xlu0 %v1638
        %v1640 = vpop.xlane.xlu0 %1639
        %v1641 = vrcp.pop %v1640
        %v1642 = vmul.f32 %v1637, %v1641
        %v1644 = vsel %vm1631, %v1642, 0
        %1646 = vmatprep.subr.mxu0 0.0
        %1647 = vmatpush1.msra.mxu0 %v1486
        %1648 = vmatprep.subr.mxu0 0.0
        %1649 = vmatpush1.msra.mxu0 0.0
        %1650 = vmatprep.subr.mxu0 0.0
        %1651 = vmatpush1.msra.mxu0 0.0
        %1652 = vmatprep.subr.mxu0 0.0
        %1653 = vmatpush1.msra.mxu0 0.0
        %1654 = vmatprep.subr.mxu0 0.0
        %1655 = vmatpush1.msra.mxu0 0.0
        %1656 = vmatprep.subr.mxu0 0.0
        %1657 = vmatpush1.msra.mxu0 0.0
        %1658 = vmatprep.subr.mxu0 0.0
        %1659 = vmatpush1.msra.mxu0 0.0
        %1660 = vmatprep.subr.mxu0 0.0
        %1661 = vmatpush1.msra.mxu0 0.0
        %1662 = vmatprep.subr.mxu0 0.0
        %1663 = vmatpush1.msra.mxu0 0.0
        %1664 = vmatprep.subr.mxu0 0.0
        %1665 = vmatpush1.msra.mxu0 0.0
        %1666 = vmatprep.subr.mxu0 0.0
        %1667 = vmatpush1.msra.mxu0 0.0
        %1668 = vmatprep.subr.mxu0 0.0
        %1669 = vmatpush1.msra.mxu0 0.0
        %1670 = vmatprep.subr.mxu0 0.0
        %1671 = vmatpush1.msra.mxu0 0.0
        %1672 = vmatprep.subr.mxu0 0.0
        %1673 = vmatpush1.msra.mxu0 0.0
        %1674 = vmatprep.subr.mxu0 0.0
        %1675 = vmatpush1.msra.mxu0 0.0
        %1676 = vmatprep.subr.mxu0 0.0
        %1677 = vmatpush1.msra.mxu0 0.0
        %1678 = vmatprep.subr.mxu0 0.0
        %1679 = vmatpush1.msra.mxu0 0.0
        %1680 = vmatprep.subr.mxu0 0.0
        %1681 = vmatpush1.msra.mxu0 0.0
        %1682 = vmatprep.subr.mxu0 0.0
        %1683 = vmatpush1.msra.mxu0 0.0
        %1684 = vmatprep.subr.mxu0 0.0
        %1685 = vmatpush1.msra.mxu0 0.0
        %1686 = vmatprep.subr.mxu0 0.0
        %1687 = vmatpush1.msra.mxu0 0.0
        %1688 = vmatprep.subr.mxu0 0.0
        %1689 = vmatpush1.msra.mxu0 0.0
        %1690 = vmatprep.subr.mxu0 0.0
        %1691 = vmatpush1.msra.mxu0 0.0
        %1692 = vmatprep.subr.mxu0 0.0
        %1693 = vmatpush1.msra.mxu0 0.0
        %1694 = vmatprep.subr.mxu0 0.0
        %1695 = vmatpush1.msra.mxu0 0.0
        %1696 = vmatprep.subr.mxu0 0.0
        %1697 = vmatpush1.msra.mxu0 0.0
        %1698 = vmatprep.subr.mxu0 0.0
        %1699 = vmatpush1.msra.mxu0 0.0
        %1700 = vmatprep.subr.mxu0 0.0
        %1701 = vmatpush1.msra.mxu0 0.0
        %1702 = vmatprep.subr.mxu0 0.0
        %1703 = vmatpush1.msra.mxu0 0.0
        %1704 = vmatprep.subr.mxu0 0.0
        %1705 = vmatpush1.msra.mxu0 0.0
        %1706 = vmatprep.subr.mxu0 0.0
        %1707 = vmatpush1.msra.mxu0 0.0
        %1708 = vmatprep.subr.mxu0 0.0
        %1709 = vmatpush1.msra.mxu0 0.0
        %1710 = vmatprep.mubr.f32.mxu0 0.0
        %1711 = vmatmul.mubr.f32.gmra.mrb[0].mxu0 %v1644
        %v1712 = vpop.f32.mrb[0].mxu0
        %v1713 = vadd.f32 0.0, %v1712
        %v1714 = vpop.f32.mrb[0].mxu0
        %1715 = vdwg.mxu0
        %1716 = vmatprep.subr.mxu0 0.0
        %1717 = vmatpush1.xpose.msra.mxu0 %v1346
        %1718 = vmatprep.subr.mxu0 0.0
        %1719 = vmatpush1.xpose.msra.mxu0 0.0
        %1720 = vmatprep.subr.mxu0 0.0
        %1721 = vmatpush1.xpose.msra.mxu0 0.0
        %1722 = vmatprep.subr.mxu0 0.0
        %1723 = vmatpush1.xpose.msra.mxu0 0.0
        %1724 = vmatprep.subr.mxu0 0.0
        %1725 = vmatpush1.xpose.msra.mxu0 0.0
        %1726 = vmatprep.subr.mxu0 0.0
        %1727 = vmatpush1.xpose.msra.mxu0 0.0
        %1728 = vmatprep.subr.mxu0 0.0
        %1729 = vmatpush1.xpose.msra.mxu0 0.0
        %1730 = vmatprep.subr.mxu0 0.0
        %1731 = vmatpush1.xpose.msra.mxu0 0.0
        %1732 = vmatprep.subr.mxu0 0.0
        %1733 = vmatpush1.xpose.msra.mxu0 0.0
        %1734 = vmatprep.subr.mxu0 0.0
        %1735 = vmatpush1.xpose.msra.mxu0 0.0
        %1736 = vmatprep.subr.mxu0 0.0
        %1737 = vmatpush1.xpose.msra.mxu0 0.0
        %1738 = vmatprep.subr.mxu0 0.0
        %1739 = vmatpush1.xpose.msra.mxu0 0.0
        %1740 = vmatprep.subr.mxu0 0.0
        %1741 = vmatpush1.xpose.msra.mxu0 0.0
        %1742 = vmatprep.subr.mxu0 0.0
        %1743 = vmatpush1.xpose.msra.mxu0 0.0
        %1744 = vmatprep.subr.mxu0 0.0
        %1745 = vmatpush1.xpose.msra.mxu0 0.0
        %1746 = vmatprep.subr.mxu0 0.0
        %1747 = vmatpush1.xpose.msra.mxu0 0.0
        %1748 = vmatprep.subr.mxu0 0.0
        %1749 = vmatpush1.xpose.msra.mxu0 0.0
        %1750 = vmatprep.subr.mxu0 0.0
        %1751 = vmatpush1.xpose.msra.mxu0 0.0
        %1752 = vmatprep.subr.mxu0 0.0
        %1753 = vmatpush1.xpose.msra.mxu0 0.0
        %1754 = vmatprep.subr.mxu0 0.0
        %1755 = vmatpush1.xpose.msra.mxu0 0.0
        %1756 = vmatprep.subr.mxu0 0.0
        %1757 = vmatpush1.xpose.msra.mxu0 0.0
        %1758 = vmatprep.subr.mxu0 0.0
        %1759 = vmatpush1.xpose.msra.mxu0 0.0
        %1760 = vmatprep.subr.mxu0 0.0
        %1761 = vmatpush1.xpose.msra.mxu0 0.0
        %1762 = vmatprep.subr.mxu0 0.0
        %1763 = vmatpush1.xpose.msra.mxu0 0.0
        %1764 = vmatprep.subr.mxu0 0.0
        %1765 = vmatpush1.xpose.msra.mxu0 0.0
        %1766 = vmatprep.subr.mxu0 0.0
        %1767 = vmatpush1.xpose.msra.mxu0 0.0
        %1768 = vmatprep.subr.mxu0 0.0
        %1769 = vmatpush1.xpose.msra.mxu0 0.0
        %1770 = vmatprep.subr.mxu0 0.0
        %1771 = vmatpush1.xpose.msra.mxu0 0.0
        %1772 = vmatprep.subr.mxu0 0.0
        %1773 = vmatpush1.xpose.msra.mxu0 0.0
        %1774 = vmatprep.subr.mxu0 0.0
        %1775 = vmatpush1.xpose.msra.mxu0 0.0
        %1776 = vmatprep.subr.mxu0 0.0
        %1777 = vmatpush1.xpose.msra.mxu0 0.0
        %1778 = vmatprep.subr.mxu0 0.0
        %1779 = vmatpush1.xpose.msra.mxu0 0.0
        %1780 = vmatprep.mubr.f32.mxu0 0.0
        %1781 = vmatmul.mubr.f32.gmra.mrb[0].mxu0 %v1204
        %v1782 = vpop.f32.mrb[0].mxu0
        %v1783 = vadd.f32 0.0, %v1782
        %v1784 = vpop.f32.mrb[0].mxu0
        %1785 = vdwg.mxu0
        %v1786 = vsel %vm1631, %v1783, -inf
        %1787 = vmax.xlane.f32.xlu0 %v1786
        %v1788 = vpop.xlane.xlu0 %1787
        %v1789 = vsub.f32 %v1783, %v1788
        %v1790 = vmul.f32 %v1789, 1.442695
        %v1791 = vpow.pop %v1790
        %v1792 = vsel %vm1631, %v1791, 0.0
        %1793 = vadd.xlane.f32.xlu0 %v1792
        %v1794 = vpop.xlane.xlu0 %1793
        %v1795 = vrcp.pop %v1794
        %v1796 = vmul.f32 %v1791, %v1795
        %v1798 = vsel %vm1631, %v1796, 0
        %1800 = vmatprep.subr.mxu0 0.0
        %1801 = vmatpush1.msra.mxu0 %v1488
        %1802 = vmatprep.subr.mxu0 0.0
        %1803 = vmatpush1.msra.mxu0 0.0
        %1804 = vmatprep.subr.mxu0 0.0
        %1805 = vmatpush1.msra.mxu0 0.0
        %1806 = vmatprep.subr.mxu0 0.0
        %1807 = vmatpush1.msra.mxu0 0.0
        %1808 = vmatprep.subr.mxu0 0.0
        %1809 = vmatpush1.msra.mxu0 0.0
        %1810 = vmatprep.subr.mxu0 0.0
        %1811 = vmatpush1.msra.mxu0 0.0
        %1812 = vmatprep.subr.mxu0 0.0
        %1813 = vmatpush1.msra.mxu0 0.0
        %1814 = vmatprep.subr.mxu0 0.0
        %1815 = vmatpush1.msra.mxu0 0.0
        %1816 = vmatprep.subr.mxu0 0.0
        %1817 = vmatpush1.msra.mxu0 0.0
        %1818 = vmatprep.subr.mxu0 0.0
        %1819 = vmatpush1.msra.mxu0 0.0
        %1820 = vmatprep.subr.mxu0 0.0
        %1821 = vmatpush1.msra.mxu0 0.0
        %1822 = vmatprep.subr.mxu0 0.0
        %1823 = vmatpush1.msra.mxu0 0.0
        %1824 = vmatprep.subr.mxu0 0.0
        %1825 = vmatpush1.msra.mxu0 0.0
        %1826 = vmatprep.subr.mxu0 0.0
        %1827 = vmatpush1.msra.mxu0 0.0
        %1828 = vmatprep.subr.mxu0 0.0
        %1829 = vmatpush1.msra.mxu0 0.0
        %1830 = vmatprep.subr.mxu0 0.0
        %1831 = vmatpush1.msra.mxu0 0.0
        %1832 = vmatprep.subr.mxu0 0.0
        %1833 = vmatpush1.msra.mxu0 0.0
        %1834 = vmatprep.subr.mxu0 0.0
        %1835 = vmatpush1.msra.mxu0 0.0
        %1836 = vmatprep.subr.mxu0 0.0
        %1837 = vmatpush1.msra.mxu0 0.0
        %1838 = vmatprep.subr.mxu0 0.0
        %1839 = vmatpush1.msra.mxu0 0.0
        %1840 = vmatprep.subr.mxu0 0.0
        %1841 = vmatpush1.msra.mxu0 0.0
        %1842 = vmatprep.subr.mxu0 0.0
        %1843 = vmatpush1.msra.mxu0 0.0
        %1844 = vmatprep.subr.mxu0 0.0
        %1845 = vmatpush1.msra.mxu0 0.0
        %1846 = vmatprep.subr.mxu0 0.0
        %1847 = vmatpush1.msra.mxu0 0.0
        %1848 = vmatprep.subr.mxu0 0.0
        %1849 = vmatpush1.msra.mxu0 0.0
        %1850 = vmatprep.subr.mxu0 0.0
        %1851 = vmatpush1.msra.mxu0 0.0
        %1852 = vmatprep.subr.mxu0 0.0
        %1853 = vmatpush1.msra.mxu0 0.0
        %1854 = vmatprep.subr.mxu0 0.0
        %1855 = vmatpush1.msra.mxu0 0.0
        %1856 = vmatprep.subr.mxu0 0.0
        %1857 = vmatpush1.msra.mxu0 0.0
        %1858 = vmatprep.subr.mxu0 0.0
        %1859 = vmatpush1.msra.mxu0 0.0
        %1860 = vmatprep.subr.mxu0 0.0
        %1861 = vmatpush1.msra.mxu0 0.0
        %1862 = vmatprep.subr.mxu0 0.0
        %1863 = vmatpush1.msra.mxu0 0.0
        %1864 = vmatprep.mubr.f32.mxu0 0.0
        %1865 = vmatmul.mubr.f32.gmra.mrb[0].mxu0 %v1798
        %v1866 = vpop.f32.mrb[0].mxu0
        %v1867 = vadd.f32 0.0, %v1866
        %v1868 = vpop.f32.mrb[0].mxu0
        %1869 = vdwg.mxu0
        %1870 = vmatprep.subr.mxu0 0.0
        %1871 = vmatpush1.xpose.msra.mxu0 %v1415
        %1872 = vmatprep.subr.mxu0 0.0
        %1873 = vmatpush1.xpose.msra.mxu0 0.0
        %1874 = vmatprep.subr.mxu0 0.0
        %1875 = vmatpush1.xpose.msra.mxu0 0.0
        %1876 = vmatprep.subr.mxu0 0.0
        %1877 = vmatpush1.xpose.msra.mxu0 0.0
        %1878 = vmatprep.subr.mxu0 0.0
        %1879 = vmatpush1.xpose.msra.mxu0 0.0
        %1880 = vmatprep.subr.mxu0 0.0
        %1881 = vmatpush1.xpose.msra.mxu0 0.0
        %1882 = vmatprep.subr.mxu0 0.0
        %1883 = vmatpush1.xpose.msra.mxu0 0.0
        %1884 = vmatprep.subr.mxu0 0.0
        %1885 = vmatpush1.xpose.msra.mxu0 0.0
        %1886 = vmatprep.subr.mxu0 0.0
        %1887 = vmatpush1.xpose.msra.mxu0 0.0
        %1888 = vmatprep.subr.mxu0 0.0
        %1889 = vmatpush1.xpose.msra.mxu0 0.0
        %1890 = vmatprep.subr.mxu0 0.0
        %1891 = vmatpush1.xpose.msra.mxu0 0.0
        %1892 = vmatprep.subr.mxu0 0.0
        %1893 = vmatpush1.xpose.msra.mxu0 0.0
        %1894 = vmatprep.subr.mxu0 0.0
        %1895 = vmatpush1.xpose.msra.mxu0 0.0
        %1896 = vmatprep.subr.mxu0 0.0
        %1897 = vmatpush1.xpose.msra.mxu0 0.0
        %1898 = vmatprep.subr.mxu0 0.0
        %1899 = vmatpush1.xpose.msra.mxu0 0.0
        %1900 = vmatprep.subr.mxu0 0.0
        %1901 = vmatpush1.xpose.msra.mxu0 0.0
        %1902 = vmatprep.subr.mxu0 0.0
        %1903 = vmatpush1.xpose.msra.mxu0 0.0
        %1904 = vmatprep.subr.mxu0 0.0
        %1905 = vmatpush1.xpose.msra.mxu0 0.0
        %1906 = vmatprep.subr.mxu0 0.0
        %1907 = vmatpush1.xpose.msra.mxu0 0.0
        %1908 = vmatprep.subr.mxu0 0.0
        %1909 = vmatpush1.xpose.msra.mxu0 0.0
        %1910 = vmatprep.subr.mxu0 0.0
        %1911 = vmatpush1.xpose.msra.mxu0 0.0
        %1912 = vmatprep.subr.mxu0 0.0
        %1913 = vmatpush1.xpose.msra.mxu0 0.0
        %1914 = vmatprep.subr.mxu0 0.0
        %1915 = vmatpush1.xpose.msra.mxu0 0.0
        %1916 = vmatprep.subr.mxu0 0.0
        %1917 = vmatpush1.xpose.msra.mxu0 0.0
        %1918 = vmatprep.subr.mxu0 0.0
        %1919 = vmatpush1.xpose.msra.mxu0 0.0
        %1920 = vmatprep.subr.mxu0 0.0
        %1921 = vmatpush1.xpose.msra.mxu0 0.0
        %1922 = vmatprep.subr.mxu0 0.0
        %1923 = vmatpush1.xpose.msra.mxu0 0.0
        %1924 = vmatprep.subr.mxu0 0.0
        %1925 = vmatpush1.xpose.msra.mxu0 0.0
        %1926 = vmatprep.subr.mxu0 0.0
        %1927 = vmatpush1.xpose.msra.mxu0 0.0
        %1928 = vmatprep.subr.mxu0 0.0
        %1929 = vmatpush1.xpose.msra.mxu0 0.0
        %1930 = vmatprep.subr.mxu0 0.0
        %1931 = vmatpush1.xpose.msra.mxu0 0.0
        %1932 = vmatprep.subr.mxu0 0.0
        %1933 = vmatpush1.xpose.msra.mxu0 0.0
        %1934 = vmatprep.mubr.f32.mxu0 0.0
        %1935 = vmatmul.mubr.f32.gmra.mrb[0].mxu0 %v1273
        %v1936 = vpop.f32.mrb[0].mxu0
        %v1937 = vadd.f32 0.0, %v1936
        %v1938 = vpop.f32.mrb[0].mxu0
        %1939 = vdwg.mxu0
        %v1940 = vsel %vm1631, %v1937, -inf
        %1941 = vmax.xlane.f32.xlu0 %v1940
        %v1942 = vpop.xlane.xlu0 %1941
        %v1943 = vsub.f32 %v1937, %v1942
        %v1944 = vmul.f32 %v1943, 1.442695
        %v1945 = vpow.pop %v1944
        %v1946 = vsel %vm1631, %v1945, 0.0
        %1947 = vadd.xlane.f32.xlu0 %v1946
        %v1948 = vpop.xlane.xlu0 %1947
        %v1949 = vrcp.pop %v1948
        %v1950 = vmul.f32 %v1945, %v1949
        %v1952 = vsel %vm1631, %v1950, 0
        %1954 = vmatprep.subr.mxu0 0.0
        %1955 = vmatpush1.msra.mxu0 %v1557
        %1956 = vmatprep.subr.mxu0 0.0
        %1957 = vmatpush1.msra.mxu0 0.0
        %1958 = vmatprep.subr.mxu0 0.0
        %1959 = vmatpush1.msra.mxu0 0.0
        %1960 = vmatprep.subr.mxu0 0.0
        %1961 = vmatpush1.msra.mxu0 0.0
        %1962 = vmatprep.subr.mxu0 0.0
        %1963 = vmatpush1.msra.mxu0 0.0
        %1964 = vmatprep.subr.mxu0 0.0
        %1965 = vmatpush1.msra.mxu0 0.0
        %1966 = vmatprep.subr.mxu0 0.0
        %1967 = vmatpush1.msra.mxu0 0.0
        %1968 = vmatprep.subr.mxu0 0.0
        %1969 = vmatpush1.msra.mxu0 0.0
        %1970 = vmatprep.subr.mxu0 0.0
        %1971 = vmatpush1.msra.mxu0 0.0
        %1972 = vmatprep.subr.mxu0 0.0
        %1973 = vmatpush1.msra.mxu0 0.0
        %1974 = vmatprep.subr.mxu0 0.0
        %1975 = vmatpush1.msra.mxu0 0.0
        %1976 = vmatprep.subr.mxu0 0.0
        %1977 = vmatpush1.msra.mxu0 0.0
        %1978 = vmatprep.subr.mxu0 0.0
        %1979 = vmatpush1.msra.mxu0 0.0
        %1980 = vmatprep.subr.mxu0 0.0
        %1981 = vmatpush1.msra.mxu0 0.0
        %1982 = vmatprep.subr.mxu0 0.0
        %1983 = vmatpush1.msra.mxu0 0.0
        %1984 = vmatprep.subr.mxu0 0.0
        %1985 = vmatpush1.msra.mxu0 0.0
        %1986 = vmatprep.subr.mxu0 0.0
        %1987 = vmatpush1.msra.mxu0 0.0
        %1988 = vmatprep.subr.mxu0 0.0
        %1989 = vmatpush1.msra.mxu0 0.0
        %1990 = vmatprep.subr.mxu0 0.0
        %1991 = vmatpush1.msra.mxu0 0.0
        %1992 = vmatprep.subr.mxu0 0.0
        %1993 = vmatpush1.msra.mxu0 0.0
        %1994 = vmatprep.subr.mxu0 0.0
        %1995 = vmatpush1.msra.mxu0 0.0
        %1996 = vmatprep.subr.mxu0 0.0
        %1997 = vmatpush1.msra.mxu0 0.0
        %1998 = vmatprep.subr.mxu0 0.0
        %1999 = vmatpush1.msra.mxu0 0.0
        %2000 = vmatprep.subr.mxu0 0.0
        %2001 = vmatpush1.msra.mxu0 0.0
        %2002 = vmatprep.subr.mxu0 0.0
        %2003 = vmatpush1.msra.mxu0 0.0
        %2004 = vmatprep.subr.mxu0 0.0
        %2005 = vmatpush1.msra.mxu0 0.0
        %2006 = vmatprep.subr.mxu0 0.0
        %2007 = vmatpush1.msra.mxu0 0.0
        %2008 = vmatprep.subr.mxu0 0.0
        %2009 = vmatpush1.msra.mxu0 0.0
        %2010 = vmatprep.subr.mxu0 0.0
        %2011 = vmatpush1.msra.mxu0 0.0
        %2012 = vmatprep.subr.mxu0 0.0
        %2013 = vmatpush1.msra.mxu0 0.0
        %2014 = vmatprep.subr.mxu0 0.0
        %2015 = vmatpush1.msra.mxu0 0.0
        %2016 = vmatprep.subr.mxu0 0.0
        %2017 = vmatpush1.msra.mxu0 0.0
        %2018 = vmatprep.mubr.f32.mxu0 0.0
        %2019 = vmatmul.mubr.f32.gmra.mrb[0].mxu0 %v1952
        %v2020 = vpop.f32.mrb[0].mxu0
        %v2021 = vadd.f32 0.0, %v2020
        %v2022 = vpop.f32.mrb[0].mxu0
        %2023 = vdwg.mxu0
        %2024 = vmatprep.subr.mxu0 0.0
        %2025 = vmatpush1.xpose.msra.mxu0 %v1417
        %2026 = vmatprep.subr.mxu0 0.0
        %2027 = vmatpush1.xpose.msra.mxu0 0.0
        %2028 = vmatprep.subr.mxu0 0.0
        %2029 = vmatpush1.xpose.msra.mxu0 0.0
        %2030 = vmatprep.subr.mxu0 0.0
        %2031 = vmatpush1.xpose.msra.mxu0 0.0
        %2032 = vmatprep.subr.mxu0 0.0
        %2033 = vmatpush1.xpose.msra.mxu0 0.0
        %2034 = vmatprep.subr.mxu0 0.0
        %2035 = vmatpush1.xpose.msra.mxu0 0.0
        %2036 = vmatprep.subr.mxu0 0.0
        %2037 = vmatpush1.xpose.msra.mxu0 0.0
        %2038 = vmatprep.subr.mxu0 0.0
        %2039 = vmatpush1.xpose.msra.mxu0 0.0
        %2040 = vmatprep.subr.mxu0 0.0
        %2041 = vmatpush1.xpose.msra.mxu0 0.0
        %2042 = vmatprep.subr.mxu0 0.0
        %2043 = vmatpush1.xpose.msra.mxu0 0.0
        %2044 = vmatprep.subr.mxu0 0.0
        %2045 = vmatpush1.xpose.msra.mxu0 0.0
        %2046 = vmatprep.subr.mxu0 0.0
        %2047 = vmatpush1.xpose.msra.mxu0 0.0
        %2048 = vmatprep.subr.mxu0 0.0
        %2049 = vmatpush1.xpose.msra.mxu0 0.0
        %2050 = vmatprep.subr.mxu0 0.0
        %2051 = vmatpush1.xpose.msra.mxu0 0.0
        %2052 = vmatprep.subr.mxu0 0.0
        %2053 = vmatpush1.xpose.msra.mxu0 0.0
        %2054 = vmatprep.subr.mxu0 0.0
        %2055 = vmatpush1.xpose.msra.mxu0 0.0
        %2056 = vmatprep.subr.mxu0 0.0
        %2057 = vmatpush1.xpose.msra.mxu0 0.0
        %2058 = vmatprep.subr.mxu0 0.0
        %2059 = vmatpush1.xpose.msra.mxu0 0.0
        %2060 = vmatprep.subr.mxu0 0.0
        %2061 = vmatpush1.xpose.msra.mxu0 0.0
        %2062 = vmatprep.subr.mxu0 0.0
        %2063 = vmatpush1.xpose.msra.mxu0 0.0
        %2064 = vmatprep.subr.mxu0 0.0
        %2065 = vmatpush1.xpose.msra.mxu0 0.0
        %2066 = vmatprep.subr.mxu0 0.0
        %2067 = vmatpush1.xpose.msra.mxu0 0.0
        %2068 = vmatprep.subr.mxu0 0.0
        %2069 = vmatpush1.xpose.msra.mxu0 0.0
        %2070 = vmatprep.subr.mxu0 0.0
        %2071 = vmatpush1.xpose.msra.mxu0 0.0
        %2072 = vmatprep.subr.mxu0 0.0
        %2073 = vmatpush1.xpose.msra.mxu0 0.0
        %2074 = vmatprep.subr.mxu0 0.0
        %2075 = vmatpush1.xpose.msra.mxu0 0.0
        %2076 = vmatprep.subr.mxu0 0.0
        %2077 = vmatpush1.xpose.msra.mxu0 0.0
        %2078 = vmatprep.subr.mxu0 0.0
        %2079 = vmatpush1.xpose.msra.mxu0 0.0
        %2080 = vmatprep.subr.mxu0 0.0
        %2081 = vmatpush1.xpose.msra.mxu0 0.0
        %2082 = vmatprep.subr.mxu0 0.0
        %2083 = vmatpush1.xpose.msra.mxu0 0.0
        %2084 = vmatprep.subr.mxu0 0.0
        %2085 = vmatpush1.xpose.msra.mxu0 0.0
        %2086 = vmatprep.subr.mxu0 0.0
        %2087 = vmatpush1.xpose.msra.mxu0 0.0
        %2088 = vmatprep.mubr.f32.mxu0 0.0
        %2089 = vmatmul.mubr.f32.gmra.mrb[0].mxu0 %v1275
        %v2090 = vpop.f32.mrb[0].mxu0
        %v2091 = vadd.f32 0.0, %v2090
        %v2092 = vpop.f32.mrb[0].mxu0
        %2093 = vdwg.mxu0
        %v2094 = vsel %vm1631, %v2091, -inf
        %2095 = vmax.xlane.f32.xlu0 %v2094
        %v2096 = vpop.xlane.xlu0 %2095
        %v2097 = vsub.f32 %v2091, %v2096
        %v2098 = vmul.f32 %v2097, 1.442695
        %v2099 = vpow.pop %v2098
        %v2100 = vsel %vm1631, %v2099, 0.0
        %2101 = vadd.xlane.f32.xlu0 %v2100
        %v2102 = vpop.xlane.xlu0 %2101
        %v2103 = vrcp.pop %v2102
        %v2104 = vmul.f32 %v2099, %v2103
        %v2106 = vsel %vm1631, %v2104, 0
        %2108 = vmatprep.subr.mxu0 0.0
        %2109 = vmatpush1.msra.mxu0 %v1559
        %2110 = vmatprep.subr.mxu0 0.0
        %2111 = vmatpush1.msra.mxu0 0.0
        %2112 = vmatprep.subr.mxu0 0.0
        %2113 = vmatpush1.msra.mxu0 0.0
        %2114 = vmatprep.subr.mxu0 0.0
        %2115 = vmatpush1.msra.mxu0 0.0
        %2116 = vmatprep.subr.mxu0 0.0
        %2117 = vmatpush1.msra.mxu0 0.0
        %2118 = vmatprep.subr.mxu0 0.0
        %2119 = vmatpush1.msra.mxu0 0.0
        %2120 = vmatprep.subr.mxu0 0.0
        %2121 = vmatpush1.msra.mxu0 0.0
        %2122 = vmatprep.subr.mxu0 0.0
        %2123 = vmatpush1.msra.mxu0 0.0
        %2124 = vmatprep.subr.mxu0 0.0
        %2125 = vmatpush1.msra.mxu0 0.0
        %2126 = vmatprep.subr.mxu0 0.0
        %2127 = vmatpush1.msra.mxu0 0.0
        %2128 = vmatprep.subr.mxu0 0.0
        %2129 = vmatpush1.msra.mxu0 0.0
        %2130 = vmatprep.subr.mxu0 0.0
        %2131 = vmatpush1.msra.mxu0 0.0
        %2132 = vmatprep.subr.mxu0 0.0
        %2133 = vmatpush1.msra.mxu0 0.0
        %2134 = vmatprep.subr.mxu0 0.0
        %2135 = vmatpush1.msra.mxu0 0.0
        %2136 = vmatprep.subr.mxu0 0.0
        %2137 = vmatpush1.msra.mxu0 0.0
        %2138 = vmatprep.subr.mxu0 0.0
        %2139 = vmatpush1.msra.mxu0 0.0
        %2140 = vmatprep.subr.mxu0 0.0
        %2141 = vmatpush1.msra.mxu0 0.0
        %2142 = vmatprep.subr.mxu0 0.0
        %2143 = vmatpush1.msra.mxu0 0.0
        %2144 = vmatprep.subr.mxu0 0.0
        %2145 = vmatpush1.msra.mxu0 0.0
        %2146 = vmatprep.subr.mxu0 0.0
        %2147 = vmatpush1.msra.mxu0 0.0
        %2148 = vmatprep.subr.mxu0 0.0
        %2149 = vmatpush1.msra.mxu0 0.0
        %2150 = vmatprep.subr.mxu0 0.0
        %2151 = vmatpush1.msra.mxu0 0.0
        %2152 = vmatprep.subr.mxu0 0.0
        %2153 = vmatpush1.msra.mxu0 0.0
        %2154 = vmatprep.subr.mxu0 0.0
        %2155 = vmatpush1.msra.mxu0 0.0
        %2156 = vmatprep.subr.mxu0 0.0
        %2157 = vmatpush1.msra.mxu0 0.0
        %2158 = vmatprep.subr.mxu0 0.0
        %2159 = vmatpush1.msra.mxu0 0.0
        %2160 = vmatprep.subr.mxu0 0.0
        %2161 = vmatpush1.msra.mxu0 0.0
        %2162 = vmatprep.subr.mxu0 0.0
        %2163 = vmatpush1.msra.mxu0 0.0
        %2164 = vmatprep.subr.mxu0 0.0
        %2165 = vmatpush1.msra.mxu0 0.0
        %2166 = vmatprep.subr.mxu0 0.0
        %2167 = vmatpush1.msra.mxu0 0.0
        %2168 = vmatprep.subr.mxu0 0.0
        %2169 = vmatpush1.msra.mxu0 0.0
        %2170 = vmatprep.subr.mxu0 0.0
        %2171 = vmatpush1.msra.mxu0 0.0
        %2172 = vmatprep.mubr.f32.mxu0 0.0
        %2173 = vmatmul.mubr.f32.gmra.mrb[0].mxu0 %v2106
        %v2174 = vpop.f32.mrb[0].mxu0
        %v2175 = vadd.f32 0.0, %v2174
        %v2176 = vpop.f32.mrb[0].mxu0
        %2177 = vdwg.mxu0
        %v2178 = vld [vmem:[%s696] sm:$0xff]
        %v2179 = vld [vmem:[%s696 + $0x8] sm:$0xff]
        %v2180 = vld [vmem:[%s696 + $0x10] sm:$0xff]
        %v2181 = vld [vmem:[%s696 + $0x18] sm:$0xff]
        %v2182 = vld [vmem:[%s696 + $0x20] sm:$0xff]
        %v2183 = vld [vmem:[%s696 + $0x28] sm:$0xff]
        %v2184 = vld [vmem:[%s696 + $0x30] sm:$0xff]
        %v2185 = vld [vmem:[%s696 + $0x38] sm:$0xff]
        %v2186 = vld [vmem:[%s696 + $0x40] sm:$0xff]
        %v2187 = vld [vmem:[%s696 + $0x48] sm:$0xff]
        %v2188 = vld [vmem:[%s696 + $0x50] sm:$0xff]
        %v2189 = vld [vmem:[%s696 + $0x58] sm:$0xff]
        %v2190 = vld [vmem:[%s696 + $0x60] sm:$0xff]
        %v2191 = vld [vmem:[%s696 + $0x68] sm:$0xff]
        %v2192 = vld [vmem:[%s696 + $0x70] sm:$0xff]
        %v2193 = vld [vmem:[%s696 + $0x78] sm:$0xff]
        %v2194 = vld [vmem:[%s696 + $0x80] sm:$0xff]
        %v2195 = vld [vmem:[%s696 + $0x88] sm:$0xff]
        %v2196 = vld [vmem:[%s696 + $0x90] sm:$0xff]
        %v2197 = vld [vmem:[%s696 + $0x98] sm:$0xff]
        %v2198 = vld [vmem:[%s696 + $0xa0] sm:$0xff]
        %v2199 = vld [vmem:[%s696 + $0xa8] sm:$0xff]
        %v2200 = vld [vmem:[%s696 + $0xb0] sm:$0xff]
        %v2201 = vld [vmem:[%s696 + $0xb8] sm:$0xff]
        %v2202 = vld [vmem:[%s696 + $0xc0] sm:$0xff]
        %v2203 = vld [vmem:[%s696 + $0xc8] sm:$0xff]
        %v2204 = vld [vmem:[%s696 + $0xd0] sm:$0xff]
        %v2205 = vld [vmem:[%s696 + $0xd8] sm:$0xff]
        %v2206 = vld [vmem:[%s696 + $0xe0] sm:$0xff]
        %v2207 = vld [vmem:[%s696 + $0xe8] sm:$0xff]
        %v2208 = vld [vmem:[%s696 + $0xf0] sm:$0xff]
        %v2209 = vld [vmem:[%s696 + $0xf8] sm:$0xff]
        %v2210 = vld [vmem:[%s696 + $0x100] sm:$0xff]
        %v2211 = vld [vmem:[%s696 + $0x108] sm:$0xff]
        %v2212 = vld [vmem:[%s696 + $0x110] sm:$0xff]
        %v2213 = vld [vmem:[%s696 + $0x118] sm:$0xff]
        %v2214 = vld [vmem:[%s696 + $0x120] sm:$0xff]
        %v2215 = vld [vmem:[%s696 + $0x128] sm:$0xff]
        %v2216 = vld [vmem:[%s696 + $0x130] sm:$0xff]
        %v2217 = vld [vmem:[%s696 + $0x138] sm:$0xff]
        %v2218 = vld [vmem:[%s696 + $0x140] sm:$0xff]
        %v2219 = vld [vmem:[%s696 + $0x148] sm:$0xff]
        %v2220 = vld [vmem:[%s696 + $0x150] sm:$0xff]
        %v2221 = vld [vmem:[%s696 + $0x158] sm:$0xff]
        %v2222 = vld [vmem:[%s696 + $0x160] sm:$0xff]
        %v2223 = vld [vmem:[%s696 + $0x168] sm:$0xff]
        %v2224 = vld [vmem:[%s696 + $0x170] sm:$0xff]
        %v2225 = vld [vmem:[%s696 + $0x178] sm:$0xff]
        %v2226 = vld [vmem:[%s696 + $0x180] sm:$0xff]
        %v2227 = vld [vmem:[%s696 + $0x188] sm:$0xff]
        %v2228 = vld [vmem:[%s696 + $0x190] sm:$0xff]
        %v2229 = vld [vmem:[%s696 + $0x198] sm:$0xff]
        %v2230 = vld [vmem:[%s696 + $0x1a0] sm:$0xff]
        %v2231 = vld [vmem:[%s696 + $0x1a8] sm:$0xff]
        %v2232 = vld [vmem:[%s696 + $0x1b0] sm:$0xff]
        %v2233 = vld [vmem:[%s696 + $0x1b8] sm:$0xff]
        %v2234 = vld [vmem:[%s696 + $0x1c0] sm:$0xff]
        %v2235 = vld [vmem:[%s696 + $0x1c8] sm:$0xff]
        %v2236 = vld [vmem:[%s696 + $0x1d0] sm:$0xff]
        %v2237 = vld [vmem:[%s696 + $0x1d8] sm:$0xff]
        %v2238 = vld [vmem:[%s696 + $0x1e0] sm:$0xff]
        %v2239 = vld [vmem:[%s696 + $0x1e8] sm:$0xff]
        %v2240 = vld [vmem:[%s696 + $0x1f0] sm:$0xff]
        %v2241 = vld [vmem:[%s696 + $0x1f8] sm:$0xff]
        %v2242 = vld [vmem:[%s704] sm:$0x1]
        %v2244 = vlaneseq
        %v2245 = vshrl.u32 %v2244, 7
        %v2246 = vsub.s32 0, %v2245
        %v2247 = vrot.slane %v2242, %v2246
        %2249 = vmatprep.subr.mxu0 0.0
        %2250 = vmatpush1.msra.mxu0 %v2178
        %2251 = vmatprep.subr.mxu0 0.0
        %2252 = vmatpush1.msra.mxu0 %v2179
        %2253 = vmatprep.subr.mxu0 0.0
        %2254 = vmatpush1.msra.mxu0 %v2180
        %2255 = vmatprep.subr.mxu0 0.0
        %2256 = vmatpush1.msra.mxu0 %v2181
        %2257 = vmatprep.subr.mxu0 0.0
        %2258 = vmatpush1.msra.mxu0 %v2182
        %2259 = vmatprep.subr.mxu0 0.0
        %2260 = vmatpush1.msra.mxu0 %v2183
        %2261 = vmatprep.subr.mxu0 0.0
        %2262 = vmatpush1.msra.mxu0 %v2184
        %2263 = vmatprep.subr.mxu0 0.0
        %2264 = vmatpush1.msra.mxu0 %v2185
        %2265 = vmatprep.subr.mxu0 0.0
        %2266 = vmatpush1.msra.mxu0 %v2186
        %2267 = vmatprep.subr.mxu0 0.0
        %2268 = vmatpush1.msra.mxu0 %v2187
        %2269 = vmatprep.subr.mxu0 0.0
        %2270 = vmatpush1.msra.mxu0 %v2188
        %2271 = vmatprep.subr.mxu0 0.0
        %2272 = vmatpush1.msra.mxu0 %v2189
        %2273 = vmatprep.subr.mxu0 0.0
        %2274 = vmatpush1.msra.mxu0 %v2190
        %2275 = vmatprep.subr.mxu0 0.0
        %2276 = vmatpush1.msra.mxu0 %v2191
        %2277 = vmatprep.subr.mxu0 0.0
        %2278 = vmatpush1.msra.mxu0 %v2192
        %2279 = vmatprep.subr.mxu0 0.0
        %2280 = vmatpush1.msra.mxu0 %v2193
        %2281 = vmatprep.subr.mxu0 0.0
        %2282 = vmatpush1.msra.mxu0 %v2194
        %2283 = vmatprep.subr.mxu0 0.0
        %2284 = vmatpush1.msra.mxu0 %v2195
        %2285 = vmatprep.subr.mxu0 0.0
        %2286 = vmatpush1.msra.mxu0 %v2196
        %2287 = vmatprep.subr.mxu0 0.0
        %2288 = vmatpush1.msra.mxu0 %v2197
        %2289 = vmatprep.subr.mxu0 0.0
        %2290 = vmatpush1.msra.mxu0 %v2198
        %2291 = vmatprep.subr.mxu0 0.0
        %2292 = vmatpush1.msra.mxu0 %v2199
        %2293 = vmatprep.subr.mxu0 0.0
        %2294 = vmatpush1.msra.mxu0 %v2200
        %2295 = vmatprep.subr.mxu0 0.0
        %2296 = vmatpush1.msra.mxu0 %v2201
        %2297 = vmatprep.subr.mxu0 0.0
        %2298 = vmatpush1.msra.mxu0 %v2202
        %2299 = vmatprep.subr.mxu0 0.0
        %2300 = vmatpush1.msra.mxu0 %v2203
        %2301 = vmatprep.subr.mxu0 0.0
        %2302 = vmatpush1.msra.mxu0 %v2204
        %2303 = vmatprep.subr.mxu0 0.0
        %2304 = vmatpush1.msra.mxu0 %v2205
        %2305 = vmatprep.subr.mxu0 0.0
        %2306 = vmatpush1.msra.mxu0 %v2206
        %2307 = vmatprep.subr.mxu0 0.0
        %2308 = vmatpush1.msra.mxu0 %v2207
        %2309 = vmatprep.subr.mxu0 0.0
        %2310 = vmatpush1.msra.mxu0 %v2208
        %2311 = vmatprep.subr.mxu0 0.0
        %2312 = vmatpush1.msra.mxu0 %v2209
        %2313 = vmatprep.mubr.f32.mxu0 %v1867
        %2314 = vmatmul.mubr.f32.gmra.mrb[0].mxu0 %v1713
        %v2315 = vpop.f32.mrb[0].mxu0
        %v2316 = vadd.f32 %v2247, %v2315
        %v2317 = vpop.f32.mrb[0].mxu0
        %2318 = vdwg.mxu0
        %2319 = vmatprep.subr.mxu0 0.0
        %2320 = vmatpush1.msra.mxu0 %v2210
        %2321 = vmatprep.subr.mxu0 0.0
        %2322 = vmatpush1.msra.mxu0 %v2211
        %2323 = vmatprep.subr.mxu0 0.0
        %2324 = vmatpush1.msra.mxu0 %v2212
        %2325 = vmatprep.subr.mxu0 0.0
        %2326 = vmatpush1.msra.mxu0 %v2213
        %2327 = vmatprep.subr.mxu0 0.0
        %2328 = vmatpush1.msra.mxu0 %v2214
        %2329 = vmatprep.subr.mxu0 0.0
        %2330 = vmatpush1.msra.mxu0 %v2215
        %2331 = vmatprep.subr.mxu0 0.0
        %2332 = vmatpush1.msra.mxu0 %v2216
        %2333 = vmatprep.subr.mxu0 0.0
        %2334 = vmatpush1.msra.mxu0 %v2217
        %2335 = vmatprep.subr.mxu0 0.0
        %2336 = vmatpush1.msra.mxu0 %v2218
        %2337 = vmatprep.subr.mxu0 0.0
        %2338 = vmatpush1.msra.mxu0 %v2219
        %2339 = vmatprep.subr.mxu0 0.0
        %2340 = vmatpush1.msra.mxu0 %v2220
        %2341 = vmatprep.subr.mxu0 0.0
        %2342 = vmatpush1.msra.mxu0 %v2221
        %2343 = vmatprep.subr.mxu0 0.0
        %2344 = vmatpush1.msra.mxu0 %v2222
        %2345 = vmatprep.subr.mxu0 0.0
        %2346 = vmatpush1.msra.mxu0 %v2223
        %2347 = vmatprep.subr.mxu0 0.0
        %2348 = vmatpush1.msra.mxu0 %v2224
        %2349 = vmatprep.subr.mxu0 0.0
        %2350 = vmatpush1.msra.mxu0 %v2225
        %2351 = vmatprep.subr.mxu0 0.0
        %2352 = vmatpush1.msra.mxu0 %v2226
        %2353 = vmatprep.subr.mxu0 0.0
        %2354 = vmatpush1.msra.mxu0 %v2227
        %2355 = vmatprep.subr.mxu0 0.0
        %2356 = vmatpush1.msra.mxu0 %v2228
        %2357 = vmatprep.subr.mxu0 0.0
        %2358 = vmatpush1.msra.mxu0 %v2229
        %2359 = vmatprep.subr.mxu0 0.0
        %2360 = vmatpush1.msra.mxu0 %v2230
        %2361 = vmatprep.subr.mxu0 0.0
        %2362 = vmatpush1.msra.mxu0 %v2231
        %2363 = vmatprep.subr.mxu0 0.0
        %2364 = vmatpush1.msra.mxu0 %v2232
        %2365 = vmatprep.subr.mxu0 0.0
        %2366 = vmatpush1.msra.mxu0 %v2233
        %2367 = vmatprep.subr.mxu0 0.0
        %2368 = vmatpush1.msra.mxu0 %v2234
        %2369 = vmatprep.subr.mxu0 0.0
        %2370 = vmatpush1.msra.mxu0 %v2235
        %2371 = vmatprep.subr.mxu0 0.0
        %2372 = vmatpush1.msra.mxu0 %v2236
        %2373 = vmatprep.subr.mxu0 0.0
        %2374 = vmatpush1.msra.mxu0 %v2237
        %2375 = vmatprep.subr.mxu0 0.0
        %2376 = vmatpush1.msra.mxu0 %v2238
        %2377 = vmatprep.subr.mxu0 0.0
        %2378 = vmatpush1.msra.mxu0 %v2239
        %2379 = vmatprep.subr.mxu0 0.0
        %2380 = vmatpush1.msra.mxu0 %v2240
        %2381 = vmatprep.subr.mxu0 0.0
        %2382 = vmatpush1.msra.mxu0 %v2241
        %2383 = vmatprep.mubr.f32.mxu0 %v2175
        %2384 = vmatmul.mubr.f32.gmra.mrb[0].mxu0 %v2021
        %v2385 = vpop.f32.mrb[0].mxu0
        %v2386 = vadd.f32 %v2316, %v2385
        %v2387 = vpop.f32.mrb[0].mxu0
        %2388 = vdwg.mxu0
        %v2389 = vadd.f32 %v875, %v2386
        %v2390 = vld [vmem:[%s712] sm:$0x1]
        %v2391 = vld [vmem:[%s720] sm:$0x1]
        %2392 = vadd.xlane.f32.xlu0 %v2389
        %v2393 = vpop.xlane.xlu0 %2392
        %v2394 = vmul.f32 %v2393, 0.03125
        %v2395 = vsub.f32 %v2389, %v2394
        %v2396 = vsel %vm878, 1, 0
        %vm2397 = vcmp.eq.s32.totalorder %v2396, 1
        %v2398 = vsel %vm2397, %v2395, 0.0
        %v2399 = vmul.f32 %v2398, %v2398
        %2400 = vadd.xlane.f32.xlu0 %v2399
        %v2401 = vpop.xlane.xlu0 %2400
        %v2402 = vmul.f32 %v2401, 0.03125
        %v2403 = vadd.f32 %v2402, 1e-05
        %v2404 = vrsqrt.pop %v2403
        %v2405 = vmul.f32 %v2398, %v2404
        %v2407 = vlaneseq
        %v2408 = vshrl.u32 %v2407, 7
        %v2409 = vsub.s32 0, %v2408
        %v2410 = vrot.slane %v2390, %v2409
        %v2412 = vmul.f32 %v2405, %v2410
        %v2414 = vlaneseq
        %v2415 = vshrl.u32 %v2414, 7
        %v2416 = vsub.s32 0, %v2415
        %v2417 = vrot.slane %v2391, %v2416
        %v2419 = vadd.f32 %v2412, %v2417
        %v2420 = vld [vmem:[%s729] sm:$0xff]
        %v2421 = vld [vmem:[%s729 + $0x8] sm:$0xff]
        %v2422 = vld [vmem:[%s729 + $0x10] sm:$0xff]
        %v2423 = vld [vmem:[%s729 + $0x18] sm:$0xff]
        %v2424 = vld [vmem:[%s729 + $0x20] sm:$0xff]
        %v2425 = vld [vmem:[%s729 + $0x28] sm:$0xff]
        %v2426 = vld [vmem:[%s729 + $0x30] sm:$0xff]
        %v2427 = vld [vmem:[%s729 + $0x38] sm:$0xff]
        %v2428 = vld [vmem:[%s729 + $0x40] sm:$0xff]
        %v2429 = vld [vmem:[%s729 + $0x48] sm:$0xff]
        %v2430 = vld [vmem:[%s729 + $0x50] sm:$0xff]
        %v2431 = vld [vmem:[%s729 + $0x58] sm:$0xff]
        %v2432 = vld [vmem:[%s729 + $0x60] sm:$0xff]
        %v2433 = vld [vmem:[%s729 + $0x68] sm:$0xff]
        %v2434 = vld [vmem:[%s729 + $0x70] sm:$0xff]
        %v2435 = vld [vmem:[%s729 + $0x78] sm:$0xff]
        %v2436 = vld [vmem:[%s737] sm:$0x1]
        %v2438 = vlaneseq
        %v2439 = vshrl.u32 %v2438, 7
        %v2440 = vsub.s32 0, %v2439
        %v2441 = vrot.slane %v2436, %v2440
        %2443 = vmatprep.subr.mxu0 0.0
        %2444 = vmatpush1.msra.mxu0 %v2420
        %2445 = vmatprep.subr.mxu0 0.0
        %2446 = vmatpush1.msra.mxu0 %v2421
        %2447 = vmatprep.subr.mxu0 0.0
        %2448 = vmatpush1.msra.mxu0 %v2422
        %2449 = vmatprep.subr.mxu0 0.0
        %2450 = vmatpush1.msra.mxu0 %v2423
        %2451 = vmatprep.subr.mxu0 0.0
        %2452 = vmatpush1.msra.mxu0 %v2424
        %2453 = vmatprep.subr.mxu0 0.0
        %2454 = vmatpush1.msra.mxu0 %v2425
        %2455 = vmatprep.subr.mxu0 0.0
        %2456 = vmatpush1.msra.mxu0 %v2426
        %2457 = vmatprep.subr.mxu0 0.0
        %2458 = vmatpush1.msra.mxu0 %v2427
        %2459 = vmatprep.subr.mxu0 0.0
        %2460 = vmatpush1.msra.mxu0 %v2428
        %2461 = vmatprep.subr.mxu0 0.0
        %2462 = vmatpush1.msra.mxu0 %v2429
        %2463 = vmatprep.subr.mxu0 0.0
        %2464 = vmatpush1.msra.mxu0 %v2430
        %2465 = vmatprep.subr.mxu0 0.0
        %2466 = vmatpush1.msra.mxu0 %v2431
        %2467 = vmatprep.subr.mxu0 0.0
        %2468 = vmatpush1.msra.mxu0 %v2432
        %2469 = vmatprep.subr.mxu0 0.0
        %2470 = vmatpush1.msra.mxu0 %v2433
        %2471 = vmatprep.subr.mxu0 0.0
        %2472 = vmatpush1.msra.mxu0 %v2434
        %2473 = vmatprep.subr.mxu0 0.0
        %2474 = vmatpush1.msra.mxu0 %v2435
        %2475 = vmatprep.subr.mxu0 0.0
        %2476 = vmatpush1.msra.mxu0 0.0
        %2477 = vmatprep.subr.mxu0 0.0
        %2478 = vmatpush1.msra.mxu0 0.0
        %2479 = vmatprep.subr.mxu0 0.0
        %2480 = vmatpush1.msra.mxu0 0.0
        %2481 = vmatprep.subr.mxu0 0.0
        %2482 = vmatpush1.msra.mxu0 0.0
        %2483 = vmatprep.subr.mxu0 0.0
        %2484 = vmatpush1.msra.mxu0 0.0
        %2485 = vmatprep.subr.mxu0 0.0
        %2486 = vmatpush1.msra.mxu0 0.0
        %2487 = vmatprep.subr.mxu0 0.0
        %2488 = vmatpush1.msra.mxu0 0.0
        %2489 = vmatprep.subr.mxu0 0.0
        %2490 = vmatpush1.msra.mxu0 0.0
        %2491 = vmatprep.subr.mxu0 0.0
        %2492 = vmatpush1.msra.mxu0 0.0
        %2493 = vmatprep.subr.mxu0 0.0
        %2494 = vmatpush1.msra.mxu0 0.0
        %2495 = vmatprep.subr.mxu0 0.0
        %2496 = vmatpush1.msra.mxu0 0.0
        %2497 = vmatprep.subr.mxu0 0.0
        %2498 = vmatpush1.msra.mxu0 0.0
        %2499 = vmatprep.subr.mxu0 0.0
        %2500 = vmatpush1.msra.mxu0 0.0
        %2501 = vmatprep.subr.mxu0 0.0
        %2502 = vmatpush1.msra.mxu0 0.0
        %2503 = vmatprep.subr.mxu0 0.0
        %2504 = vmatpush1.msra.mxu0 0.0
        %2505 = vmatprep.subr.mxu0 0.0
        %2506 = vmatpush1.msra.mxu0 0.0
        %2507 = vmatprep.mubr.f32.mxu0 0.0
        %2508 = vmatmul.mubr.f32.gmra.mrb[0].mxu0 %v2419
        %v2509 = vpop.f32.mrb[0].mxu0
        %v2510 = vadd.f32 %v2441, %v2509
        %v2511 = vpop.f32.mrb[0].mxu0
        %2512 = vdwg.mxu0
        %v2513 = vmul.f32 %v2510, 0.5
        %v2514 = vmul.f32 %v2510, 0.70710677
        %v2515 = verf.f32.pop %v2514
        %v2516 = vadd.f32 %v2515, 1.0
        %v2517 = vmul.f32 %v2513, %v2516
        %v2518 = vld [vmem:[%s746] sm:$0xff]
        %v2519 = vld [vmem:[%s746 + $0x8] sm:$0xff]
        %v2520 = vld [vmem:[%s746 + $0x10] sm:$0xff]
        %v2521 = vld [vmem:[%s746 + $0x18] sm:$0xff]
        %v2522 = vld [vmem:[%s746 + $0x20] sm:$0xff]
        %v2523 = vld [vmem:[%s746 + $0x28] sm:$0xff]
        %v2524 = vld [vmem:[%s746 + $0x30] sm:$0xff]
        %v2525 = vld [vmem:[%s746 + $0x38] sm:$0xff]
        %v2526 = vld [vmem:[%s746 + $0x40] sm:$0xff]
        %v2527 = vld [vmem:[%s746 + $0x48] sm:$0xff]
        %v2528 = vld [vmem:[%s746 + $0x50] sm:$0xff]
        %v2529 = vld [vmem:[%s746 + $0x58] sm:$0xff]
        %v2530 = vld [vmem:[%s746 + $0x60] sm:$0xff]
        %v2531 = vld [vmem:[%s746 + $0x68] sm:$0xff]
        %v2532 = vld [vmem:[%s746 + $0x70] sm:$0xff]
        %v2533 = vld [vmem:[%s746 + $0x78] sm:$0xff]
        %v2534 = vld [vmem:[%s754] sm:$0x1]
        %v2536 = vlaneseq
        %v2537 = vshrl.u32 %v2536, 7
        %v2538 = vsub.s32 0, %v2537
        %v2539 = vrot.slane %v2534, %v2538
        %2541 = vmatprep.subr.mxu0 0.0
        %2542 = vmatpush1.msra.mxu0 %v2518
        %2543 = vmatprep.subr.mxu0 0.0
        %2544 = vmatpush1.msra.mxu0 %v2519
        %2545 = vmatprep.subr.mxu0 0.0
        %2546 = vmatpush1.msra.mxu0 %v2520
        %2547 = vmatprep.subr.mxu0 0.0
        %2548 = vmatpush1.msra.mxu0 %v2521
        %2549 = vmatprep.subr.mxu0 0.0
        %2550 = vmatpush1.msra.mxu0 %v2522
        %2551 = vmatprep.subr.mxu0 0.0
        %2552 = vmatpush1.msra.mxu0 %v2523
        %2553 = vmatprep.subr.mxu0 0.0
        %2554 = vmatpush1.msra.mxu0 %v2524
        %2555 = vmatprep.subr.mxu0 0.0
        %2556 = vmatpush1.msra.mxu0 %v2525
        %2557 = vmatprep.subr.mxu0 0.0
        %2558 = vmatpush1.msra.mxu0 %v2526
        %2559 = vmatprep.subr.mxu0 0.0
        %2560 = vmatpush1.msra.mxu0 %v2527
        %2561 = vmatprep.subr.mxu0 0.0
        %2562 = vmatpush1.msra.mxu0 %v2528
        %2563 = vmatprep.subr.mxu0 0.0
        %2564 = vmatpush1.msra.mxu0 %v2529
        %2565 = vmatprep.subr.mxu0 0.0
        %2566 = vmatpush1.msra.mxu0 %v2530
        %2567 = vmatprep.subr.mxu0 0.0
        %2568 = vmatpush1.msra.mxu0 %v2531
        %2569 = vmatprep.subr.mxu0 0.0
        %2570 = vmatpush1.msra.mxu0 %v2532
        %2571 = vmatprep.subr.mxu0 0.0
        %2572 = vmatpush1.msra.mxu0 %v2533
        %2573 = vmatprep.subr.mxu0 0.0
        %2574 = vmatpush1.msra.mxu0 0.0
        %2575 = vmatprep.subr.mxu0 0.0
        %2576 = vmatpush1.msra.mxu0 0.0
        %2577 = vmatprep.subr.mxu0 0.0
        %2578 = vmatpush1.msra.mxu0 0.0
        %2579 = vmatprep.subr.mxu0 0.0
        %2580 = vmatpush1.msra.mxu0 0.0
        %2581 = vmatprep.subr.mxu0 0.0
        %2582 = vmatpush1.msra.mxu0 0.0
        %2583 = vmatprep.subr.mxu0 0.0
        %2584 = vmatpush1.msra.mxu0 0.0
        %2585 = vmatprep.subr.mxu0 0.0
        %2586 = vmatpush1.msra.mxu0 0.0
        %2587 = vmatprep.subr.mxu0 0.0
        %2588 = vmatpush1.msra.mxu0 0.0
        %2589 = vmatprep.subr.mxu0 0.0
        %2590 = vmatpush1.msra.mxu0 0.0
        %2591 = vmatprep.subr.mxu0 0.0
        %2592 = vmatpush1.msra.mxu0 0.0
        %2593 = vmatprep.subr.mxu0 0.0
        %2594 = vmatpush1.msra.mxu0 0.0
        %2595 = vmatprep.subr.mxu0 0.0
        %2596 = vmatpush1.msra.mxu0 0.0
        %2597 = vmatprep.subr.mxu0 0.0
        %2598 = vmatpush1.msra.mxu0 0.0
        %2599 = vmatprep.subr.mxu0 0.0
        %2600 = vmatpush1.msra.mxu0 0.0
        %2601 = vmatprep.subr.mxu0 0.0
        %2602 = vmatpush1.msra.mxu0 0.0
        %2603 = vmatprep.subr.mxu0 0.0
        %2604 = vmatpush1.msra.mxu0 0.0
        %2605 = vmatprep.mubr.f32.mxu0 0.0
        %2606 = vmatmul.mubr.f32.gmra.mrb[0].mxu0 %v2517
        %v2607 = vpop.f32.mrb[0].mxu0
        %v2608 = vadd.f32 %v2539, %v2607
        %v2609 = vpop.f32.mrb[0].mxu0
        %2610 = vdwg.mxu0
        %v2611 = vadd.f32 %v2419, %v2608
        %v2612 = vld [vmem:[%s762] sm:$0x1]
        %v2613 = vld [vmem:[%s770] sm:$0x1]
        %2614 = vadd.xlane.f32.xlu0 %v2611
        %v2615 = vpop.xlane.xlu0 %2614
        %v2616 = vmul.f32 %v2615, 0.03125
        %v2617 = vsub.f32 %v2611, %v2616
        %v2618 = vsel %vm2397, %v2617, 0.0
        %v2619 = vmul.f32 %v2618, %v2618
        %2620 = vadd.xlane.f32.xlu0 %v2619
        %v2621 = vpop.xlane.xlu0 %2620
        %v2622 = vmul.f32 %v2621, 0.03125
        %v2623 = vadd.f32 %v2622, 1e-05
        %v2624 = vrsqrt.pop %v2623
        %v2625 = vmul.f32 %v2618, %v2624
        %v2627 = vlaneseq
        %v2628 = vshrl.u32 %v2627, 7
        %v2629 = vsub.s32 0, %v2628
        %v2630 = vrot.slane %v2612, %v2629
        %v2632 = vmul.f32 %v2625, %v2630
        %v2634 = vlaneseq
        %v2635 = vshrl.u32 %v2634, 7
        %v2636 = vsub.s32 0, %v2635
        %v2637 = vrot.slane %v2613, %v2636
        %v2639 = vadd.f32 %v2632, %v2637
        %2640 = vst [vmem:[#allocation2] sm:$0xff] %v2639
        %p2641 = scmp.eq.s32.totalorder %s53, 1
        // Predicated region
        $region125: #{simple_transformer_blocks.1} parent=71 // pred_check
          %p2642 = pneg %p2641
        $region126: #{simple_transformer_blocks.1} parent=71 // pred_check_branch
          %2644 = sbr.rel (%p2642) target = $region128
        $region127: #{simple_transformer_blocks.1} parent=71 // pred_region
          %2645 = vst [vmem:[%s864] sm:$0xff] %v2639
        $region128: #{simple_transformer_blocks.1} parent=71 // pred_fallthru
          _
        %s2646 = sand.u32 %s406, 1
        %s2647 = scalar_lea.sflag [#allocation5], %s2646
        %s2648 = sand.u32 %s406, 1
        %s2649 = smul.addr %s2648, 8
        %s2650 = scalar_lea.vmem [#allocation23], %s2649
        // Predicated region
        $region129: #{simple_transformer_blocks.1} parent=71 // pred_check
          %p2651 = pneg %p416
        $region130: #{simple_transformer_blocks.1} parent=71 // pred_check_branch
          %2653 = sbr.rel (%p2651) target = $region132
        $region131: #{simple_transformer_blocks.1} parent=71 // pred_region
          %s2655 = ssub.s32 128, 128
          %2656 = vsyncadd %s2647, %s2655
          %s2657 = smul.addr %s52, 128
          %s2658 = scalar_lea.hbm %s13, %s2657
          %s2660 = sshll.u32 %s2650, 4
          %s2661 = int_to_ptr.vmem [resolvable:$true] %s2660
          %2663 = dma.vmem_to_hbm [thread:$0]  %s2661, 128, %s2658, %s2647
        $region132: #{simple_transformer_blocks.1} parent=71 // pred_fallthru
          _
      $region72: #{simple_transformer_blocks.1} parent=5 // pred_fallthru
        _
      %p2664 = scmp.le.s32.totalorder 2, %s43
      // Predicated region
      $region133: #{simple_transformer_blocks.1} parent=5 // pred_check
        %p2665 = pneg %p2664
      $region134: #{simple_transformer_blocks.1} parent=5 // pred_check_branch
        %2667 = sbr.rel (%p2665) target = $region136
      $region135: #{simple_transformer_blocks.1} parent=5 // pred_region
        %s2668 = ssub.s32 %s43, 2
        // Predicated region
        $region137: #{simple_transformer_blocks.1} parent=135 // pred_check
          %p2669 = pneg %p422
        $region138: #{simple_transformer_blocks.1} parent=135 // pred_check_branch
          %2671 = sbr.rel (%p2669) target = $region140
        $region139: #{simple_transformer_blocks.1} parent=135 // pred_region
          %s2672 = sand.u32 %s407, 1
          %s2673 = scalar_lea.sflag [#allocation5], %s2672
          %s2674 = sand.u32 %s407, 1
          %s2675 = smul.addr %s2674, 8
          %s2676 = scalar_lea.vmem [#allocation23], %s2675
          %2677 = dma.done %s2673, 128
        $region140: #{simple_transformer_blocks.1} parent=135 // pred_fallthru
          _
      $region136: #{simple_transformer_blocks.1} parent=5 // pred_fallthru
        _
    $region6: #{simple_transformer_blocks.1} parent=1 // loop_footer
      %s47 = sadd.s32 1, %s43
    $region7: #{simple_transformer_blocks.1} parent=1 // loop_footer_branch
      %42 = sbr.rel target = $region3
    $region8: #{simple_transformer_blocks.1} parent=1 // loop_exit
      _
    %2678 = vsyncpa [#allocation4], 1
    %s2679 = scalar_lea.sflag [#allocation4], 1
    %2680 = vsyncpa %s2679, 1
    %2681 = vsyncpa [#allocation7], 1
    %s2682 = scalar_lea.sflag [#allocation7], 1
    %2683 = vsyncpa %s2682, 1
    %2684 = vsyncpa [#allocation10], 1
    %s2685 = scalar_lea.sflag [#allocation10], 1
    %2686 = vsyncpa %s2685, 1
    %2687 = vsyncpa [#allocation13], 1
    %s2688 = scalar_lea.sflag [#allocation13], 1
    %2689 = vsyncpa %s2688, 1
    %2690 = vsyncpa [#allocation16], 1
    %s2691 = scalar_lea.sflag [#allocation16], 1
    %2692 = vsyncpa %s2691, 1
    %2693 = vsyncpa [#allocation19], 1
    %s2694 = scalar_lea.sflag [#allocation19], 1
    %2695 = vsyncpa %s2694, 1
    %2696 = vsyncpa [#allocation22], 1
    %s2697 = scalar_lea.sflag [#allocation22], 1
    %2698 = vsyncpa %s2697, 1
    %2699 = vsyncpa [#allocation5], 1
    %s2700 = scalar_lea.sflag [#allocation5], 1
    %2701 = vsyncpa %s2700, 1

</llo_original>
